<compile_context>
chip_gen: v5e
topology: v5e:2x2
jax: 0.10.0
libtpu: 0.0.40
codegen_flags: <defaults>
</compile_context>

<pallas_src>
import functools
import math

import jax
import jax.numpy as jnp
from jax import lax
from jax.experimental import pallas as pl
from jax.experimental.pallas import tpu as pltpu


LAYER_PARAM_NAMES = ("wqkv", "bqkv", "wo", "bo", "ln1_g", "ln1_b",
                     "w1", "b1", "w2", "b2", "ln2_g", "ln2_b")
N_LAYER_PARAMS = len(LAYER_PARAM_NAMES)


# ---------------------------------------------------------------------------
# Positional-encoding table (identical values to the PyTorch buffer, laid out
# lane-dense as (max_len, d_model)).
# ---------------------------------------------------------------------------
def make_positional_encoding_table(d_model: int, max_len: int = 128) -> jnp.ndarray:
    position = jnp.arange(0, max_len, dtype=jnp.float32)[:, None]
    div_term = jnp.exp(
        jnp.arange(0, d_model, 2, dtype=jnp.float32) * (-math.log(10000.0) / d_model)
    )
    angles = position * div_term
    pe = jnp.zeros((max_len, d_model), dtype=jnp.float32)
    pe = pe.at[:, 0::2].set(jnp.sin(angles))
    pe = pe.at[:, 1::2].set(jnp.cos(angles))
    return pe


# ---------------------------------------------------------------------------
# In-kernel helpers (pure value math on VMEM-loaded tiles).
# ---------------------------------------------------------------------------
def _layernorm(x, gamma, beta, eps=1e-5):
    mean = jnp.mean(x, axis=-1, keepdims=True)
    var = jnp.mean(jnp.square(x - mean), axis=-1, keepdims=True)
    return (x - mean) * lax.rsqrt(var + eps) * gamma + beta


def _encoder_layer(x, mask_add, wqkv, bqkv, wo, bo, ln1_g, ln1_b,
                   w1, b1, w2, b2, ln2_g, ln2_b, *, num_heads, head_dim):
    """One post-norm TransformerEncoderLayer (MHA + FFN), relu activation."""
    d_model = num_heads * head_dim
    # packed QKV projection (single MXU matmul)
    qkv = jnp.dot(x, wqkv, preferred_element_type=jnp.float32) + bqkv
    scale = 1.0 / math.sqrt(head_dim)
    ctx = None
    for h in range(num_heads):                         # static, small
        lo, hi = h * head_dim, (h + 1) * head_dim
        qh = qkv[:, lo:hi] * scale
        kh = qkv[:, d_model + lo:d_model + hi]
        vh = qkv[:, 2 * d_model + lo:2 * d_model + hi]
        scores = lax.dot_general(qh, kh, (((1,), (1,)), ((), ())),
                                 preferred_element_type=jnp.float32)   # (S, S)
        scores = scores + mask_add                     # broadcast over query rows
        m = jnp.max(scores, axis=-1, keepdims=True)
        p = jnp.exp(scores - m)
        p = p / jnp.sum(p, axis=-1, keepdims=True)
        oh = jnp.dot(p, vh, preferred_element_type=jnp.float32)        # (S, hd)
        # fold the output projection per head: concat(heads) @ Wo == sum_h oh @ Wo[h]
        part = jnp.dot(oh, wo[lo:hi, :], preferred_element_type=jnp.float32)
        ctx = part if ctx is None else ctx + part
    attn = ctx + bo

    # residual + post-LN, feed-forward (relu), residual + post-LN
    x = _layernorm(x + attn, ln1_g, ln1_b)
    h_ff = jnp.maximum(jnp.dot(x, w1, preferred_element_type=jnp.float32) + b1, 0.0)
    y = jnp.dot(h_ff, w2, preferred_element_type=jnp.float32) + b2
    # TODO(synk): dropout is the identity in eval mode, so it is intentionally omitted.
    return _layernorm(x + y, ln2_g, ln2_b)


# ---------------------------------------------------------------------------
# Single fused kernel: embedding gather + PE add + N encoder layers +
# first-token classification head + log_softmax.   grid = (B,)  (parallel)
# ---------------------------------------------------------------------------
def _fused_forward_kernel(ids_ref, len_ref, emb_ref, pe_ref, *rest,
                          num_layers, num_heads, head_dim, seq_len):
    n_lw = num_layers * N_LAYER_PARAMS
    layer_refs = rest[:n_lw]
    out_w_ref, out_b_ref, o_ref, x_scratch = rest[n_lw:]

    b = pl.program_id(0)

    # --- fused embedding gather + positional-encoding add -> one (S, D) tile
    for s in range(seq_len):                           # static, small
        tok = ids_ref[b, s]                            # SMEM scalar read
        row = emb_ref[tok]                             # (1, D) dynamic row gather
        x_scratch[s:s + 1, :] = (row.astype(jnp.float32)
                                 + pe_ref[s:s + 1, :].astype(jnp.float32))
    x = x_scratch[...]                                 # (S, D) f32

    # --- additive key-padding mask built in-kernel from SMEM lengths
    col = lax.broadcasted_iota(jnp.int32, (1, seq_len), 1)
    mask_add = jnp.where(col < len_ref[b], 0.0, -1e9).astype(jnp.float32)  # (1, S)

    # --- encoder layers (statically unrolled)
    for l in range(num_layers):
        w = [layer_refs[l * N_LAYER_PARAMS + i][...] for i in range(N_LAYER_PARAMS)]
        x = _encoder_layer(x, mask_add, *w, num_heads=num_heads, head_dim=head_dim)

    # --- first-token linear head + log_softmax
    x0 = x[0:1, :]                                     # (1, D)
    logits = jnp.dot(x0, out_w_ref[...], preferred_element_type=jnp.float32) + out_b_ref[...]
    m = jnp.max(logits, axis=-1, keepdims=True)
    lse = m + jnp.log(jnp.sum(jnp.exp(logits - m), axis=-1, keepdims=True))
    o_ref[...] = (logits - lse).astype(o_ref.dtype)


def transformer_forward(inputs, lengths, params, *, num_heads):
    """inputs (B, S) int32, lengths (B,) int32 -> log-probs (B, num_class)."""
    B, S = inputs.shape
    V, D = params["embedding"].shape
    C = params["out_w"].shape[1]
    num_layers = len(params["layers"])
    head_dim = D // num_heads
    dtype = params["embedding"].dtype

    emb3 = params["embedding"].reshape(V, 1, D)        # leading-axis layout for row gather
    pe_slice = params["pe"][:S].astype(dtype)

    def rep(shape):
        # full-array block, resident across the (parallel) batch grid
        return pl.BlockSpec(shape, lambda b, *_: (0,) * len(shape))

    layer_args, layer_specs = [], []
    for lp in params["layers"]:
        for name in LAYER_PARAM_NAMES:
            arr = lp[name]
            layer_args.append(arr)
            layer_specs.append(rep(arr.shape))

    kernel = functools.partial(_fused_forward_kernel, num_layers=num_layers,
                               num_heads=num_heads, head_dim=head_dim, seq_len=S)

    out = pl.pallas_call(
        kernel,
        out_shape=jax.ShapeDtypeStruct((B, 1, C), dtype),
        grid_spec=pltpu.PrefetchScalarGridSpec(
            num_scalar_prefetch=2,                     # token ids + lengths in SMEM
            grid=(B,),
            in_specs=[rep((V, 1, D)), rep((S, D))]
                     + layer_specs
                     + [rep(params["out_w"].shape), rep(params["out_b"].shape)],
            out_specs=pl.BlockSpec((None, 1, C), lambda b, *_: (b, 0, 0)),
            scratch_shapes=[pltpu.VMEM((S, D), jnp.float32)],
        ),
        compiler_params=pltpu.CompilerParams(
            dimension_semantics=("parallel",),
            vmem_limit_bytes=32 * 1024 * 1024,
        ),
    )(inputs.astype(jnp.int32), lengths.astype(jnp.int32),
      emb3, pe_slice, *layer_args, params["out_w"], params["out_b"])
    return out.reshape(B, C)


# ---------------------------------------------------------------------------
# Pure-JAX reference (same math) for verification.
# ---------------------------------------------------------------------------
def _ref_layernorm(x, g, b, eps=1e-5):
    mean = jnp.mean(x, axis=-1, keepdims=True)
    var = jnp.mean(jnp.square(x - mean), axis=-1, keepdims=True)
    return (x - mean) / jnp.sqrt(var + eps) * g + b


def reference_forward(inputs, lengths, params, num_heads):
    B, S = inputs.shape
    D = params["embedding"].shape[1]
    hd = D // num_heads
    x = params["embedding"][inputs] + params["pe"][:S][None, :, :]
    pad = jnp.arange(S, dtype=jnp.int32)[None, :] >= lengths[:, None]
    mask_add = jnp.where(pad, -1e9, 0.0).astype(jnp.float32)                # (B, S)
    for lp in params["layers"]:
        qkv = x @ lp["wqkv"] + lp["bqkv"]
        q, k, v = qkv[..., :D], qkv[..., D:2 * D], qkv[..., 2 * D:]

        def heads(t):
            return t.reshape(B, S, num_heads, hd).transpose(0, 2, 1, 3)

        qh, kh, vh = heads(q), heads(k), heads(v)
        scores = jnp.einsum("bhqd,bhkd->bhqk", qh / math.sqrt(hd), kh)
        scores = scores + mask_add[:, None, None, :]
        probs = jax.nn.softmax(scores, axis=-1)
        ctx = jnp.einsum("bhqk,bhkd->bhqd", probs, vh)
        ctx = ctx.transpose(0, 2, 1, 3).reshape(B, S, D)
        attn = ctx @ lp["wo"] + lp["bo"]
        x = _ref_layernorm(x + attn, lp["ln1_g"], lp["ln1_b"])
        h = jax.nn.relu(x @ lp["w1"] + lp["b1"])
        y = h @ lp["w2"] + lp["b2"]
        x = _ref_layernorm(x + y, lp["ln2_g"], lp["ln2_b"])
    x0 = x[:, 0, :]
    logits = x0 @ params["out_w"] + params["out_b"]
    return jax.nn.log_softmax(logits, axis=-1)


# ---------------------------------------------------------------------------
# Deterministic parameter construction.
# ---------------------------------------------------------------------------
def init_params(key, vocab_size, d_model, dim_ff, num_layers, num_class, max_len):
    keys = jax.random.split(key, 2 + num_layers)
    s = 0.05
    emb = s * jax.random.normal(keys[0], (vocab_size, d_model), dtype=jnp.float32)
    layers = []
    for l in range(num_layers):
        lk = jax.random.split(keys[2 + l], 8)
        layers.append(dict(
            wqkv=s * jax.random.normal(lk[0], (d_model, 3 * d_model), dtype=jnp.float32),
            bqkv=s * jax.random.normal(lk[1], (1, 3 * d_model), dtype=jnp.float32),
            wo=s * jax.random.normal(lk[2], (d_model, d_model), dtype=jnp.float32),
            bo=s * jax.random.normal(lk[3], (1, d_model), dtype=jnp.float32),
            w1=s * jax.random.normal(lk[4], (d_model, dim_ff), dtype=jnp.float32),
            b1=s * jax.random.normal(lk[5], (1, dim_ff), dtype=jnp.float32),
            w2=s * jax.random.normal(lk[6], (dim_ff, d_model), dtype=jnp.float32),
            b2=s * jax.random.normal(lk[7], (1, d_model), dtype=jnp.float32),
            ln1_g=jnp.ones((1, d_model), jnp.float32),
            ln1_b=jnp.zeros((1, d_model), jnp.float32),
            ln2_g=jnp.ones((1, d_model), jnp.float32),
            ln2_b=jnp.zeros((1, d_model), jnp.float32),
        ))
    out_w = s * jax.random.normal(keys[1], (d_model, num_class), dtype=jnp.float32)
    out_b = jnp.zeros((1, num_class), jnp.float32)
    pe = make_positional_encoding_table(d_model, max_len)
    return dict(embedding=emb, pe=pe, layers=layers, out_w=out_w, out_b=out_b)


if __name__ == "__main__":
    VOCAB = 64
    D_MODEL = 128      # lane-dense: d_model is the last (lane) axis, multiple of 128
    NUM_HEADS = 2
    DIM_FF = 256
    NUM_LAYERS = 2
    NUM_CLASS = 4
    MAX_LEN = 128
    BATCH = 2
    SEQ = 8            # one full (8, 128) f32 tile per batch element

    key = jax.random.PRNGKey(0)
    k_par, k_tok = jax.random.split(key)
    params = init_params(k_par, VOCAB, D_MODEL, DIM_FF, NUM_LAYERS, NUM_CLASS, MAX_LEN)
    inputs = jax.random.randint(k_tok, (BATCH, SEQ), 0, VOCAB, dtype=jnp.int32)
    lengths = jnp.array([SEQ, 5], dtype=jnp.int32)

    fwd = jax.jit(functools.partial(transformer_forward, num_heads=NUM_HEADS))
    log_probs = jax.block_until_ready(fwd(inputs, lengths, params))

    ref = reference_forward(inputs, lengths, params, NUM_HEADS)
    assert log_probs.shape == (BATCH, NUM_CLASS)
    max_err = float(jnp.max(jnp.abs(log_probs - ref)))
    assert jnp.allclose(log_probs, ref, atol=1e-3, rtol=1e-3), (
        f"mismatch vs pure-JAX reference, max abs err = {max_err}")
    print("KERNEL_OK")
</pallas_src>

<mosaic_0001>
module attributes {stable_mosaic.version = 11 : i64} {
  func.func @_fused_forward_kernel(%arg0: i32, %arg1: memref<2x8xi32, #tpu.memory_space<smem>>, %arg2: memref<2xi32, #tpu.memory_space<smem>>, %arg3: memref<64x1x128xf32, #tpu.memory_space<vmem>>, %arg4: memref<8x128xf32, #tpu.memory_space<vmem>>, %arg5: memref<128x384xf32, #tpu.memory_space<vmem>>, %arg6: memref<1x384xf32, #tpu.memory_space<vmem>>, %arg7: memref<128x128xf32, #tpu.memory_space<vmem>>, %arg8: memref<1x128xf32, #tpu.memory_space<vmem>>, %arg9: memref<1x128xf32, #tpu.memory_space<vmem>>, %arg10: memref<1x128xf32, #tpu.memory_space<vmem>>, %arg11: memref<128x256xf32, #tpu.memory_space<vmem>>, %arg12: memref<1x256xf32, #tpu.memory_space<vmem>>, %arg13: memref<256x128xf32, #tpu.memory_space<vmem>>, %arg14: memref<1x128xf32, #tpu.memory_space<vmem>>, %arg15: memref<1x128xf32, #tpu.memory_space<vmem>>, %arg16: memref<1x128xf32, #tpu.memory_space<vmem>>, %arg17: memref<128x384xf32, #tpu.memory_space<vmem>>, %arg18: memref<1x384xf32, #tpu.memory_space<vmem>>, %arg19: memref<128x128xf32, #tpu.memory_space<vmem>>, %arg20: memref<1x128xf32, #tpu.memory_space<vmem>>, %arg21: memref<1x128xf32, #tpu.memory_space<vmem>>, %arg22: memref<1x128xf32, #tpu.memory_space<vmem>>, %arg23: memref<128x256xf32, #tpu.memory_space<vmem>>, %arg24: memref<1x256xf32, #tpu.memory_space<vmem>>, %arg25: memref<256x128xf32, #tpu.memory_space<vmem>>, %arg26: memref<1x128xf32, #tpu.memory_space<vmem>>, %arg27: memref<1x128xf32, #tpu.memory_space<vmem>>, %arg28: memref<1x128xf32, #tpu.memory_space<vmem>>, %arg29: memref<128x4xf32, #tpu.memory_space<vmem>>, %arg30: memref<1x4xf32, #tpu.memory_space<vmem>>, %arg31: memref<1x1x4xf32, #tpu.memory_space<vmem>>, %arg32: memref<8x128xf32, #tpu.memory_space<vmem>>) attributes {dimension_semantics = [#tpu.dimension_semantics<parallel>], iteration_bounds = array<i64: 2>, scalar_prefetch = 2 : i64, scratch_operands = 1 : i64, tpu.core_type = #tpu.core_type<tc>, window_params = [{pipeline_mode = #tpu.pipeline_mode<synchronous>, transform_indices = @transform_0, window_bounds = array<i64: 64, 1, 128>}, {pipeline_mode = #tpu.pipeline_mode<synchronous>, transform_indices = @transform_1, window_bounds = array<i64: 8, 128>}, {pipeline_mode = #tpu.pipeline_mode<synchronous>, transform_indices = @transform_2, window_bounds = array<i64: 128, 384>}, {pipeline_mode = #tpu.pipeline_mode<synchronous>, transform_indices = @transform_3, window_bounds = array<i64: 1, 384>}, {pipeline_mode = #tpu.pipeline_mode<synchronous>, transform_indices = @transform_4, window_bounds = array<i64: 128, 128>}, {pipeline_mode = #tpu.pipeline_mode<synchronous>, transform_indices = @transform_5, window_bounds = array<i64: 1, 128>}, {pipeline_mode = #tpu.pipeline_mode<synchronous>, transform_indices = @transform_6, window_bounds = array<i64: 1, 128>}, {pipeline_mode = #tpu.pipeline_mode<synchronous>, transform_indices = @transform_7, window_bounds = array<i64: 1, 128>}, {pipeline_mode = #tpu.pipeline_mode<synchronous>, transform_indices = @transform_8, window_bounds = array<i64: 128, 256>}, {pipeline_mode = #tpu.pipeline_mode<synchronous>, transform_indices = @transform_9, window_bounds = array<i64: 1, 256>}, {pipeline_mode = #tpu.pipeline_mode<synchronous>, transform_indices = @transform_10, window_bounds = array<i64: 256, 128>}, {pipeline_mode = #tpu.pipeline_mode<synchronous>, transform_indices = @transform_11, window_bounds = array<i64: 1, 128>}, {pipeline_mode = #tpu.pipeline_mode<synchronous>, transform_indices = @transform_12, window_bounds = array<i64: 1, 128>}, {pipeline_mode = #tpu.pipeline_mode<synchronous>, transform_indices = @transform_13, window_bounds = array<i64: 1, 128>}, {pipeline_mode = #tpu.pipeline_mode<synchronous>, transform_indices = @transform_14, window_bounds = array<i64: 128, 384>}, {pipeline_mode = #tpu.pipeline_mode<synchronous>, transform_indices = @transform_15, window_bounds = array<i64: 1, 384>}, {pipeline_mode = #tpu.pipeline_mode<synchronous>, transform_indices = @transform_16, window_bounds = array<i64: 128, 128>}, {pipeline_mode = #tpu.pipeline_mode<synchronous>, transform_indices = @transform_17, window_bounds = array<i64: 1, 128>}, {pipeline_mode = #tpu.pipeline_mode<synchronous>, transform_indices = @transform_18, window_bounds = array<i64: 1, 128>}, {pipeline_mode = #tpu.pipeline_mode<synchronous>, transform_indices = @transform_19, window_bounds = array<i64: 1, 128>}, {pipeline_mode = #tpu.pipeline_mode<synchronous>, transform_indices = @transform_20, window_bounds = array<i64: 128, 256>}, {pipeline_mode = #tpu.pipeline_mode<synchronous>, transform_indices = @transform_21, window_bounds = array<i64: 1, 256>}, {pipeline_mode = #tpu.pipeline_mode<synchronous>, transform_indices = @transform_22, window_bounds = array<i64: 256, 128>}, {pipeline_mode = #tpu.pipeline_mode<synchronous>, transform_indices = @transform_23, window_bounds = array<i64: 1, 128>}, {pipeline_mode = #tpu.pipeline_mode<synchronous>, transform_indices = @transform_24, window_bounds = array<i64: 1, 128>}, {pipeline_mode = #tpu.pipeline_mode<synchronous>, transform_indices = @transform_25, window_bounds = array<i64: 1, 128>}, {pipeline_mode = #tpu.pipeline_mode<synchronous>, transform_indices = @transform_26, window_bounds = array<i64: 128, 4>}, {pipeline_mode = #tpu.pipeline_mode<synchronous>, transform_indices = @transform_27, window_bounds = array<i64: 1, 4>}, {transform_indices = @transform_28, window_bounds = array<i64: 1, 1, 4>}]} {
    %0 = arith.index_cast %arg0 : i32 to index
    %c0 = arith.constant 0 : index
    %1 = memref.load %arg1[%0, %c0] : memref<2x8xi32, #tpu.memory_space<smem>>
    %2 = arith.index_cast %1 : i32 to index
    %c0_0 = arith.constant 0 : index
    %c0_1 = arith.constant 0 : index
    %3 = vector.load %arg3[%2, %c0_0, %c0_1] : memref<64x1x128xf32, #tpu.memory_space<vmem>>, vector<1x1x128xf32>
    %4 = vector.shape_cast %3 : vector<1x1x128xf32> to vector<1x128xf32>
    %c0_2 = arith.constant 0 : index
    %c0_3 = arith.constant 0 : index
    %5 = vector.load %arg4[%c0_2, %c0_3] : memref<8x128xf32, #tpu.memory_space<vmem>>, vector<1x128xf32>
    %6 = arith.addf %4, %5 : vector<1x128xf32>
    %c0_4 = arith.constant 0 : index
    %c0_5 = arith.constant 0 : index
    %7 = vector.load %arg32[%c0_4, %c0_5] : memref<8x128xf32, #tpu.memory_space<vmem>>, vector<1x128xf32>
    tpu.vector_store %arg32[%c0_4, %c0_5], %6 {strides = array<i32>} : memref<8x128xf32, #tpu.memory_space<vmem>>, vector<1x128xf32>,
    %8 = arith.index_cast %arg0 : i32 to index
    %c1 = arith.constant 1 : index
    %9 = memref.load %arg1[%8, %c1] : memref<2x8xi32, #tpu.memory_space<smem>>
    %10 = arith.index_cast %9 : i32 to index
    %c0_6 = arith.constant 0 : index
    %c0_7 = arith.constant 0 : index
    %11 = vector.load %arg3[%10, %c0_6, %c0_7] : memref<64x1x128xf32, #tpu.memory_space<vmem>>, vector<1x1x128xf32>
    %12 = vector.shape_cast %11 : vector<1x1x128xf32> to vector<1x128xf32>
    %c1_8 = arith.constant 1 : index
    %c0_9 = arith.constant 0 : index
    %13 = vector.load %arg4[%c1_8, %c0_9] : memref<8x128xf32, #tpu.memory_space<vmem>>, vector<1x128xf32>
    %14 = arith.addf %12, %13 : vector<1x128xf32>
    %c1_10 = arith.constant 1 : index
    %c0_11 = arith.constant 0 : index
    %15 = vector.load %arg32[%c1_10, %c0_11] : memref<8x128xf32, #tpu.memory_space<vmem>>, vector<1x128xf32>
    tpu.vector_store %arg32[%c1_10, %c0_11], %14 {strides = array<i32>} : memref<8x128xf32, #tpu.memory_space<vmem>>, vector<1x128xf32>,
    %16 = arith.index_cast %arg0 : i32 to index
    %c2 = arith.constant 2 : index
    %17 = memref.load %arg1[%16, %c2] : memref<2x8xi32, #tpu.memory_space<smem>>
    %18 = arith.index_cast %17 : i32 to index
    %c0_12 = arith.constant 0 : index
    %c0_13 = arith.constant 0 : index
    %19 = vector.load %arg3[%18, %c0_12, %c0_13] : memref<64x1x128xf32, #tpu.memory_space<vmem>>, vector<1x1x128xf32>
    %20 = vector.shape_cast %19 : vector<1x1x128xf32> to vector<1x128xf32>
    %c2_14 = arith.constant 2 : index
    %c0_15 = arith.constant 0 : index
    %21 = vector.load %arg4[%c2_14, %c0_15] : memref<8x128xf32, #tpu.memory_space<vmem>>, vector<1x128xf32>
    %22 = arith.addf %20, %21 : vector<1x128xf32>
    %c2_16 = arith.constant 2 : index
    %c0_17 = arith.constant 0 : index
    %23 = vector.load %arg32[%c2_16, %c0_17] : memref<8x128xf32, #tpu.memory_space<vmem>>, vector<1x128xf32>
    tpu.vector_store %arg32[%c2_16, %c0_17], %22 {strides = array<i32>} : memref<8x128xf32, #tpu.memory_space<vmem>>, vector<1x128xf32>,
    %24 = arith.index_cast %arg0 : i32 to index
    %c3 = arith.constant 3 : index
    %25 = memref.load %arg1[%24, %c3] : memref<2x8xi32, #tpu.memory_space<smem>>
    %26 = arith.index_cast %25 : i32 to index
    %c0_18 = arith.constant 0 : index
    %c0_19 = arith.constant 0 : index
    %27 = vector.load %arg3[%26, %c0_18, %c0_19] : memref<64x1x128xf32, #tpu.memory_space<vmem>>, vector<1x1x128xf32>
    %28 = vector.shape_cast %27 : vector<1x1x128xf32> to vector<1x128xf32>
    %c3_20 = arith.constant 3 : index
    %c0_21 = arith.constant 0 : index
    %29 = vector.load %arg4[%c3_20, %c0_21] : memref<8x128xf32, #tpu.memory_space<vmem>>, vector<1x128xf32>
    %30 = arith.addf %28, %29 : vector<1x128xf32>
    %c3_22 = arith.constant 3 : index
    %c0_23 = arith.constant 0 : index
    %31 = vector.load %arg32[%c3_22, %c0_23] : memref<8x128xf32, #tpu.memory_space<vmem>>, vector<1x128xf32>
    tpu.vector_store %arg32[%c3_22, %c0_23], %30 {strides = array<i32>} : memref<8x128xf32, #tpu.memory_space<vmem>>, vector<1x128xf32>,
    %32 = arith.index_cast %arg0 : i32 to index
    %c4 = arith.constant 4 : index
    %33 = memref.load %arg1[%32, %c4] : memref<2x8xi32, #tpu.memory_space<smem>>
    %34 = arith.index_cast %33 : i32 to index
    %c0_24 = arith.constant 0 : index
    %c0_25 = arith.constant 0 : index
    %35 = vector.load %arg3[%34, %c0_24, %c0_25] : memref<64x1x128xf32, #tpu.memory_space<vmem>>, vector<1x1x128xf32>
    %36 = vector.shape_cast %35 : vector<1x1x128xf32> to vector<1x128xf32>
    %c4_26 = arith.constant 4 : index
    %c0_27 = arith.constant 0 : index
    %37 = vector.load %arg4[%c4_26, %c0_27] : memref<8x128xf32, #tpu.memory_space<vmem>>, vector<1x128xf32>
    %38 = arith.addf %36, %37 : vector<1x128xf32>
    %c4_28 = arith.constant 4 : index
    %c0_29 = arith.constant 0 : index
    %39 = vector.load %arg32[%c4_28, %c0_29] : memref<8x128xf32, #tpu.memory_space<vmem>>, vector<1x128xf32>
    tpu.vector_store %arg32[%c4_28, %c0_29], %38 {strides = array<i32>} : memref<8x128xf32, #tpu.memory_space<vmem>>, vector<1x128xf32>,
    %40 = arith.index_cast %arg0 : i32 to index
    %c5 = arith.constant 5 : index
    %41 = memref.load %arg1[%40, %c5] : memref<2x8xi32, #tpu.memory_space<smem>>
    %42 = arith.index_cast %41 : i32 to index
    %c0_30 = arith.constant 0 : index
    %c0_31 = arith.constant 0 : index
    %43 = vector.load %arg3[%42, %c0_30, %c0_31] : memref<64x1x128xf32, #tpu.memory_space<vmem>>, vector<1x1x128xf32>
    %44 = vector.shape_cast %43 : vector<1x1x128xf32> to vector<1x128xf32>
    %c5_32 = arith.constant 5 : index
    %c0_33 = arith.constant 0 : index
    %45 = vector.load %arg4[%c5_32, %c0_33] : memref<8x128xf32, #tpu.memory_space<vmem>>, vector<1x128xf32>
    %46 = arith.addf %44, %45 : vector<1x128xf32>
    %c5_34 = arith.constant 5 : index
    %c0_35 = arith.constant 0 : index
    %47 = vector.load %arg32[%c5_34, %c0_35] : memref<8x128xf32, #tpu.memory_space<vmem>>, vector<1x128xf32>
    tpu.vector_store %arg32[%c5_34, %c0_35], %46 {strides = array<i32>} : memref<8x128xf32, #tpu.memory_space<vmem>>, vector<1x128xf32>,
    %48 = arith.index_cast %arg0 : i32 to index
    %c6 = arith.constant 6 : index
    %49 = memref.load %arg1[%48, %c6] : memref<2x8xi32, #tpu.memory_space<smem>>
    %50 = arith.index_cast %49 : i32 to index
    %c0_36 = arith.constant 0 : index
    %c0_37 = arith.constant 0 : index
    %51 = vector.load %arg3[%50, %c0_36, %c0_37] : memref<64x1x128xf32, #tpu.memory_space<vmem>>, vector<1x1x128xf32>
    %52 = vector.shape_cast %51 : vector<1x1x128xf32> to vector<1x128xf32>
    %c6_38 = arith.constant 6 : index
    %c0_39 = arith.constant 0 : index
    %53 = vector.load %arg4[%c6_38, %c0_39] : memref<8x128xf32, #tpu.memory_space<vmem>>, vector<1x128xf32>
    %54 = arith.addf %52, %53 : vector<1x128xf32>
    %c6_40 = arith.constant 6 : index
    %c0_41 = arith.constant 0 : index
    %55 = vector.load %arg32[%c6_40, %c0_41] : memref<8x128xf32, #tpu.memory_space<vmem>>, vector<1x128xf32>
    tpu.vector_store %arg32[%c6_40, %c0_41], %54 {strides = array<i32>} : memref<8x128xf32, #tpu.memory_space<vmem>>, vector<1x128xf32>,
    %56 = arith.index_cast %arg0 : i32 to index
    %c7 = arith.constant 7 : index
    %57 = memref.load %arg1[%56, %c7] : memref<2x8xi32, #tpu.memory_space<smem>>
    %58 = arith.index_cast %57 : i32 to index
    %c0_42 = arith.constant 0 : index
    %c0_43 = arith.constant 0 : index
    %59 = vector.load %arg3[%58, %c0_42, %c0_43] : memref<64x1x128xf32, #tpu.memory_space<vmem>>, vector<1x1x128xf32>
    %60 = vector.shape_cast %59 : vector<1x1x128xf32> to vector<1x128xf32>
    %c7_44 = arith.constant 7 : index
    %c0_45 = arith.constant 0 : index
    %61 = vector.load %arg4[%c7_44, %c0_45] : memref<8x128xf32, #tpu.memory_space<vmem>>, vector<1x128xf32>
    %62 = arith.addf %60, %61 : vector<1x128xf32>
    %c7_46 = arith.constant 7 : index
    %c0_47 = arith.constant 0 : index
    %63 = vector.load %arg32[%c7_46, %c0_47] : memref<8x128xf32, #tpu.memory_space<vmem>>, vector<1x128xf32>
    tpu.vector_store %arg32[%c7_46, %c0_47], %62 {strides = array<i32>} : memref<8x128xf32, #tpu.memory_space<vmem>>, vector<1x128xf32>,
    %c0_48 = arith.constant 0 : index
    %c0_49 = arith.constant 0 : index
    %64 = vector.load %arg32[%c0_48, %c0_49] : memref<8x128xf32, #tpu.memory_space<vmem>>, vector<8x128xf32>
    %65 = tpu.iota {dimensions = array<i32: 1>} : vector<1x8xi32>
    %66 = arith.index_cast %arg0 : i32 to index
    %67 = memref.load %arg2[%66] : memref<2xi32, #tpu.memory_space<smem>>
    %68 = vector.broadcast %67 : i32 to vector<1x8xi32>
    %69 = arith.cmpi slt, %65, %68 : vector<1x8xi32>
    %cst = arith.constant 0.000000e+00 : f32
    %cst_50 = arith.constant -1.000000e+09 : f32
    %70 = vector.broadcast %cst : f32 to vector<1x8xf32>
    %71 = vector.broadcast %cst_50 : f32 to vector<1x8xf32>
    %72 = arith.select %69, %70, %71 : vector<1x8xi1>, vector<1x8xf32>
    %c0_51 = arith.constant 0 : index
    %c0_52 = arith.constant 0 : index
    %73 = vector.load %arg5[%c0_51, %c0_52] : memref<128x384xf32, #tpu.memory_space<vmem>>, vector<128x384xf32>
    %c0_53 = arith.constant 0 : index
    %c0_54 = arith.constant 0 : index
    %74 = vector.load %arg6[%c0_53, %c0_54] : memref<1x384xf32, #tpu.memory_space<vmem>>, vector<1x384xf32>
    %c0_55 = arith.constant 0 : index
    %c0_56 = arith.constant 0 : index
    %75 = vector.load %arg7[%c0_55, %c0_56] : memref<128x128xf32, #tpu.memory_space<vmem>>, vector<128x128xf32>
    %c0_57 = arith.constant 0 : index
    %c0_58 = arith.constant 0 : index
    %76 = vector.load %arg8[%c0_57, %c0_58] : memref<1x128xf32, #tpu.memory_space<vmem>>, vector<1x128xf32>
    %c0_59 = arith.constant 0 : index
    %c0_60 = arith.constant 0 : index
    %77 = vector.load %arg9[%c0_59, %c0_60] : memref<1x128xf32, #tpu.memory_space<vmem>>, vector<1x128xf32>
    %c0_61 = arith.constant 0 : index
    %c0_62 = arith.constant 0 : index
    %78 = vector.load %arg10[%c0_61, %c0_62] : memref<1x128xf32, #tpu.memory_space<vmem>>, vector<1x128xf32>
    %c0_63 = arith.constant 0 : index
    %c0_64 = arith.constant 0 : index
    %79 = vector.load %arg11[%c0_63, %c0_64] : memref<128x256xf32, #tpu.memory_space<vmem>>, vector<128x256xf32>
    %c0_65 = arith.constant 0 : index
    %c0_66 = arith.constant 0 : index
    %80 = vector.load %arg12[%c0_65, %c0_66] : memref<1x256xf32, #tpu.memory_space<vmem>>, vector<1x256xf32>
    %c0_67 = arith.constant 0 : index
    %c0_68 = arith.constant 0 : index
    %81 = vector.load %arg13[%c0_67, %c0_68] : memref<256x128xf32, #tpu.memory_space<vmem>>, vector<256x128xf32>
    %c0_69 = arith.constant 0 : index
    %c0_70 = arith.constant 0 : index
    %82 = vector.load %arg14[%c0_69, %c0_70] : memref<1x128xf32, #tpu.memory_space<vmem>>, vector<1x128xf32>
    %c0_71 = arith.constant 0 : index
    %c0_72 = arith.constant 0 : index
    %83 = vector.load %arg15[%c0_71, %c0_72] : memref<1x128xf32, #tpu.memory_space<vmem>>, vector<1x128xf32>
    %c0_73 = arith.constant 0 : index
    %c0_74 = arith.constant 0 : index
    %84 = vector.load %arg16[%c0_73, %c0_74] : memref<1x128xf32, #tpu.memory_space<vmem>>, vector<1x128xf32>
    %cst_75 = arith.constant dense<0.000000e+00> : vector<8x384xf32>
    %85 = tpu.matmul %64, %73, %cst_75 {dimension_numbers = #tpu.dot_dimension_numbers<[1], [0], [0], [1], [0, 0, 1, 1], [], []>} : vector<8x128xf32>, vector<128x384xf32>, vector<8x384xf32> -> vector<8x384xf32>
    %86 = vector.broadcast %74 : vector<1x384xf32> to vector<8x384xf32>
    %87 = arith.addf %85, %86 : vector<8x384xf32>
    %88 = vector.extract_strided_slice %87 {offsets = [0, 0], sizes = [8, 64], strides = [1, 1]} : vector<8x384xf32> to vector<8x64xf32>
    %cst_76 = arith.constant 1.250000e-01 : f32
    %89 = vector.broadcast %cst_76 : f32 to vector<8x64xf32>
    %90 = arith.mulf %88, %89 : vector<8x64xf32>
    %91 = vector.extract_strided_slice %87 {offsets = [0, 128], sizes = [8, 64], strides = [1, 1]} : vector<8x384xf32> to vector<8x64xf32>
    %92 = vector.extract_strided_slice %87 {offsets = [0, 256], sizes = [8, 64], strides = [1, 1]} : vector<8x384xf32> to vector<8x64xf32>
    %cst_77 = arith.constant dense<0.000000e+00> : vector<8x8xf32>
    %93 = tpu.matmul %90, %91, %cst_77 {dimension_numbers = #tpu.dot_dimension_numbers<[1], [1], [0], [0], [0, 0, 1, 0], [], []>} : vector<8x64xf32>, vector<8x64xf32>, vector<8x8xf32> -> vector<8x8xf32>
    %94 = vector.broadcast %72 : vector<1x8xf32> to vector<8x8xf32>
    %95 = arith.addf %93, %94 : vector<8x8xf32>
    %cst_78 = arith.constant dense<0xFF800000> : vector<8xf32>
    %96 = vector.multi_reduction <maximumf>, %95, %cst_78 [1] : vector<8x8xf32> to vector<8xf32>
    %97 = vector.shape_cast %96 : vector<8xf32> to vector<8x1xf32>
    %98 = vector.broadcast %97 : vector<8x1xf32> to vector<8x8xf32>
    %99 = arith.subf %95, %98 : vector<8x8xf32>
    %100 = math.exp %99 : vector<8x8xf32>
    %cst_79 = arith.constant dense<0.000000e+00> : vector<8xf32>
    %101 = vector.multi_reduction <add>, %100, %cst_79 [1] : vector<8x8xf32> to vector<8xf32>
    %102 = vector.shape_cast %101 : vector<8xf32> to vector<8x1xf32>
    %103 = vector.broadcast %102 : vector<8x1xf32> to vector<8x8xf32>
    %104 = arith.divf %100, %103 : vector<8x8xf32>
    %cst_80 = arith.constant dense<0.000000e+00> : vector<8x64xf32>
    %105 = tpu.matmul %104, %92, %cst_80 {dimension_numbers = #tpu.dot_dimension_numbers<[1], [0], [0], [1], [0, 0, 1, 1], [], []>} : vector<8x8xf32>, vector<8x64xf32>, vector<8x64xf32> -> vector<8x64xf32>
    %106 = vector.extract_strided_slice %75 {offsets = [0, 0], sizes = [64, 128], strides = [1, 1]} : vector<128x128xf32> to vector<64x128xf32>
    %cst_81 = arith.constant dense<0.000000e+00> : vector<8x128xf32>
    %107 = tpu.matmul %105, %106, %cst_81 {dimension_numbers = #tpu.dot_dimension_numbers<[1], [0], [0], [1], [0, 0, 1, 1], [], []>} : vector<8x64xf32>, vector<64x128xf32>, vector<8x128xf32> -> vector<8x128xf32>
    %108 = vector.extract_strided_slice %87 {offsets = [0, 64], sizes = [8, 64], strides = [1, 1]} : vector<8x384xf32> to vector<8x64xf32>
    %cst_82 = arith.constant 1.250000e-01 : f32
    %109 = vector.broadcast %cst_82 : f32 to vector<8x64xf32>
    %110 = arith.mulf %108, %109 : vector<8x64xf32>
    %111 = vector.extract_strided_slice %87 {offsets = [0, 192], sizes = [8, 64], strides = [1, 1]} : vector<8x384xf32> to vector<8x64xf32>
    %112 = vector.extract_strided_slice %87 {offsets = [0, 320], sizes = [8, 64], strides = [1, 1]} : vector<8x384xf32> to vector<8x64xf32>
    %cst_83 = arith.constant dense<0.000000e+00> : vector<8x8xf32>
    %113 = tpu.matmul %110, %111, %cst_83 {dimension_numbers = #tpu.dot_dimension_numbers<[1], [1], [0], [0], [0, 0, 1, 0], [], []>} : vector<8x64xf32>, vector<8x64xf32>, vector<8x8xf32> -> vector<8x8xf32>
    %114 = vector.broadcast %72 : vector<1x8xf32> to vector<8x8xf32>
    %115 = arith.addf %113, %114 : vector<8x8xf32>
    %cst_84 = arith.constant dense<0xFF800000> : vector<8xf32>
    %116 = vector.multi_reduction <maximumf>, %115, %cst_84 [1] : vector<8x8xf32> to vector<8xf32>
    %117 = vector.shape_cast %116 : vector<8xf32> to vector<8x1xf32>
    %118 = vector.broadcast %117 : vector<8x1xf32> to vector<8x8xf32>
    %119 = arith.subf %115, %118 : vector<8x8xf32>
    %120 = math.exp %119 : vector<8x8xf32>
    %cst_85 = arith.constant dense<0.000000e+00> : vector<8xf32>
    %121 = vector.multi_reduction <add>, %120, %cst_85 [1] : vector<8x8xf32> to vector<8xf32>
    %122 = vector.shape_cast %121 : vector<8xf32> to vector<8x1xf32>
    %123 = vector.broadcast %122 : vector<8x1xf32> to vector<8x8xf32>
    %124 = arith.divf %120, %123 : vector<8x8xf32>
    %cst_86 = arith.constant dense<0.000000e+00> : vector<8x64xf32>
    %125 = tpu.matmul %124, %112, %cst_86 {dimension_numbers = #tpu.dot_dimension_numbers<[1], [0], [0], [1], [0, 0, 1, 1], [], []>} : vector<8x8xf32>, vector<8x64xf32>, vector<8x64xf32> -> vector<8x64xf32>
    %126 = vector.extract_strided_slice %75 {offsets = [64, 0], sizes = [64, 128], strides = [1, 1]} : vector<128x128xf32> to vector<64x128xf32>
    %cst_87 = arith.constant dense<0.000000e+00> : vector<8x128xf32>
    %127 = tpu.matmul %125, %126, %cst_87 {dimension_numbers = #tpu.dot_dimension_numbers<[1], [0], [0], [1], [0, 0, 1, 1], [], []>} : vector<8x64xf32>, vector<64x128xf32>, vector<8x128xf32> -> vector<8x128xf32>
    %128 = arith.addf %107, %127 : vector<8x128xf32>
    %129 = vector.broadcast %76 : vector<1x128xf32> to vector<8x128xf32>
    %130 = arith.addf %128, %129 : vector<8x128xf32>
    %131 = arith.addf %64, %130 : vector<8x128xf32>
    %cst_88 = arith.constant dense<0.000000e+00> : vector<8xf32>
    %132 = vector.multi_reduction <add>, %131, %cst_88 [1] : vector<8x128xf32> to vector<8xf32>
    %133 = vector.shape_cast %132 : vector<8xf32> to vector<8x1xf32>
    %cst_89 = arith.constant 1.280000e+02 : f32
    %134 = vector.broadcast %cst_89 : f32 to vector<8x1xf32>
    %135 = arith.divf %133, %134 : vector<8x1xf32>
    %136 = vector.broadcast %135 : vector<8x1xf32> to vector<8x128xf32>
    %137 = arith.subf %131, %136 : vector<8x128xf32>
    %138 = arith.mulf %137, %137 : vector<8x128xf32>
    %cst_90 = arith.constant dense<0.000000e+00> : vector<8xf32>
    %139 = vector.multi_reduction <add>, %138, %cst_90 [1] : vector<8x128xf32> to vector<8xf32>
    %140 = vector.shape_cast %139 : vector<8xf32> to vector<8x1xf32>
    %cst_91 = arith.constant 1.280000e+02 : f32
    %141 = vector.broadcast %cst_91 : f32 to vector<8x1xf32>
    %142 = arith.divf %140, %141 : vector<8x1xf32>
    %143 = vector.broadcast %135 : vector<8x1xf32> to vector<8x128xf32>
    %144 = arith.subf %131, %143 : vector<8x128xf32>
    %cst_92 = arith.constant 9.99999974E-6 : f32
    %145 = vector.broadcast %cst_92 : f32 to vector<8x1xf32>
    %146 = arith.addf %142, %145 : vector<8x1xf32>
    %147 = math.rsqrt %146 : vector<8x1xf32>
    %148 = vector.broadcast %147 : vector<8x1xf32> to vector<8x128xf32>
    %149 = arith.mulf %144, %148 : vector<8x128xf32>
    %150 = vector.broadcast %77 : vector<1x128xf32> to vector<8x128xf32>
    %151 = arith.mulf %149, %150 : vector<8x128xf32>
    %152 = vector.broadcast %78 : vector<1x128xf32> to vector<8x128xf32>
    %153 = arith.addf %151, %152 : vector<8x128xf32>
    %cst_93 = arith.constant dense<0.000000e+00> : vector<8x256xf32>
    %154 = tpu.matmul %153, %79, %cst_93 {dimension_numbers = #tpu.dot_dimension_numbers<[1], [0], [0], [1], [0, 0, 1, 1], [], []>} : vector<8x128xf32>, vector<128x256xf32>, vector<8x256xf32> -> vector<8x256xf32>
    %155 = vector.broadcast %80 : vector<1x256xf32> to vector<8x256xf32>
    %156 = arith.addf %154, %155 : vector<8x256xf32>
    %cst_94 = arith.constant 0.000000e+00 : f32
    %157 = vector.broadcast %cst_94 : f32 to vector<8x256xf32>
    %158 = arith.maximumf %156, %157 : vector<8x256xf32>
    %cst_95 = arith.constant dense<0.000000e+00> : vector<8x128xf32>
    %159 = tpu.matmul %158, %81, %cst_95 {dimension_numbers = #tpu.dot_dimension_numbers<[1], [0], [0], [1], [0, 0, 1, 1], [], []>} : vector<8x256xf32>, vector<256x128xf32>, vector<8x128xf32> -> vector<8x128xf32>
    %160 = vector.broadcast %82 : vector<1x128xf32> to vector<8x128xf32>
    %161 = arith.addf %159, %160 : vector<8x128xf32>
    %162 = arith.addf %153, %161 : vector<8x128xf32>
    %cst_96 = arith.constant dense<0.000000e+00> : vector<8xf32>
    %163 = vector.multi_reduction <add>, %162, %cst_96 [1] : vector<8x128xf32> to vector<8xf32>
    %164 = vector.shape_cast %163 : vector<8xf32> to vector<8x1xf32>
    %cst_97 = arith.constant 1.280000e+02 : f32
    %165 = vector.broadcast %cst_97 : f32 to vector<8x1xf32>
    %166 = arith.divf %164, %165 : vector<8x1xf32>
    %167 = vector.broadcast %166 : vector<8x1xf32> to vector<8x128xf32>
    %168 = arith.subf %162, %167 : vector<8x128xf32>
    %169 = arith.mulf %168, %168 : vector<8x128xf32>
    %cst_98 = arith.constant dense<0.000000e+00> : vector<8xf32>
    %170 = vector.multi_reduction <add>, %169, %cst_98 [1] : vector<8x128xf32> to vector<8xf32>
    %171 = vector.shape_cast %170 : vector<8xf32> to vector<8x1xf32>
    %cst_99 = arith.constant 1.280000e+02 : f32
    %172 = vector.broadcast %cst_99 : f32 to vector<8x1xf32>
    %173 = arith.divf %171, %172 : vector<8x1xf32>
    %174 = vector.broadcast %166 : vector<8x1xf32> to vector<8x128xf32>
    %175 = arith.subf %162, %174 : vector<8x128xf32>
    %cst_100 = arith.constant 9.99999974E-6 : f32
    %176 = vector.broadcast %cst_100 : f32 to vector<8x1xf32>
    %177 = arith.addf %173, %176 : vector<8x1xf32>
    %178 = math.rsqrt %177 : vector<8x1xf32>
    %179 = vector.broadcast %178 : vector<8x1xf32> to vector<8x128xf32>
    %180 = arith.mulf %175, %179 : vector<8x128xf32>
    %181 = vector.broadcast %83 : vector<1x128xf32> to vector<8x128xf32>
    %182 = arith.mulf %180, %181 : vector<8x128xf32>
    %183 = vector.broadcast %84 : vector<1x128xf32> to vector<8x128xf32>
    %184 = arith.addf %182, %183 : vector<8x128xf32>
    %c0_101 = arith.constant 0 : index
    %c0_102 = arith.constant 0 : index
    %185 = vector.load %arg17[%c0_101, %c0_102] : memref<128x384xf32, #tpu.memory_space<vmem>>, vector<128x384xf32>
    %c0_103 = arith.constant 0 : index
    %c0_104 = arith.constant 0 : index
    %186 = vector.load %arg18[%c0_103, %c0_104] : memref<1x384xf32, #tpu.memory_space<vmem>>, vector<1x384xf32>
    %c0_105 = arith.constant 0 : index
    %c0_106 = arith.constant 0 : index
    %187 = vector.load %arg19[%c0_105, %c0_106] : memref<128x128xf32, #tpu.memory_space<vmem>>, vector<128x128xf32>
    %c0_107 = arith.constant 0 : index
    %c0_108 = arith.constant 0 : index
    %188 = vector.load %arg20[%c0_107, %c0_108] : memref<1x128xf32, #tpu.memory_space<vmem>>, vector<1x128xf32>
    %c0_109 = arith.constant 0 : index
    %c0_110 = arith.constant 0 : index
    %189 = vector.load %arg21[%c0_109, %c0_110] : memref<1x128xf32, #tpu.memory_space<vmem>>, vector<1x128xf32>
    %c0_111 = arith.constant 0 : index
    %c0_112 = arith.constant 0 : index
    %190 = vector.load %arg22[%c0_111, %c0_112] : memref<1x128xf32, #tpu.memory_space<vmem>>, vector<1x128xf32>
    %c0_113 = arith.constant 0 : index
    %c0_114 = arith.constant 0 : index
    %191 = vector.load %arg23[%c0_113, %c0_114] : memref<128x256xf32, #tpu.memory_space<vmem>>, vector<128x256xf32>
    %c0_115 = arith.constant 0 : index
    %c0_116 = arith.constant 0 : index
    %192 = vector.load %arg24[%c0_115, %c0_116] : memref<1x256xf32, #tpu.memory_space<vmem>>, vector<1x256xf32>
    %c0_117 = arith.constant 0 : index
    %c0_118 = arith.constant 0 : index
    %193 = vector.load %arg25[%c0_117, %c0_118] : memref<256x128xf32, #tpu.memory_space<vmem>>, vector<256x128xf32>
    %c0_119 = arith.constant 0 : index
    %c0_120 = arith.constant 0 : index
    %194 = vector.load %arg26[%c0_119, %c0_120] : memref<1x128xf32, #tpu.memory_space<vmem>>, vector<1x128xf32>
    %c0_121 = arith.constant 0 : index
    %c0_122 = arith.constant 0 : index
    %195 = vector.load %arg27[%c0_121, %c0_122] : memref<1x128xf32, #tpu.memory_space<vmem>>, vector<1x128xf32>
    %c0_123 = arith.constant 0 : index
    %c0_124 = arith.constant 0 : index
    %196 = vector.load %arg28[%c0_123, %c0_124] : memref<1x128xf32, #tpu.memory_space<vmem>>, vector<1x128xf32>
    %cst_125 = arith.constant dense<0.000000e+00> : vector<8x384xf32>
    %197 = tpu.matmul %184, %185, %cst_125 {dimension_numbers = #tpu.dot_dimension_numbers<[1], [0], [0], [1], [0, 0, 1, 1], [], []>} : vector<8x128xf32>, vector<128x384xf32>, vector<8x384xf32> -> vector<8x384xf32>
    %198 = vector.broadcast %186 : vector<1x384xf32> to vector<8x384xf32>
    %199 = arith.addf %197, %198 : vector<8x384xf32>
    %200 = vector.extract_strided_slice %199 {offsets = [0, 0], sizes = [8, 64], strides = [1, 1]} : vector<8x384xf32> to vector<8x64xf32>
    %cst_126 = arith.constant 1.250000e-01 : f32
    %201 = vector.broadcast %cst_126 : f32 to vector<8x64xf32>
    %202 = arith.mulf %200, %201 : vector<8x64xf32>
    %203 = vector.extract_strided_slice %199 {offsets = [0, 128], sizes = [8, 64], strides = [1, 1]} : vector<8x384xf32> to vector<8x64xf32>
    %204 = vector.extract_strided_slice %199 {offsets = [0, 256], sizes = [8, 64], strides = [1, 1]} : vector<8x384xf32> to vector<8x64xf32>
    %cst_127 = arith.constant dense<0.000000e+00> : vector<8x8xf32>
    %205 = tpu.matmul %202, %203, %cst_127 {dimension_numbers = #tpu.dot_dimension_numbers<[1], [1], [0], [0], [0, 0, 1, 0], [], []>} : vector<8x64xf32>, vector<8x64xf32>, vector<8x8xf32> -> vector<8x8xf32>
    %206 = vector.broadcast %72 : vector<1x8xf32> to vector<8x8xf32>
    %207 = arith.addf %205, %206 : vector<8x8xf32>
    %cst_128 = arith.constant dense<0xFF800000> : vector<8xf32>
    %208 = vector.multi_reduction <maximumf>, %207, %cst_128 [1] : vector<8x8xf32> to vector<8xf32>
    %209 = vector.shape_cast %208 : vector<8xf32> to vector<8x1xf32>
    %210 = vector.broadcast %209 : vector<8x1xf32> to vector<8x8xf32>
    %211 = arith.subf %207, %210 : vector<8x8xf32>
    %212 = math.exp %211 : vector<8x8xf32>
    %cst_129 = arith.constant dense<0.000000e+00> : vector<8xf32>
    %213 = vector.multi_reduction <add>, %212, %cst_129 [1] : vector<8x8xf32> to vector<8xf32>
    %214 = vector.shape_cast %213 : vector<8xf32> to vector<8x1xf32>
    %215 = vector.broadcast %214 : vector<8x1xf32> to vector<8x8xf32>
    %216 = arith.divf %212, %215 : vector<8x8xf32>
    %cst_130 = arith.constant dense<0.000000e+00> : vector<8x64xf32>
    %217 = tpu.matmul %216, %204, %cst_130 {dimension_numbers = #tpu.dot_dimension_numbers<[1], [0], [0], [1], [0, 0, 1, 1], [], []>} : vector<8x8xf32>, vector<8x64xf32>, vector<8x64xf32> -> vector<8x64xf32>
    %218 = vector.extract_strided_slice %187 {offsets = [0, 0], sizes = [64, 128], strides = [1, 1]} : vector<128x128xf32> to vector<64x128xf32>
    %cst_131 = arith.constant dense<0.000000e+00> : vector<8x128xf32>
    %219 = tpu.matmul %217, %218, %cst_131 {dimension_numbers = #tpu.dot_dimension_numbers<[1], [0], [0], [1], [0, 0, 1, 1], [], []>} : vector<8x64xf32>, vector<64x128xf32>, vector<8x128xf32> -> vector<8x128xf32>
    %220 = vector.extract_strided_slice %199 {offsets = [0, 64], sizes = [8, 64], strides = [1, 1]} : vector<8x384xf32> to vector<8x64xf32>
    %cst_132 = arith.constant 1.250000e-01 : f32
    %221 = vector.broadcast %cst_132 : f32 to vector<8x64xf32>
    %222 = arith.mulf %220, %221 : vector<8x64xf32>
    %223 = vector.extract_strided_slice %199 {offsets = [0, 192], sizes = [8, 64], strides = [1, 1]} : vector<8x384xf32> to vector<8x64xf32>
    %224 = vector.extract_strided_slice %199 {offsets = [0, 320], sizes = [8, 64], strides = [1, 1]} : vector<8x384xf32> to vector<8x64xf32>
    %cst_133 = arith.constant dense<0.000000e+00> : vector<8x8xf32>
    %225 = tpu.matmul %222, %223, %cst_133 {dimension_numbers = #tpu.dot_dimension_numbers<[1], [1], [0], [0], [0, 0, 1, 0], [], []>} : vector<8x64xf32>, vector<8x64xf32>, vector<8x8xf32> -> vector<8x8xf32>
    %226 = vector.broadcast %72 : vector<1x8xf32> to vector<8x8xf32>
    %227 = arith.addf %225, %226 : vector<8x8xf32>
    %cst_134 = arith.constant dense<0xFF800000> : vector<8xf32>
    %228 = vector.multi_reduction <maximumf>, %227, %cst_134 [1] : vector<8x8xf32> to vector<8xf32>
    %229 = vector.shape_cast %228 : vector<8xf32> to vector<8x1xf32>
    %230 = vector.broadcast %229 : vector<8x1xf32> to vector<8x8xf32>
    %231 = arith.subf %227, %230 : vector<8x8xf32>
    %232 = math.exp %231 : vector<8x8xf32>
    %cst_135 = arith.constant dense<0.000000e+00> : vector<8xf32>
    %233 = vector.multi_reduction <add>, %232, %cst_135 [1] : vector<8x8xf32> to vector<8xf32>
    %234 = vector.shape_cast %233 : vector<8xf32> to vector<8x1xf32>
    %235 = vector.broadcast %234 : vector<8x1xf32> to vector<8x8xf32>
    %236 = arith.divf %232, %235 : vector<8x8xf32>
    %cst_136 = arith.constant dense<0.000000e+00> : vector<8x64xf32>
    %237 = tpu.matmul %236, %224, %cst_136 {dimension_numbers = #tpu.dot_dimension_numbers<[1], [0], [0], [1], [0, 0, 1, 1], [], []>} : vector<8x8xf32>, vector<8x64xf32>, vector<8x64xf32> -> vector<8x64xf32>
    %238 = vector.extract_strided_slice %187 {offsets = [64, 0], sizes = [64, 128], strides = [1, 1]} : vector<128x128xf32> to vector<64x128xf32>
    %cst_137 = arith.constant dense<0.000000e+00> : vector<8x128xf32>
    %239 = tpu.matmul %237, %238, %cst_137 {dimension_numbers = #tpu.dot_dimension_numbers<[1], [0], [0], [1], [0, 0, 1, 1], [], []>} : vector<8x64xf32>, vector<64x128xf32>, vector<8x128xf32> -> vector<8x128xf32>
    %240 = arith.addf %219, %239 : vector<8x128xf32>
    %241 = vector.broadcast %188 : vector<1x128xf32> to vector<8x128xf32>
    %242 = arith.addf %240, %241 : vector<8x128xf32>
    %243 = arith.addf %184, %242 : vector<8x128xf32>
    %cst_138 = arith.constant dense<0.000000e+00> : vector<8xf32>
    %244 = vector.multi_reduction <add>, %243, %cst_138 [1] : vector<8x128xf32> to vector<8xf32>
    %245 = vector.shape_cast %244 : vector<8xf32> to vector<8x1xf32>
    %cst_139 = arith.constant 1.280000e+02 : f32
    %246 = vector.broadcast %cst_139 : f32 to vector<8x1xf32>
    %247 = arith.divf %245, %246 : vector<8x1xf32>
    %248 = vector.broadcast %247 : vector<8x1xf32> to vector<8x128xf32>
    %249 = arith.subf %243, %248 : vector<8x128xf32>
    %250 = arith.mulf %249, %249 : vector<8x128xf32>
    %cst_140 = arith.constant dense<0.000000e+00> : vector<8xf32>
    %251 = vector.multi_reduction <add>, %250, %cst_140 [1] : vector<8x128xf32> to vector<8xf32>
    %252 = vector.shape_cast %251 : vector<8xf32> to vector<8x1xf32>
    %cst_141 = arith.constant 1.280000e+02 : f32
    %253 = vector.broadcast %cst_141 : f32 to vector<8x1xf32>
    %254 = arith.divf %252, %253 : vector<8x1xf32>
    %255 = vector.broadcast %247 : vector<8x1xf32> to vector<8x128xf32>
    %256 = arith.subf %243, %255 : vector<8x128xf32>
    %cst_142 = arith.constant 9.99999974E-6 : f32
    %257 = vector.broadcast %cst_142 : f32 to vector<8x1xf32>
    %258 = arith.addf %254, %257 : vector<8x1xf32>
    %259 = math.rsqrt %258 : vector<8x1xf32>
    %260 = vector.broadcast %259 : vector<8x1xf32> to vector<8x128xf32>
    %261 = arith.mulf %256, %260 : vector<8x128xf32>
    %262 = vector.broadcast %189 : vector<1x128xf32> to vector<8x128xf32>
    %263 = arith.mulf %261, %262 : vector<8x128xf32>
    %264 = vector.broadcast %190 : vector<1x128xf32> to vector<8x128xf32>
    %265 = arith.addf %263, %264 : vector<8x128xf32>
    %cst_143 = arith.constant dense<0.000000e+00> : vector<8x256xf32>
    %266 = tpu.matmul %265, %191, %cst_143 {dimension_numbers = #tpu.dot_dimension_numbers<[1], [0], [0], [1], [0, 0, 1, 1], [], []>} : vector<8x128xf32>, vector<128x256xf32>, vector<8x256xf32> -> vector<8x256xf32>
    %267 = vector.broadcast %192 : vector<1x256xf32> to vector<8x256xf32>
    %268 = arith.addf %266, %267 : vector<8x256xf32>
    %cst_144 = arith.constant 0.000000e+00 : f32
    %269 = vector.broadcast %cst_144 : f32 to vector<8x256xf32>
    %270 = arith.maximumf %268, %269 : vector<8x256xf32>
    %cst_145 = arith.constant dense<0.000000e+00> : vector<8x128xf32>
    %271 = tpu.matmul %270, %193, %cst_145 {dimension_numbers = #tpu.dot_dimension_numbers<[1], [0], [0], [1], [0, 0, 1, 1], [], []>} : vector<8x256xf32>, vector<256x128xf32>, vector<8x128xf32> -> vector<8x128xf32>
    %272 = vector.broadcast %194 : vector<1x128xf32> to vector<8x128xf32>
    %273 = arith.addf %271, %272 : vector<8x128xf32>
    %274 = arith.addf %265, %273 : vector<8x128xf32>
    %cst_146 = arith.constant dense<0.000000e+00> : vector<8xf32>
    %275 = vector.multi_reduction <add>, %274, %cst_146 [1] : vector<8x128xf32> to vector<8xf32>
    %276 = vector.shape_cast %275 : vector<8xf32> to vector<8x1xf32>
    %cst_147 = arith.constant 1.280000e+02 : f32
    %277 = vector.broadcast %cst_147 : f32 to vector<8x1xf32>
    %278 = arith.divf %276, %277 : vector<8x1xf32>
    %279 = vector.broadcast %278 : vector<8x1xf32> to vector<8x128xf32>
    %280 = arith.subf %274, %279 : vector<8x128xf32>
    %281 = arith.mulf %280, %280 : vector<8x128xf32>
    %cst_148 = arith.constant dense<0.000000e+00> : vector<8xf32>
    %282 = vector.multi_reduction <add>, %281, %cst_148 [1] : vector<8x128xf32> to vector<8xf32>
    %283 = vector.shape_cast %282 : vector<8xf32> to vector<8x1xf32>
    %cst_149 = arith.constant 1.280000e+02 : f32
    %284 = vector.broadcast %cst_149 : f32 to vector<8x1xf32>
    %285 = arith.divf %283, %284 : vector<8x1xf32>
    %286 = vector.broadcast %278 : vector<8x1xf32> to vector<8x128xf32>
    %287 = arith.subf %274, %286 : vector<8x128xf32>
    %cst_150 = arith.constant 9.99999974E-6 : f32
    %288 = vector.broadcast %cst_150 : f32 to vector<8x1xf32>
    %289 = arith.addf %285, %288 : vector<8x1xf32>
    %290 = math.rsqrt %289 : vector<8x1xf32>
    %291 = vector.broadcast %290 : vector<8x1xf32> to vector<8x128xf32>
    %292 = arith.mulf %287, %291 : vector<8x128xf32>
    %293 = vector.broadcast %195 : vector<1x128xf32> to vector<8x128xf32>
    %294 = arith.mulf %292, %293 : vector<8x128xf32>
    %295 = vector.broadcast %196 : vector<1x128xf32> to vector<8x128xf32>
    %296 = arith.addf %294, %295 : vector<8x128xf32>
    %297 = vector.extract_strided_slice %296 {offsets = [0, 0], sizes = [1, 128], strides = [1, 1]} : vector<8x128xf32> to vector<1x128xf32>
    %c0_151 = arith.constant 0 : index
    %c0_152 = arith.constant 0 : index
    %298 = vector.load %arg29[%c0_151, %c0_152] : memref<128x4xf32, #tpu.memory_space<vmem>>, vector<128x4xf32>
    %cst_153 = arith.constant dense<0.000000e+00> : vector<1x4xf32>
    %299 = tpu.matmul %297, %298, %cst_153 {dimension_numbers = #tpu.dot_dimension_numbers<[1], [0], [0], [1], [0, 0, 1, 1], [], []>} : vector<1x128xf32>, vector<128x4xf32>, vector<1x4xf32> -> vector<1x4xf32>
    %c0_154 = arith.constant 0 : index
    %c0_155 = arith.constant 0 : index
    %300 = vector.load %arg30[%c0_154, %c0_155] : memref<1x4xf32, #tpu.memory_space<vmem>>, vector<1x4xf32>
    %301 = arith.addf %299, %300 : vector<1x4xf32>
    %cst_156 = arith.constant dense<0xFF800000> : vector<1xf32>
    %302 = vector.multi_reduction <maximumf>, %301, %cst_156 [1] : vector<1x4xf32> to vector<1xf32>
    %303 = vector.shape_cast %302 : vector<1xf32> to vector<1x1xf32>
    %304 = vector.broadcast %303 : vector<1x1xf32> to vector<1x4xf32>
    %305 = arith.subf %301, %304 : vector<1x4xf32>
    %306 = math.exp %305 : vector<1x4xf32>
    %cst_157 = arith.constant dense<0.000000e+00> : vector<1xf32>
    %307 = vector.multi_reduction <add>, %306, %cst_157 [1] : vector<1x4xf32> to vector<1xf32>
    %308 = vector.shape_cast %307 : vector<1xf32> to vector<1x1xf32>
    %309 = math.log %308 : vector<1x1xf32>
    %310 = arith.addf %303, %309 : vector<1x1xf32>
    %311 = vector.broadcast %310 : vector<1x1xf32> to vector<1x4xf32>
    %312 = arith.subf %301, %311 : vector<1x4xf32>
    %c0_158 = arith.constant 0 : index
    %c0_159 = arith.constant 0 : index
    %c0_160 = arith.constant 0 : index
    %313 = vector.load %arg31[%c0_158, %c0_159, %c0_160] : memref<1x1x4xf32, #tpu.memory_space<vmem>>, vector<1x1x4xf32>
    %314 = vector.shape_cast %313 : vector<1x1x4xf32> to vector<1x4xf32>
    %315 = vector.shape_cast %312 : vector<1x4xf32> to vector<1x1x4xf32>
    tpu.vector_store %arg31[%c0_158, %c0_159, %c0_160], %315 {strides = array<i32>} : memref<1x1x4xf32, #tpu.memory_space<vmem>>, vector<1x1x4xf32>,
    return
  }
  func.func @transform_0(%arg0: i32, %arg1: memref<2x8xi32, #tpu.memory_space<smem>>, %arg2: memref<2xi32, #tpu.memory_space<smem>>) -> (i32, i32, i32) {
    %c0_i32 = arith.constant 0 : i32
    %c0_i32_0 = arith.constant 0 : i32
    %c0_i32_1 = arith.constant 0 : i32
    %c0_i32_2 = arith.constant 0 : i32
    return %c0_i32, %c0_i32_0, %c0_i32_1 : i32, i32, i32
  }
  func.func @transform_1(%arg0: i32, %arg1: memref<2x8xi32, #tpu.memory_space<smem>>, %arg2: memref<2xi32, #tpu.memory_space<smem>>) -> (i32, i32) {
    %c0_i32 = arith.constant 0 : i32
    %c0_i32_0 = arith.constant 0 : i32
    %c0_i32_1 = arith.constant 0 : i32
    return %c0_i32, %c0_i32_0 : i32, i32
  }
  func.func @transform_2(%arg0: i32, %arg1: memref<2x8xi32, #tpu.memory_space<smem>>, %arg2: memref<2xi32, #tpu.memory_space<smem>>) -> (i32, i32) {
    %c0_i32 = arith.constant 0 : i32
    %c0_i32_0 = arith.constant 0 : i32
    %c0_i32_1 = arith.constant 0 : i32
    return %c0_i32, %c0_i32_0 : i32, i32
  }
  func.func @transform_3(%arg0: i32, %arg1: memref<2x8xi32, #tpu.memory_space<smem>>, %arg2: memref<2xi32, #tpu.memory_space<smem>>) -> (i32, i32) {
    %c0_i32 = arith.constant 0 : i32
    %c0_i32_0 = arith.constant 0 : i32
    %c0_i32_1 = arith.constant 0 : i32
    return %c0_i32, %c0_i32_0 : i32, i32
  }
  func.func @transform_4(%arg0: i32, %arg1: memref<2x8xi32, #tpu.memory_space<smem>>, %arg2: memref<2xi32, #tpu.memory_space<smem>>) -> (i32, i32) {
    %c0_i32 = arith.constant 0 : i32
    %c0_i32_0 = arith.constant 0 : i32
    %c0_i32_1 = arith.constant 0 : i32
    return %c0_i32, %c0_i32_0 : i32, i32
  }
  func.func @transform_5(%arg0: i32, %arg1: memref<2x8xi32, #tpu.memory_space<smem>>, %arg2: memref<2xi32, #tpu.memory_space<smem>>) -> (i32, i32) {
    %c0_i32 = arith.constant 0 : i32
    %c0_i32_0 = arith.constant 0 : i32
    %c0_i32_1 = arith.constant 0 : i32
    return %c0_i32, %c0_i32_0 : i32, i32
  }
  func.func @transform_6(%arg0: i32, %arg1: memref<2x8xi32, #tpu.memory_space<smem>>, %arg2: memref<2xi32, #tpu.memory_space<smem>>) -> (i32, i32) {
    %c0_i32 = arith.constant 0 : i32
    %c0_i32_0 = arith.constant 0 : i32
    %c0_i32_1 = arith.constant 0 : i32
    return %c0_i32, %c0_i32_0 : i32, i32
  }
  func.func @transform_7(%arg0: i32, %arg1: memref<2x8xi32, #tpu.memory_space<smem>>, %arg2: memref<2xi32, #tpu.memory_space<smem>>) -> (i32, i32) {
    %c0_i32 = arith.constant 0 : i32
    %c0_i32_0 = arith.constant 0 : i32
    %c0_i32_1 = arith.constant 0 : i32
    return %c0_i32, %c0_i32_0 : i32, i32
  }
  func.func @transform_8(%arg0: i32, %arg1: memref<2x8xi32, #tpu.memory_space<smem>>, %arg2: memref<2xi32, #tpu.memory_space<smem>>) -> (i32, i32) {
    %c0_i32 = arith.constant 0 : i32
    %c0_i32_0 = arith.constant 0 : i32
    %c0_i32_1 = arith.constant 0 : i32
    return %c0_i32, %c0_i32_0 : i32, i32
  }
  func.func @transform_9(%arg0: i32, %arg1: memref<2x8xi32, #tpu.memory_space<smem>>, %arg2: memref<2xi32, #tpu.memory_space<smem>>) -> (i32, i32) {
    %c0_i32 = arith.constant 0 : i32
    %c0_i32_0 = arith.constant 0 : i32
    %c0_i32_1 = arith.constant 0 : i32
    return %c0_i32, %c0_i32_0 : i32, i32
  }
  func.func @transform_10(%arg0: i32, %arg1: memref<2x8xi32, #tpu.memory_space<smem>>, %arg2: memref<2xi32, #tpu.memory_space<smem>>) -> (i32, i32) {
    %c0_i32 = arith.constant 0 : i32
    %c0_i32_0 = arith.constant 0 : i32
    %c0_i32_1 = arith.constant 0 : i32
    return %c0_i32, %c0_i32_0 : i32, i32
  }
  func.func @transform_11(%arg0: i32, %arg1: memref<2x8xi32, #tpu.memory_space<smem>>, %arg2: memref<2xi32, #tpu.memory_space<smem>>) -> (i32, i32) {
    %c0_i32 = arith.constant 0 : i32
    %c0_i32_0 = arith.constant 0 : i32
    %c0_i32_1 = arith.constant 0 : i32
    return %c0_i32, %c0_i32_0 : i32, i32
  }
  func.func @transform_12(%arg0: i32, %arg1: memref<2x8xi32, #tpu.memory_space<smem>>, %arg2: memref<2xi32, #tpu.memory_space<smem>>) -> (i32, i32) {
    %c0_i32 = arith.constant 0 : i32
    %c0_i32_0 = arith.constant 0 : i32
    %c0_i32_1 = arith.constant 0 : i32
    return %c0_i32, %c0_i32_0 : i32, i32
  }
  func.func @transform_13(%arg0: i32, %arg1: memref<2x8xi32, #tpu.memory_space<smem>>, %arg2: memref<2xi32, #tpu.memory_space<smem>>) -> (i32, i32) {
    %c0_i32 = arith.constant 0 : i32
    %c0_i32_0 = arith.constant 0 : i32
    %c0_i32_1 = arith.constant 0 : i32
    return %c0_i32, %c0_i32_0 : i32, i32
  }
  func.func @transform_14(%arg0: i32, %arg1: memref<2x8xi32, #tpu.memory_space<smem>>, %arg2: memref<2xi32, #tpu.memory_space<smem>>) -> (i32, i32) {
    %c0_i32 = arith.constant 0 : i32
    %c0_i32_0 = arith.constant 0 : i32
    %c0_i32_1 = arith.constant 0 : i32
    return %c0_i32, %c0_i32_0 : i32, i32
  }
  func.func @transform_15(%arg0: i32, %arg1: memref<2x8xi32, #tpu.memory_space<smem>>, %arg2: memref<2xi32, #tpu.memory_space<smem>>) -> (i32, i32) {
    %c0_i32 = arith.constant 0 : i32
    %c0_i32_0 = arith.constant 0 : i32
    %c0_i32_1 = arith.constant 0 : i32
    return %c0_i32, %c0_i32_0 : i32, i32
  }
  func.func @transform_16(%arg0: i32, %arg1: memref<2x8xi32, #tpu.memory_space<smem>>, %arg2: memref<2xi32, #tpu.memory_space<smem>>) -> (i32, i32) {
    %c0_i32 = arith.constant 0 : i32
    %c0_i32_0 = arith.constant 0 : i32
    %c0_i32_1 = arith.constant 0 : i32
    return %c0_i32, %c0_i32_0 : i32, i32
  }
  func.func @transform_17(%arg0: i32, %arg1: memref<2x8xi32, #tpu.memory_space<smem>>, %arg2: memref<2xi32, #tpu.memory_space<smem>>) -> (i32, i32) {
    %c0_i32 = arith.constant 0 : i32
    %c0_i32_0 = arith.constant 0 : i32
    %c0_i32_1 = arith.constant 0 : i32
    return %c0_i32, %c0_i32_0 : i32, i32
  }
  func.func @transform_18(%arg0: i32, %arg1: memref<2x8xi32, #tpu.memory_space<smem>>, %arg2: memref<2xi32, #tpu.memory_space<smem>>) -> (i32, i32) {
    %c0_i32 = arith.constant 0 : i32
    %c0_i32_0 = arith.constant 0 : i32
    %c0_i32_1 = arith.constant 0 : i32
    return %c0_i32, %c0_i32_0 : i32, i32
  }
  func.func @transform_19(%arg0: i32, %arg1: memref<2x8xi32, #tpu.memory_space<smem>>, %arg2: memref<2xi32, #tpu.memory_space<smem>>) -> (i32, i32) {
    %c0_i32 = arith.constant 0 : i32
    %c0_i32_0 = arith.constant 0 : i32
    %c0_i32_1 = arith.constant 0 : i32
    return %c0_i32, %c0_i32_0 : i32, i32
  }
  func.func @transform_20(%arg0: i32, %arg1: memref<2x8xi32, #tpu.memory_space<smem>>, %arg2: memref<2xi32, #tpu.memory_space<smem>>) -> (i32, i32) {
    %c0_i32 = arith.constant 0 : i32
    %c0_i32_0 = arith.constant 0 : i32
    %c0_i32_1 = arith.constant 0 : i32
    return %c0_i32, %c0_i32_0 : i32, i32
  }
  func.func @transform_21(%arg0: i32, %arg1: memref<2x8xi32, #tpu.memory_space<smem>>, %arg2: memref<2xi32, #tpu.memory_space<smem>>) -> (i32, i32) {
    %c0_i32 = arith.constant 0 : i32
    %c0_i32_0 = arith.constant 0 : i32
    %c0_i32_1 = arith.constant 0 : i32
    return %c0_i32, %c0_i32_0 : i32, i32
  }
  func.func @transform_22(%arg0: i32, %arg1: memref<2x8xi32, #tpu.memory_space<smem>>, %arg2: memref<2xi32, #tpu.memory_space<smem>>) -> (i32, i32) {
    %c0_i32 = arith.constant 0 : i32
    %c0_i32_0 = arith.constant 0 : i32
    %c0_i32_1 = arith.constant 0 : i32
    return %c0_i32, %c0_i32_0 : i32, i32
  }
  func.func @transform_23(%arg0: i32, %arg1: memref<2x8xi32, #tpu.memory_space<smem>>, %arg2: memref<2xi32, #tpu.memory_space<smem>>) -> (i32, i32) {
    %c0_i32 = arith.constant 0 : i32
    %c0_i32_0 = arith.constant 0 : i32
    %c0_i32_1 = arith.constant 0 : i32
    return %c0_i32, %c0_i32_0 : i32, i32
  }
  func.func @transform_24(%arg0: i32, %arg1: memref<2x8xi32, #tpu.memory_space<smem>>, %arg2: memref<2xi32, #tpu.memory_space<smem>>) -> (i32, i32) {
    %c0_i32 = arith.constant 0 : i32
    %c0_i32_0 = arith.constant 0 : i32
    %c0_i32_1 = arith.constant 0 : i32
    return %c0_i32, %c0_i32_0 : i32, i32
  }
  func.func @transform_25(%arg0: i32, %arg1: memref<2x8xi32, #tpu.memory_space<smem>>, %arg2: memref<2xi32, #tpu.memory_space<smem>>) -> (i32, i32) {
    %c0_i32 = arith.constant 0 : i32
    %c0_i32_0 = arith.constant 0 : i32
    %c0_i32_1 = arith.constant 0 : i32
    return %c0_i32, %c0_i32_0 : i32, i32
  }
  func.func @transform_26(%arg0: i32, %arg1: memref<2x8xi32, #tpu.memory_space<smem>>, %arg2: memref<2xi32, #tpu.memory_space<smem>>) -> (i32, i32) {
    %c0_i32 = arith.constant 0 : i32
    %c0_i32_0 = arith.constant 0 : i32
    %c0_i32_1 = arith.constant 0 : i32
    return %c0_i32, %c0_i32_0 : i32, i32
  }
  func.func @transform_27(%arg0: i32, %arg1: memref<2x8xi32, #tpu.memory_space<smem>>, %arg2: memref<2xi32, #tpu.memory_space<smem>>) -> (i32, i32) {
    %c0_i32 = arith.constant 0 : i32
    %c0_i32_0 = arith.constant 0 : i32
    %c0_i32_1 = arith.constant 0 : i32
    return %c0_i32, %c0_i32_0 : i32, i32
  }
  func.func @transform_28(%arg0: i32, %arg1: memref<2x8xi32, #tpu.memory_space<smem>>, %arg2: memref<2xi32, #tpu.memory_space<smem>>) -> (i32, i32, i32) {
    %c0_i32 = arith.constant 0 : i32
    %c0_i32_0 = arith.constant 0 : i32
    %c0_i32_1 = arith.constant 0 : i32
    return %arg0, %c0_i32, %c0_i32_0 : i32, i32, i32
  }
}

</mosaic_0001>

<llo_original>
// kernel: transformer_forward.1
$region0: #{transformer_forward.1}
  #allocation0 [shape = 'u32[]', space=smem, size = 0x4, offset = 0x4, fixed_abs, tag = 'smem constant byte address 0x4 - core index']
  #allocation1 [shape = 'u32[72,128]{1,0:T(1,128)}', space=vmem, size = 0x9000, scoped, tag = 'internal scratch']
  #allocation2 [shape = 'f32[8,128]{1,0:T(8,128)}', space=vmem, size = 0x1000, scoped, tag = 'scratch operand']
  #allocation3 [shape = 's32[1]{0}', space=sflag, size = 0x4, scoped, tag = 'scoped memory for transformer_forward.1']
  #allocation4 [shape = 'u8[1024]{0}', space=smem, size = 0x400, scoped, tag = 'prefetched SMEM operand 0']
  #allocation5 [shape = 'u8[512]{0}', space=smem, size = 0x200, scoped, tag = 'prefetched SMEM operand 1']
  %s0 = inlined_call_operand.smem [shape: u32[31], index: -1, kind: input, shape index: {}]
  %s1 = sld [smem:[%s0]]
  %s2 = scalar_lea.smem %s0, 1
  %s3 = sld [smem:[%s2]]
  %s4 = scalar_lea.smem %s0, 2
  %s5 = sld [smem:[%s4]]
  %s6 = scalar_lea.smem %s0, 3
  %s7 = sld [smem:[%s6]]
  %s8 = scalar_lea.smem %s0, 4
  %s9 = sld [smem:[%s8]]
  %s10 = scalar_lea.smem %s0, 5
  %s11 = sld [smem:[%s10]]
  %s12 = scalar_lea.smem %s0, 6
  %s13 = sld [smem:[%s12]]
  %s14 = scalar_lea.smem %s0, 7
  %s15 = sld [smem:[%s14]]
  %s16 = scalar_lea.smem %s0, 8
  %s17 = sld [smem:[%s16]]
  %s18 = scalar_lea.smem %s0, 9
  %s19 = sld [smem:[%s18]]
  %s20 = scalar_lea.smem %s0, 10
  %s21 = sld [smem:[%s20]]
  %s22 = scalar_lea.smem %s0, 11
  %s23 = sld [smem:[%s22]]
  %s24 = scalar_lea.smem %s0, 12
  %s25 = sld [smem:[%s24]]
  %s26 = scalar_lea.smem %s0, 13
  %s27 = sld [smem:[%s26]]
  %s28 = scalar_lea.smem %s0, 14
  %s29 = sld [smem:[%s28]]
  %s30 = scalar_lea.smem %s0, 15
  %s31 = sld [smem:[%s30]]
  %s32 = scalar_lea.smem %s0, 16
  %s33 = sld [smem:[%s32]]
  %s34 = scalar_lea.smem %s0, 17
  %s35 = sld [smem:[%s34]]
  %s36 = scalar_lea.smem %s0, 18
  %s37 = sld [smem:[%s36]]
  %s38 = scalar_lea.smem %s0, 19
  %s39 = sld [smem:[%s38]]
  %s40 = scalar_lea.smem %s0, 20
  %s41 = sld [smem:[%s40]]
  %s42 = scalar_lea.smem %s0, 21
  %s43 = sld [smem:[%s42]]
  %s44 = scalar_lea.smem %s0, 22
  %s45 = sld [smem:[%s44]]
  %s46 = scalar_lea.smem %s0, 23
  %s47 = sld [smem:[%s46]]
  %s48 = scalar_lea.smem %s0, 24
  %s49 = sld [smem:[%s48]]
  %s50 = scalar_lea.smem %s0, 25
  %s51 = sld [smem:[%s50]]
  %s52 = scalar_lea.smem %s0, 26
  %s53 = sld [smem:[%s52]]
  %s54 = scalar_lea.smem %s0, 27
  %s55 = sld [smem:[%s54]]
  %s56 = scalar_lea.smem %s0, 28
  %s57 = sld [smem:[%s56]]
  %s58 = scalar_lea.smem %s0, 29
  %s59 = sld [smem:[%s58]]
  %s60 = scalar_lea.smem %s0, 30
  %s61 = sld [smem:[%s60]]
  %s62 = sld [smem:[#allocation0]]
  $region185: #{transformer_forward.1} parent=0
    _
  %s64 = ssub.s32 1, %s62
  %s65 = scalar_select 0, %s64, %s62
  %s67 = sshll.u32 %s1, 4
  %s68 = int_to_ptr.vmem [resolvable:$true] %s67
  %70 = dma.vmem_to_smem %s68, 32, [#allocation4], [#allocation3]
  %s72 = sshll.u32 %s3, 4
  %s73 = int_to_ptr.vmem [resolvable:$true] %s72
  %75 = dma.vmem_to_smem %s73, 16, [#allocation5], [#allocation3]
  %77 = dma.done [#allocation3], 48
  %78 = sfence
  $region1: #{transformer_forward.1} parent=0
    #allocation6 [shape = 'u8[32768]{0}', space=vmem, size = 0x8000, scoped, tag = 'input window, operand 2, single buffered']
    #allocation7 [shape = 's32[2]{0}', space=sflag, size = 0x8, scoped, tag = 'scoped memory for transformer_forward.1']
    #allocation8 [shape = 's32[2]{0}', space=sflag, size = 0x8, scoped, tag = 'scoped memory for transformer_forward.1']
    #allocation9 [shape = 'u8[196608]{0}', space=vmem, size = 0x30000, scoped, tag = 'input window, operand 4, single buffered']
    #allocation10 [shape = 's32[1]{0}', space=sflag, size = 0x4, scoped, tag = 'scoped memory for transformer_forward.1']
    #allocation11 [shape = 'u8[512]{0}', space=vmem, size = 0x400, scoped, tag = 'input window, operand 7, single buffered']
    #allocation12 [shape = 'u8[131072]{0}', space=vmem, size = 0x20000, scoped, tag = 'input window, operand 10, single buffered']
    #allocation13 [shape = 's32[1]{0}', space=sflag, size = 0x4, scoped, tag = 'scoped memory for transformer_forward.1']
    #allocation14 [shape = 'u8[131072]{0}', space=vmem, size = 0x20000, scoped, tag = 'input window, operand 12, single buffered']
    #allocation15 [shape = 'u8[512]{0}', space=vmem, size = 0x400, scoped, tag = 'input window, operand 13, single buffered']
    #allocation16 [shape = 's32[1]{0}', space=sflag, size = 0x4, scoped, tag = 'scoped memory for transformer_forward.1']
    #allocation17 [shape = 'u8[196608]{0}', space=vmem, size = 0x30000, scoped, tag = 'input window, operand 16, single buffered']
    #allocation18 [shape = 'u8[65536]{0}', space=vmem, size = 0x10000, scoped, tag = 'input window, operand 18, single buffered']
    #allocation19 [shape = 's32[1]{0}', space=sflag, size = 0x4, scoped, tag = 'scoped memory for transformer_forward.1']
    #allocation20 [shape = 'u8[131072]{0}', space=vmem, size = 0x20000, scoped, tag = 'input window, operand 22, single buffered']
    #allocation21 [shape = 'u8[131072]{0}', space=vmem, size = 0x20000, scoped, tag = 'input window, operand 24, single buffered']
    #allocation22 [shape = 's32[1]{0}', space=sflag, size = 0x4, scoped, tag = 'scoped memory for transformer_forward.1']
    #allocation23 [shape = 'u8[1024]{0}', space=vmem, size = 0x400, scoped, tag = 'output window, operand 0']
    %79 = vsyncpa [#allocation7], 0
    %80 = vsyncpa [#allocation10], 0
    %81 = vsyncpa [#allocation13], 0
    %82 = vsyncpa [#allocation16], 0
    %83 = vsyncpa [#allocation19], 0
    %84 = vsyncpa [#allocation22], 0
    %85 = vsyncpa [#allocation8], 0
    %s86 = scalar_lea.sflag [#allocation8], 1
    %87 = vsyncpa %s86, 0
    loop: start=0, step=1, limit=4
    $region2: #{transformer_forward.1} parent=1 // loop_pre_header
      _
    $region3: #{transformer_forward.1} parent=1 // loop_header
      %s89 = sphi 0, %s93
      %p90 = scmp.ge.s32.totalorder %s89, 4
      %s97 = sphi 0, %s97
      %s99 = sphi 0, %s97
      %s100 = sphi 0, %s99
      %s114 = sphi 0, %s100
      %s118 = sphi 0, %s118
      %s120 = sphi 0, %s118
      %s121 = sphi 0, %s120
      %s135 = sphi 0, %s121
      %s139 = sphi 0, %s139
      %s141 = sphi 0, %s139
      %s142 = sphi 0, %s141
      %s156 = sphi 0, %s142
      %s160 = sphi 0, %s160
      %s162 = sphi 0, %s160
      %s163 = sphi 0, %s162
      %s177 = sphi 0, %s163
      %s181 = sphi 0, %s181
      %s183 = sphi 0, %s181
      %s184 = sphi 0, %s183
      %s198 = sphi 0, %s184
      %s202 = sphi 0, %s202
      %s204 = sphi 0, %s202
      %s205 = sphi 0, %s204
      %s219 = sphi 0, %s205
      %s223 = sphi 0, %s223
      %s225 = sphi 0, %s223
      %s226 = sphi 0, %s225
      %s240 = sphi 0, %s226
      %s244 = sphi 0, %s244
      %s246 = sphi 0, %s244
      %s247 = sphi 0, %s246
      %s261 = sphi 0, %s247
      %s265 = sphi 0, %s265
      %s267 = sphi 0, %s265
      %s268 = sphi 0, %s267
      %s282 = sphi 0, %s268
      %s286 = sphi 0, %s286
      %s288 = sphi 0, %s286
      %s289 = sphi 0, %s288
      %s303 = sphi 0, %s289
      %s307 = sphi 0, %s307
      %s309 = sphi 0, %s307
      %s310 = sphi 0, %s309
      %s324 = sphi 0, %s310
      %s328 = sphi 0, %s328
      %s330 = sphi 0, %s328
      %s331 = sphi 0, %s330
      %s345 = sphi 0, %s331
      %s349 = sphi 0, %s349
      %s351 = sphi 0, %s349
      %s352 = sphi 0, %s351
      %s366 = sphi 0, %s352
      %s370 = sphi 0, %s370
      %s372 = sphi 0, %s370
      %s373 = sphi 0, %s372
      %s387 = sphi 0, %s373
      %s391 = sphi 0, %s391
      %s393 = sphi 0, %s391
      %s394 = sphi 0, %s393
      %s408 = sphi 0, %s394
      %s412 = sphi 0, %s412
      %s414 = sphi 0, %s412
      %s415 = sphi 0, %s414
      %s429 = sphi 0, %s415
      %s433 = sphi 0, %s433
      %s435 = sphi 0, %s433
      %s436 = sphi 0, %s435
      %s450 = sphi 0, %s436
      %s454 = sphi 0, %s454
      %s456 = sphi 0, %s454
      %s457 = sphi 0, %s456
      %s471 = sphi 0, %s457
      %s475 = sphi 0, %s475
      %s477 = sphi 0, %s475
      %s478 = sphi 0, %s477
      %s492 = sphi 0, %s478
      %s496 = sphi 0, %s496
      %s498 = sphi 0, %s496
      %s499 = sphi 0, %s498
      %s513 = sphi 0, %s499
      %s517 = sphi 0, %s517
      %s519 = sphi 0, %s517
      %s520 = sphi 0, %s519
      %s534 = sphi 0, %s520
      %s538 = sphi 0, %s538
      %s540 = sphi 0, %s538
      %s541 = sphi 0, %s540
      %s555 = sphi 0, %s541
      %s559 = sphi 0, %s559
      %s561 = sphi 0, %s559
      %s562 = sphi 0, %s561
      %s576 = sphi 0, %s562
      %s580 = sphi 0, %s580
      %s582 = sphi 0, %s580
      %s583 = sphi 0, %s582
      %s597 = sphi 0, %s583
      %s601 = sphi 0, %s601
      %s603 = sphi 0, %s601
      %s604 = sphi 0, %s603
      %s618 = sphi 0, %s604
      %s622 = sphi 0, %s622
      %s624 = sphi 0, %s622
      %s625 = sphi 0, %s624
      %s639 = sphi 0, %s625
      %s643 = sphi 0, %s643
      %s645 = sphi 0, %s643
      %s646 = sphi 0, %s645
      %s660 = sphi 0, %s646
      %s664 = sphi 0, %s664
      %s666 = sphi 0, %s664
      %s667 = sphi 0, %s666
      %s681 = sphi 0, %s667
      %s687 = sphi 0, %s689
      %s690 = sphi 0, %s687
      %s691 = sphi 0, %s690
      %s707 = sphi 0, %s691
    $region4: #{transformer_forward.1} parent=1 // loop_header_branch
      %92 = sbr.rel (%p90) target = $region8
    $region5: #{transformer_forward.1} parent=1 // loop_body
      %s94 = ssub.s32 %s89, 1
      %s95 = ssub.s32 %s89, 2
      %s96 = sadd.s32 %s89, 1
      %s98 = sadd.s32 %s97, 1
      %p101 = scmp.eq.s32.totalorder %s89, 1
      %p102 = scmp.ne.s32.totalorder %s97, %s99
      %p103 = scmp.eq.s32.totalorder %s89, 0
      %p104 = por %p102, %p103
      %p105 = scmp.ne.s32.totalorder %s97, %s99
      %p106 = scmp.eq.s32.totalorder %s94, 1
      %p107 = por %p105, %p106
      %p108 = scmp.ne.s32.totalorder %s99, %s100
      %p109 = scmp.eq.s32.totalorder %s94, 0
      %p110 = por %p108, %p109
      %p111 = scmp.ne.s32.totalorder %s99, %s100
      %p112 = scmp.eq.s32.totalorder %s95, 1
      %p113 = por %p111, %p112
      %p115 = scmp.ne.s32.totalorder %s100, %s114
      %p116 = scmp.eq.s32.totalorder %s95, 0
      %p117 = por %p115, %p116
      %s119 = sadd.s32 %s118, 1
      %p122 = scmp.eq.s32.totalorder %s89, 1
      %p123 = scmp.ne.s32.totalorder %s118, %s120
      %p124 = scmp.eq.s32.totalorder %s89, 0
      %p125 = por %p123, %p124
      %p126 = scmp.ne.s32.totalorder %s118, %s120
      %p127 = scmp.eq.s32.totalorder %s94, 1
      %p128 = por %p126, %p127
      %p129 = scmp.ne.s32.totalorder %s120, %s121
      %p130 = scmp.eq.s32.totalorder %s94, 0
      %p131 = por %p129, %p130
      %p132 = scmp.ne.s32.totalorder %s120, %s121
      %p133 = scmp.eq.s32.totalorder %s95, 1
      %p134 = por %p132, %p133
      %p136 = scmp.ne.s32.totalorder %s121, %s135
      %p137 = scmp.eq.s32.totalorder %s95, 0
      %p138 = por %p136, %p137
      %s140 = sadd.s32 %s139, 1
      %p143 = scmp.eq.s32.totalorder %s89, 1
      %p144 = scmp.ne.s32.totalorder %s139, %s141
      %p145 = scmp.eq.s32.totalorder %s89, 0
      %p146 = por %p144, %p145
      %p147 = scmp.ne.s32.totalorder %s139, %s141
      %p148 = scmp.eq.s32.totalorder %s94, 1
      %p149 = por %p147, %p148
      %p150 = scmp.ne.s32.totalorder %s141, %s142
      %p151 = scmp.eq.s32.totalorder %s94, 0
      %p152 = por %p150, %p151
      %p153 = scmp.ne.s32.totalorder %s141, %s142
      %p154 = scmp.eq.s32.totalorder %s95, 1
      %p155 = por %p153, %p154
      %p157 = scmp.ne.s32.totalorder %s142, %s156
      %p158 = scmp.eq.s32.totalorder %s95, 0
      %p159 = por %p157, %p158
      %s161 = sadd.s32 %s160, 1
      %p164 = scmp.eq.s32.totalorder %s89, 1
      %p165 = scmp.ne.s32.totalorder %s160, %s162
      %p166 = scmp.eq.s32.totalorder %s89, 0
      %p167 = por %p165, %p166
      %p168 = scmp.ne.s32.totalorder %s160, %s162
      %p169 = scmp.eq.s32.totalorder %s94, 1
      %p170 = por %p168, %p169
      %p171 = scmp.ne.s32.totalorder %s162, %s163
      %p172 = scmp.eq.s32.totalorder %s94, 0
      %p173 = por %p171, %p172
      %p174 = scmp.ne.s32.totalorder %s162, %s163
      %p175 = scmp.eq.s32.totalorder %s95, 1
      %p176 = por %p174, %p175
      %p178 = scmp.ne.s32.totalorder %s163, %s177
      %p179 = scmp.eq.s32.totalorder %s95, 0
      %p180 = por %p178, %p179
      %s182 = sadd.s32 %s181, 1
      %p185 = scmp.eq.s32.totalorder %s89, 1
      %p186 = scmp.ne.s32.totalorder %s181, %s183
      %p187 = scmp.eq.s32.totalorder %s89, 0
      %p188 = por %p186, %p187
      %p189 = scmp.ne.s32.totalorder %s181, %s183
      %p190 = scmp.eq.s32.totalorder %s94, 1
      %p191 = por %p189, %p190
      %p192 = scmp.ne.s32.totalorder %s183, %s184
      %p193 = scmp.eq.s32.totalorder %s94, 0
      %p194 = por %p192, %p193
      %p195 = scmp.ne.s32.totalorder %s183, %s184
      %p196 = scmp.eq.s32.totalorder %s95, 1
      %p197 = por %p195, %p196
      %p199 = scmp.ne.s32.totalorder %s184, %s198
      %p200 = scmp.eq.s32.totalorder %s95, 0
      %p201 = por %p199, %p200
      %s203 = sadd.s32 %s202, 1
      %p206 = scmp.eq.s32.totalorder %s89, 1
      %p207 = scmp.ne.s32.totalorder %s202, %s204
      %p208 = scmp.eq.s32.totalorder %s89, 0
      %p209 = por %p207, %p208
      %p210 = scmp.ne.s32.totalorder %s202, %s204
      %p211 = scmp.eq.s32.totalorder %s94, 1
      %p212 = por %p210, %p211
      %p213 = scmp.ne.s32.totalorder %s204, %s205
      %p214 = scmp.eq.s32.totalorder %s94, 0
      %p215 = por %p213, %p214
      %p216 = scmp.ne.s32.totalorder %s204, %s205
      %p217 = scmp.eq.s32.totalorder %s95, 1
      %p218 = por %p216, %p217
      %p220 = scmp.ne.s32.totalorder %s205, %s219
      %p221 = scmp.eq.s32.totalorder %s95, 0
      %p222 = por %p220, %p221
      %s224 = sadd.s32 %s223, 1
      %p227 = scmp.eq.s32.totalorder %s89, 1
      %p228 = scmp.ne.s32.totalorder %s223, %s225
      %p229 = scmp.eq.s32.totalorder %s89, 0
      %p230 = por %p228, %p229
      %p231 = scmp.ne.s32.totalorder %s223, %s225
      %p232 = scmp.eq.s32.totalorder %s94, 1
      %p233 = por %p231, %p232
      %p234 = scmp.ne.s32.totalorder %s225, %s226
      %p235 = scmp.eq.s32.totalorder %s94, 0
      %p236 = por %p234, %p235
      %p237 = scmp.ne.s32.totalorder %s225, %s226
      %p238 = scmp.eq.s32.totalorder %s95, 1
      %p239 = por %p237, %p238
      %p241 = scmp.ne.s32.totalorder %s226, %s240
      %p242 = scmp.eq.s32.totalorder %s95, 0
      %p243 = por %p241, %p242
      %s245 = sadd.s32 %s244, 1
      %p248 = scmp.eq.s32.totalorder %s89, 1
      %p249 = scmp.ne.s32.totalorder %s244, %s246
      %p250 = scmp.eq.s32.totalorder %s89, 0
      %p251 = por %p249, %p250
      %p252 = scmp.ne.s32.totalorder %s244, %s246
      %p253 = scmp.eq.s32.totalorder %s94, 1
      %p254 = por %p252, %p253
      %p255 = scmp.ne.s32.totalorder %s246, %s247
      %p256 = scmp.eq.s32.totalorder %s94, 0
      %p257 = por %p255, %p256
      %p258 = scmp.ne.s32.totalorder %s246, %s247
      %p259 = scmp.eq.s32.totalorder %s95, 1
      %p260 = por %p258, %p259
      %p262 = scmp.ne.s32.totalorder %s247, %s261
      %p263 = scmp.eq.s32.totalorder %s95, 0
      %p264 = por %p262, %p263
      %s266 = sadd.s32 %s265, 1
      %p269 = scmp.eq.s32.totalorder %s89, 1
      %p270 = scmp.ne.s32.totalorder %s265, %s267
      %p271 = scmp.eq.s32.totalorder %s89, 0
      %p272 = por %p270, %p271
      %p273 = scmp.ne.s32.totalorder %s265, %s267
      %p274 = scmp.eq.s32.totalorder %s94, 1
      %p275 = por %p273, %p274
      %p276 = scmp.ne.s32.totalorder %s267, %s268
      %p277 = scmp.eq.s32.totalorder %s94, 0
      %p278 = por %p276, %p277
      %p279 = scmp.ne.s32.totalorder %s267, %s268
      %p280 = scmp.eq.s32.totalorder %s95, 1
      %p281 = por %p279, %p280
      %p283 = scmp.ne.s32.totalorder %s268, %s282
      %p284 = scmp.eq.s32.totalorder %s95, 0
      %p285 = por %p283, %p284
      %s287 = sadd.s32 %s286, 1
      %p290 = scmp.eq.s32.totalorder %s89, 1
      %p291 = scmp.ne.s32.totalorder %s286, %s288
      %p292 = scmp.eq.s32.totalorder %s89, 0
      %p293 = por %p291, %p292
      %p294 = scmp.ne.s32.totalorder %s286, %s288
      %p295 = scmp.eq.s32.totalorder %s94, 1
      %p296 = por %p294, %p295
      %p297 = scmp.ne.s32.totalorder %s288, %s289
      %p298 = scmp.eq.s32.totalorder %s94, 0
      %p299 = por %p297, %p298
      %p300 = scmp.ne.s32.totalorder %s288, %s289
      %p301 = scmp.eq.s32.totalorder %s95, 1
      %p302 = por %p300, %p301
      %p304 = scmp.ne.s32.totalorder %s289, %s303
      %p305 = scmp.eq.s32.totalorder %s95, 0
      %p306 = por %p304, %p305
      %s308 = sadd.s32 %s307, 1
      %p311 = scmp.eq.s32.totalorder %s89, 1
      %p312 = scmp.ne.s32.totalorder %s307, %s309
      %p313 = scmp.eq.s32.totalorder %s89, 0
      %p314 = por %p312, %p313
      %p315 = scmp.ne.s32.totalorder %s307, %s309
      %p316 = scmp.eq.s32.totalorder %s94, 1
      %p317 = por %p315, %p316
      %p318 = scmp.ne.s32.totalorder %s309, %s310
      %p319 = scmp.eq.s32.totalorder %s94, 0
      %p320 = por %p318, %p319
      %p321 = scmp.ne.s32.totalorder %s309, %s310
      %p322 = scmp.eq.s32.totalorder %s95, 1
      %p323 = por %p321, %p322
      %p325 = scmp.ne.s32.totalorder %s310, %s324
      %p326 = scmp.eq.s32.totalorder %s95, 0
      %p327 = por %p325, %p326
      %s329 = sadd.s32 %s328, 1
      %p332 = scmp.eq.s32.totalorder %s89, 1
      %p333 = scmp.ne.s32.totalorder %s328, %s330
      %p334 = scmp.eq.s32.totalorder %s89, 0
      %p335 = por %p333, %p334
      %p336 = scmp.ne.s32.totalorder %s328, %s330
      %p337 = scmp.eq.s32.totalorder %s94, 1
      %p338 = por %p336, %p337
      %p339 = scmp.ne.s32.totalorder %s330, %s331
      %p340 = scmp.eq.s32.totalorder %s94, 0
      %p341 = por %p339, %p340
      %p342 = scmp.ne.s32.totalorder %s330, %s331
      %p343 = scmp.eq.s32.totalorder %s95, 1
      %p344 = por %p342, %p343
      %p346 = scmp.ne.s32.totalorder %s331, %s345
      %p347 = scmp.eq.s32.totalorder %s95, 0
      %p348 = por %p346, %p347
      %s350 = sadd.s32 %s349, 1
      %p353 = scmp.eq.s32.totalorder %s89, 1
      %p354 = scmp.ne.s32.totalorder %s349, %s351
      %p355 = scmp.eq.s32.totalorder %s89, 0
      %p356 = por %p354, %p355
      %p357 = scmp.ne.s32.totalorder %s349, %s351
      %p358 = scmp.eq.s32.totalorder %s94, 1
      %p359 = por %p357, %p358
      %p360 = scmp.ne.s32.totalorder %s351, %s352
      %p361 = scmp.eq.s32.totalorder %s94, 0
      %p362 = por %p360, %p361
      %p363 = scmp.ne.s32.totalorder %s351, %s352
      %p364 = scmp.eq.s32.totalorder %s95, 1
      %p365 = por %p363, %p364
      %p367 = scmp.ne.s32.totalorder %s352, %s366
      %p368 = scmp.eq.s32.totalorder %s95, 0
      %p369 = por %p367, %p368
      %s371 = sadd.s32 %s370, 1
      %p374 = scmp.eq.s32.totalorder %s89, 1
      %p375 = scmp.ne.s32.totalorder %s370, %s372
      %p376 = scmp.eq.s32.totalorder %s89, 0
      %p377 = por %p375, %p376
      %p378 = scmp.ne.s32.totalorder %s370, %s372
      %p379 = scmp.eq.s32.totalorder %s94, 1
      %p380 = por %p378, %p379
      %p381 = scmp.ne.s32.totalorder %s372, %s373
      %p382 = scmp.eq.s32.totalorder %s94, 0
      %p383 = por %p381, %p382
      %p384 = scmp.ne.s32.totalorder %s372, %s373
      %p385 = scmp.eq.s32.totalorder %s95, 1
      %p386 = por %p384, %p385
      %p388 = scmp.ne.s32.totalorder %s373, %s387
      %p389 = scmp.eq.s32.totalorder %s95, 0
      %p390 = por %p388, %p389
      %s392 = sadd.s32 %s391, 1
      %p395 = scmp.eq.s32.totalorder %s89, 1
      %p396 = scmp.ne.s32.totalorder %s391, %s393
      %p397 = scmp.eq.s32.totalorder %s89, 0
      %p398 = por %p396, %p397
      %p399 = scmp.ne.s32.totalorder %s391, %s393
      %p400 = scmp.eq.s32.totalorder %s94, 1
      %p401 = por %p399, %p400
      %p402 = scmp.ne.s32.totalorder %s393, %s394
      %p403 = scmp.eq.s32.totalorder %s94, 0
      %p404 = por %p402, %p403
      %p405 = scmp.ne.s32.totalorder %s393, %s394
      %p406 = scmp.eq.s32.totalorder %s95, 1
      %p407 = por %p405, %p406
      %p409 = scmp.ne.s32.totalorder %s394, %s408
      %p410 = scmp.eq.s32.totalorder %s95, 0
      %p411 = por %p409, %p410
      %s413 = sadd.s32 %s412, 1
      %p416 = scmp.eq.s32.totalorder %s89, 1
      %p417 = scmp.ne.s32.totalorder %s412, %s414
      %p418 = scmp.eq.s32.totalorder %s89, 0
      %p419 = por %p417, %p418
      %p420 = scmp.ne.s32.totalorder %s412, %s414
      %p421 = scmp.eq.s32.totalorder %s94, 1
      %p422 = por %p420, %p421
      %p423 = scmp.ne.s32.totalorder %s414, %s415
      %p424 = scmp.eq.s32.totalorder %s94, 0
      %p425 = por %p423, %p424
      %p426 = scmp.ne.s32.totalorder %s414, %s415
      %p427 = scmp.eq.s32.totalorder %s95, 1
      %p428 = por %p426, %p427
      %p430 = scmp.ne.s32.totalorder %s415, %s429
      %p431 = scmp.eq.s32.totalorder %s95, 0
      %p432 = por %p430, %p431
      %s434 = sadd.s32 %s433, 1
      %p437 = scmp.eq.s32.totalorder %s89, 1
      %p438 = scmp.ne.s32.totalorder %s433, %s435
      %p439 = scmp.eq.s32.totalorder %s89, 0
      %p440 = por %p438, %p439
      %p441 = scmp.ne.s32.totalorder %s433, %s435
      %p442 = scmp.eq.s32.totalorder %s94, 1
      %p443 = por %p441, %p442
      %p444 = scmp.ne.s32.totalorder %s435, %s436
      %p445 = scmp.eq.s32.totalorder %s94, 0
      %p446 = por %p444, %p445
      %p447 = scmp.ne.s32.totalorder %s435, %s436
      %p448 = scmp.eq.s32.totalorder %s95, 1
      %p449 = por %p447, %p448
      %p451 = scmp.ne.s32.totalorder %s436, %s450
      %p452 = scmp.eq.s32.totalorder %s95, 0
      %p453 = por %p451, %p452
      %s455 = sadd.s32 %s454, 1
      %p458 = scmp.eq.s32.totalorder %s89, 1
      %p459 = scmp.ne.s32.totalorder %s454, %s456
      %p460 = scmp.eq.s32.totalorder %s89, 0
      %p461 = por %p459, %p460
      %p462 = scmp.ne.s32.totalorder %s454, %s456
      %p463 = scmp.eq.s32.totalorder %s94, 1
      %p464 = por %p462, %p463
      %p465 = scmp.ne.s32.totalorder %s456, %s457
      %p466 = scmp.eq.s32.totalorder %s94, 0
      %p467 = por %p465, %p466
      %p468 = scmp.ne.s32.totalorder %s456, %s457
      %p469 = scmp.eq.s32.totalorder %s95, 1
      %p470 = por %p468, %p469
      %p472 = scmp.ne.s32.totalorder %s457, %s471
      %p473 = scmp.eq.s32.totalorder %s95, 0
      %p474 = por %p472, %p473
      %s476 = sadd.s32 %s475, 1
      %p479 = scmp.eq.s32.totalorder %s89, 1
      %p480 = scmp.ne.s32.totalorder %s475, %s477
      %p481 = scmp.eq.s32.totalorder %s89, 0
      %p482 = por %p480, %p481
      %p483 = scmp.ne.s32.totalorder %s475, %s477
      %p484 = scmp.eq.s32.totalorder %s94, 1
      %p485 = por %p483, %p484
      %p486 = scmp.ne.s32.totalorder %s477, %s478
      %p487 = scmp.eq.s32.totalorder %s94, 0
      %p488 = por %p486, %p487
      %p489 = scmp.ne.s32.totalorder %s477, %s478
      %p490 = scmp.eq.s32.totalorder %s95, 1
      %p491 = por %p489, %p490
      %p493 = scmp.ne.s32.totalorder %s478, %s492
      %p494 = scmp.eq.s32.totalorder %s95, 0
      %p495 = por %p493, %p494
      %s497 = sadd.s32 %s496, 1
      %p500 = scmp.eq.s32.totalorder %s89, 1
      %p501 = scmp.ne.s32.totalorder %s496, %s498
      %p502 = scmp.eq.s32.totalorder %s89, 0
      %p503 = por %p501, %p502
      %p504 = scmp.ne.s32.totalorder %s496, %s498
      %p505 = scmp.eq.s32.totalorder %s94, 1
      %p506 = por %p504, %p505
      %p507 = scmp.ne.s32.totalorder %s498, %s499
      %p508 = scmp.eq.s32.totalorder %s94, 0
      %p509 = por %p507, %p508
      %p510 = scmp.ne.s32.totalorder %s498, %s499
      %p511 = scmp.eq.s32.totalorder %s95, 1
      %p512 = por %p510, %p511
      %p514 = scmp.ne.s32.totalorder %s499, %s513
      %p515 = scmp.eq.s32.totalorder %s95, 0
      %p516 = por %p514, %p515
      %s518 = sadd.s32 %s517, 1
      %p521 = scmp.eq.s32.totalorder %s89, 1
      %p522 = scmp.ne.s32.totalorder %s517, %s519
      %p523 = scmp.eq.s32.totalorder %s89, 0
      %p524 = por %p522, %p523
      %p525 = scmp.ne.s32.totalorder %s517, %s519
      %p526 = scmp.eq.s32.totalorder %s94, 1
      %p527 = por %p525, %p526
      %p528 = scmp.ne.s32.totalorder %s519, %s520
      %p529 = scmp.eq.s32.totalorder %s94, 0
      %p530 = por %p528, %p529
      %p531 = scmp.ne.s32.totalorder %s519, %s520
      %p532 = scmp.eq.s32.totalorder %s95, 1
      %p533 = por %p531, %p532
      %p535 = scmp.ne.s32.totalorder %s520, %s534
      %p536 = scmp.eq.s32.totalorder %s95, 0
      %p537 = por %p535, %p536
      %s539 = sadd.s32 %s538, 1
      %p542 = scmp.eq.s32.totalorder %s89, 1
      %p543 = scmp.ne.s32.totalorder %s538, %s540
      %p544 = scmp.eq.s32.totalorder %s89, 0
      %p545 = por %p543, %p544
      %p546 = scmp.ne.s32.totalorder %s538, %s540
      %p547 = scmp.eq.s32.totalorder %s94, 1
      %p548 = por %p546, %p547
      %p549 = scmp.ne.s32.totalorder %s540, %s541
      %p550 = scmp.eq.s32.totalorder %s94, 0
      %p551 = por %p549, %p550
      %p552 = scmp.ne.s32.totalorder %s540, %s541
      %p553 = scmp.eq.s32.totalorder %s95, 1
      %p554 = por %p552, %p553
      %p556 = scmp.ne.s32.totalorder %s541, %s555
      %p557 = scmp.eq.s32.totalorder %s95, 0
      %p558 = por %p556, %p557
      %s560 = sadd.s32 %s559, 1
      %p563 = scmp.eq.s32.totalorder %s89, 1
      %p564 = scmp.ne.s32.totalorder %s559, %s561
      %p565 = scmp.eq.s32.totalorder %s89, 0
      %p566 = por %p564, %p565
      %p567 = scmp.ne.s32.totalorder %s559, %s561
      %p568 = scmp.eq.s32.totalorder %s94, 1
      %p569 = por %p567, %p568
      %p570 = scmp.ne.s32.totalorder %s561, %s562
      %p571 = scmp.eq.s32.totalorder %s94, 0
      %p572 = por %p570, %p571
      %p573 = scmp.ne.s32.totalorder %s561, %s562
      %p574 = scmp.eq.s32.totalorder %s95, 1
      %p575 = por %p573, %p574
      %p577 = scmp.ne.s32.totalorder %s562, %s576
      %p578 = scmp.eq.s32.totalorder %s95, 0
      %p579 = por %p577, %p578
      %s581 = sadd.s32 %s580, 1
      %p584 = scmp.eq.s32.totalorder %s89, 1
      %p585 = scmp.ne.s32.totalorder %s580, %s582
      %p586 = scmp.eq.s32.totalorder %s89, 0
      %p587 = por %p585, %p586
      %p588 = scmp.ne.s32.totalorder %s580, %s582
      %p589 = scmp.eq.s32.totalorder %s94, 1
      %p590 = por %p588, %p589
      %p591 = scmp.ne.s32.totalorder %s582, %s583
      %p592 = scmp.eq.s32.totalorder %s94, 0
      %p593 = por %p591, %p592
      %p594 = scmp.ne.s32.totalorder %s582, %s583
      %p595 = scmp.eq.s32.totalorder %s95, 1
      %p596 = por %p594, %p595
      %p598 = scmp.ne.s32.totalorder %s583, %s597
      %p599 = scmp.eq.s32.totalorder %s95, 0
      %p600 = por %p598, %p599
      %s602 = sadd.s32 %s601, 1
      %p605 = scmp.eq.s32.totalorder %s89, 1
      %p606 = scmp.ne.s32.totalorder %s601, %s603
      %p607 = scmp.eq.s32.totalorder %s89, 0
      %p608 = por %p606, %p607
      %p609 = scmp.ne.s32.totalorder %s601, %s603
      %p610 = scmp.eq.s32.totalorder %s94, 1
      %p611 = por %p609, %p610
      %p612 = scmp.ne.s32.totalorder %s603, %s604
      %p613 = scmp.eq.s32.totalorder %s94, 0
      %p614 = por %p612, %p613
      %p615 = scmp.ne.s32.totalorder %s603, %s604
      %p616 = scmp.eq.s32.totalorder %s95, 1
      %p617 = por %p615, %p616
      %p619 = scmp.ne.s32.totalorder %s604, %s618
      %p620 = scmp.eq.s32.totalorder %s95, 0
      %p621 = por %p619, %p620
      %s623 = sadd.s32 %s622, 1
      %p626 = scmp.eq.s32.totalorder %s89, 1
      %p627 = scmp.ne.s32.totalorder %s622, %s624
      %p628 = scmp.eq.s32.totalorder %s89, 0
      %p629 = por %p627, %p628
      %p630 = scmp.ne.s32.totalorder %s622, %s624
      %p631 = scmp.eq.s32.totalorder %s94, 1
      %p632 = por %p630, %p631
      %p633 = scmp.ne.s32.totalorder %s624, %s625
      %p634 = scmp.eq.s32.totalorder %s94, 0
      %p635 = por %p633, %p634
      %p636 = scmp.ne.s32.totalorder %s624, %s625
      %p637 = scmp.eq.s32.totalorder %s95, 1
      %p638 = por %p636, %p637
      %p640 = scmp.ne.s32.totalorder %s625, %s639
      %p641 = scmp.eq.s32.totalorder %s95, 0
      %p642 = por %p640, %p641
      %s644 = sadd.s32 %s643, 1
      %p647 = scmp.eq.s32.totalorder %s89, 1
      %p648 = scmp.ne.s32.totalorder %s643, %s645
      %p649 = scmp.eq.s32.totalorder %s89, 0
      %p650 = por %p648, %p649
      %p651 = scmp.ne.s32.totalorder %s643, %s645
      %p652 = scmp.eq.s32.totalorder %s94, 1
      %p653 = por %p651, %p652
      %p654 = scmp.ne.s32.totalorder %s645, %s646
      %p655 = scmp.eq.s32.totalorder %s94, 0
      %p656 = por %p654, %p655
      %p657 = scmp.ne.s32.totalorder %s645, %s646
      %p658 = scmp.eq.s32.totalorder %s95, 1
      %p659 = por %p657, %p658
      %p661 = scmp.ne.s32.totalorder %s646, %s660
      %p662 = scmp.eq.s32.totalorder %s95, 0
      %p663 = por %p661, %p662
      %s665 = sadd.s32 %s664, 1
      %p668 = scmp.eq.s32.totalorder %s89, 1
      %p669 = scmp.ne.s32.totalorder %s664, %s666
      %p670 = scmp.eq.s32.totalorder %s89, 0
      %p671 = por %p669, %p670
      %p672 = scmp.ne.s32.totalorder %s664, %s666
      %p673 = scmp.eq.s32.totalorder %s94, 1
      %p674 = por %p672, %p673
      %p675 = scmp.ne.s32.totalorder %s666, %s667
      %p676 = scmp.eq.s32.totalorder %s94, 0
      %p677 = por %p675, %p676
      %p678 = scmp.ne.s32.totalorder %s666, %s667
      %p679 = scmp.eq.s32.totalorder %s95, 1
      %p680 = por %p678, %p679
      %p682 = scmp.ne.s32.totalorder %s667, %s681
      %p683 = scmp.eq.s32.totalorder %s95, 0
      %p684 = por %p682, %p683
      %s685 = ssub.s32 %s89, %s96
      %p686 = scmp.eq.s32.totalorder %s685, 0
      %s688 = sadd.s32 %s687, 1
      %s689 = scalar_select %p686, %s687, %s688
      %p692 = pneg %p686
      %p693 = scmp.eq.s32.totalorder %s89, 1
      %p694 = por %p692, %p693
      %p695 = scmp.ne.s32.totalorder %s687, %s690
      %p696 = scmp.eq.s32.totalorder %s89, 0
      %p697 = por %p695, %p696
      %p698 = scmp.ne.s32.totalorder %s687, %s690
      %p699 = scmp.eq.s32.totalorder %s94, 1
      %p700 = por %p698, %p699
      %p701 = scmp.ne.s32.totalorder %s690, %s691
      %p702 = scmp.eq.s32.totalorder %s94, 0
      %p703 = por %p701, %p702
      %p704 = scmp.ne.s32.totalorder %s690, %s691
      %p705 = scmp.eq.s32.totalorder %s95, 1
      %p706 = por %p704, %p705
      %p708 = scmp.ne.s32.totalorder %s691, %s707
      %p709 = scmp.eq.s32.totalorder %s95, 0
      %p710 = por %p708, %p709
      %p711 = scmp.le.s32.totalorder 1, %s89
      %p712 = scmp.lt.s32.totalorder %s89, 3
      %p713 = pnand %p711, %p712
      %p714 = pneg %p713
      // Predicated region
      $region9: #{transformer_forward.1} parent=5 // pred_check
        _
      $region10: #{transformer_forward.1} parent=5 // pred_check_branch
        %716 = sbr.rel (%p713) target = $region12
      $region11: #{transformer_forward.1} parent=5 // pred_region
        %s717 = ssub.s32 %s89, 1
        // Predicated region
        $region13: #{transformer_forward.1} parent=11 // pred_check
          %p718 = pneg %p110
        $region14: #{transformer_forward.1} parent=11 // pred_check_branch
          %720 = sbr.rel (%p718) target = $region16
        $region15: #{transformer_forward.1} parent=11 // pred_region
          %722 = vsyncadd [#allocation7], 0
          %s723 = sshll.u32 %s5, 4
          %s724 = int_to_ptr.hbm [resolvable:$true] %s723
          %s725 = sshll.u32 [#allocation6], 4
          %s726 = int_to_ptr.vmem [resolvable:$true] %s725
          %731 = dma.hbm_to_vmem [thread:$0]  %s724, 1024, %s726, [#allocation7], 16, 16, 1
        $region16: #{transformer_forward.1} parent=11 // pred_fallthru
          _
        // Predicated region
        $region17: #{transformer_forward.1} parent=11 // pred_check
          %p732 = pneg %p131
        $region18: #{transformer_forward.1} parent=11 // pred_check_branch
          %734 = sbr.rel (%p732) target = $region20
        $region19: #{transformer_forward.1} parent=11 // pred_region
          _
        $region20: #{transformer_forward.1} parent=11 // pred_fallthru
          _
        // Predicated region
        $region21: #{transformer_forward.1} parent=11 // pred_check
          %p735 = pneg %p152
        $region22: #{transformer_forward.1} parent=11 // pred_check_branch
          %737 = sbr.rel (%p735) target = $region24
        $region23: #{transformer_forward.1} parent=11 // pred_region
          %739 = vsyncadd [#allocation10], 0
          %s740 = sshll.u32 %s9, 4
          %s741 = int_to_ptr.hbm [resolvable:$true] %s740
          %s742 = sshll.u32 [#allocation9], 4
          %s743 = int_to_ptr.vmem [resolvable:$true] %s742
          %748 = dma.hbm_to_vmem [thread:$0]  %s741, 6144, %s743, [#allocation10], 384, 384, 24
        $region24: #{transformer_forward.1} parent=11 // pred_fallthru
          _
        // Predicated region
        $region25: #{transformer_forward.1} parent=11 // pred_check
          %p749 = pneg %p173
        $region26: #{transformer_forward.1} parent=11 // pred_check_branch
          %751 = sbr.rel (%p749) target = $region28
        $region27: #{transformer_forward.1} parent=11 // pred_region
          _
        $region28: #{transformer_forward.1} parent=11 // pred_fallthru
          _
        // Predicated region
        $region29: #{transformer_forward.1} parent=11 // pred_check
          %p752 = pneg %p194
        $region30: #{transformer_forward.1} parent=11 // pred_check_branch
          %754 = sbr.rel (%p752) target = $region32
        $region31: #{transformer_forward.1} parent=11 // pred_region
          _
        $region32: #{transformer_forward.1} parent=11 // pred_fallthru
          _
        // Predicated region
        $region33: #{transformer_forward.1} parent=11 // pred_check
          %p755 = pneg %p215
        $region34: #{transformer_forward.1} parent=11 // pred_check_branch
          %757 = sbr.rel (%p755) target = $region36
        $region35: #{transformer_forward.1} parent=11 // pred_region
          %759 = vsyncadd [#allocation10], 0
          %s761 = sshll.u32 %s15, 4
          %s762 = int_to_ptr.hbm [resolvable:$true] %s761
          %s763 = sshll.u32 [#allocation11], 4
          %s764 = int_to_ptr.vmem [resolvable:$true] %s763
          %766 = dma.hbm_to_vmem [thread:$0]  %s762, 16, %s764, [#allocation10]
        $region36: #{transformer_forward.1} parent=11 // pred_fallthru
          _
        // Predicated region
        $region37: #{transformer_forward.1} parent=11 // pred_check
          %p767 = pneg %p236
        $region38: #{transformer_forward.1} parent=11 // pred_check_branch
          %769 = sbr.rel (%p767) target = $region40
        $region39: #{transformer_forward.1} parent=11 // pred_region
          _
        $region40: #{transformer_forward.1} parent=11 // pred_fallthru
          _
        // Predicated region
        $region41: #{transformer_forward.1} parent=11 // pred_check
          %p770 = pneg %p257
        $region42: #{transformer_forward.1} parent=11 // pred_check_branch
          %772 = sbr.rel (%p770) target = $region44
        $region43: #{transformer_forward.1} parent=11 // pred_region
          _
        $region44: #{transformer_forward.1} parent=11 // pred_fallthru
          _
        // Predicated region
        $region45: #{transformer_forward.1} parent=11 // pred_check
          %p773 = pneg %p278
        $region46: #{transformer_forward.1} parent=11 // pred_check_branch
          %775 = sbr.rel (%p773) target = $region48
        $region47: #{transformer_forward.1} parent=11 // pred_region
          %777 = vsyncadd [#allocation13], 0
          %s778 = sshll.u32 %s21, 4
          %s779 = int_to_ptr.hbm [resolvable:$true] %s778
          %s780 = sshll.u32 [#allocation12], 4
          %s781 = int_to_ptr.vmem [resolvable:$true] %s780
          %786 = dma.hbm_to_vmem [thread:$0]  %s779, 4096, %s781, [#allocation13], 256, 256, 16
        $region48: #{transformer_forward.1} parent=11 // pred_fallthru
          _
        // Predicated region
        $region49: #{transformer_forward.1} parent=11 // pred_check
          %p787 = pneg %p299
        $region50: #{transformer_forward.1} parent=11 // pred_check_branch
          %789 = sbr.rel (%p787) target = $region52
        $region51: #{transformer_forward.1} parent=11 // pred_region
          _
        $region52: #{transformer_forward.1} parent=11 // pred_fallthru
          _
        // Predicated region
        $region53: #{transformer_forward.1} parent=11 // pred_check
          %p790 = pneg %p320
        $region54: #{transformer_forward.1} parent=11 // pred_check_branch
          %792 = sbr.rel (%p790) target = $region56
        $region55: #{transformer_forward.1} parent=11 // pred_region
          %794 = vsyncadd [#allocation13], 0
          %s795 = sshll.u32 %s25, 4
          %s796 = int_to_ptr.hbm [resolvable:$true] %s795
          %s797 = sshll.u32 [#allocation14], 4
          %s798 = int_to_ptr.vmem [resolvable:$true] %s797
          %803 = dma.hbm_to_vmem [thread:$0]  %s796, 4096, %s798, [#allocation13], 128, 128, 8
        $region56: #{transformer_forward.1} parent=11 // pred_fallthru
          _
        // Predicated region
        $region57: #{transformer_forward.1} parent=11 // pred_check
          %p804 = pneg %p341
        $region58: #{transformer_forward.1} parent=11 // pred_check_branch
          %806 = sbr.rel (%p804) target = $region60
        $region59: #{transformer_forward.1} parent=11 // pred_region
          %808 = vsyncadd [#allocation16], 0
          %s810 = sshll.u32 %s27, 4
          %s811 = int_to_ptr.hbm [resolvable:$true] %s810
          %s812 = sshll.u32 [#allocation15], 4
          %s813 = int_to_ptr.vmem [resolvable:$true] %s812
          %815 = dma.hbm_to_vmem [thread:$0]  %s811, 16, %s813, [#allocation16]
        $region60: #{transformer_forward.1} parent=11 // pred_fallthru
          _
        // Predicated region
        $region61: #{transformer_forward.1} parent=11 // pred_check
          %p816 = pneg %p362
        $region62: #{transformer_forward.1} parent=11 // pred_check_branch
          %818 = sbr.rel (%p816) target = $region64
        $region63: #{transformer_forward.1} parent=11 // pred_region
          _
        $region64: #{transformer_forward.1} parent=11 // pred_fallthru
          _
        // Predicated region
        $region65: #{transformer_forward.1} parent=11 // pred_check
          %p819 = pneg %p383
        $region66: #{transformer_forward.1} parent=11 // pred_check_branch
          %821 = sbr.rel (%p819) target = $region68
        $region67: #{transformer_forward.1} parent=11 // pred_region
          _
        $region68: #{transformer_forward.1} parent=11 // pred_fallthru
          _
        // Predicated region
        $region69: #{transformer_forward.1} parent=11 // pred_check
          %p822 = pneg %p404
        $region70: #{transformer_forward.1} parent=11 // pred_check_branch
          %824 = sbr.rel (%p822) target = $region72
        $region71: #{transformer_forward.1} parent=11 // pred_region
          %826 = vsyncadd [#allocation16], 0
          %s827 = sshll.u32 %s33, 4
          %s828 = int_to_ptr.hbm [resolvable:$true] %s827
          %s829 = sshll.u32 [#allocation17], 4
          %s830 = int_to_ptr.vmem [resolvable:$true] %s829
          %835 = dma.hbm_to_vmem [thread:$0]  %s828, 6144, %s830, [#allocation16], 384, 384, 24
        $region72: #{transformer_forward.1} parent=11 // pred_fallthru
          _
        // Predicated region
        $region73: #{transformer_forward.1} parent=11 // pred_check
          %p836 = pneg %p425
        $region74: #{transformer_forward.1} parent=11 // pred_check_branch
          %838 = sbr.rel (%p836) target = $region76
        $region75: #{transformer_forward.1} parent=11 // pred_region
          _
        $region76: #{transformer_forward.1} parent=11 // pred_fallthru
          _
        // Predicated region
        $region77: #{transformer_forward.1} parent=11 // pred_check
          %p839 = pneg %p446
        $region78: #{transformer_forward.1} parent=11 // pred_check_branch
          %841 = sbr.rel (%p839) target = $region80
        $region79: #{transformer_forward.1} parent=11 // pred_region
          %843 = vsyncadd [#allocation19], 0
          %s844 = sshll.u32 %s37, 4
          %s845 = int_to_ptr.hbm [resolvable:$true] %s844
          %s846 = sshll.u32 [#allocation18], 4
          %s847 = int_to_ptr.vmem [resolvable:$true] %s846
          %852 = dma.hbm_to_vmem [thread:$0]  %s845, 2048, %s847, [#allocation19], 128, 128, 8
        $region80: #{transformer_forward.1} parent=11 // pred_fallthru
          _
        // Predicated region
        $region81: #{transformer_forward.1} parent=11 // pred_check
          %p853 = pneg %p467
        $region82: #{transformer_forward.1} parent=11 // pred_check_branch
          %855 = sbr.rel (%p853) target = $region84
        $region83: #{transformer_forward.1} parent=11 // pred_region
          _
        $region84: #{transformer_forward.1} parent=11 // pred_fallthru
          _
        // Predicated region
        $region85: #{transformer_forward.1} parent=11 // pred_check
          %p856 = pneg %p488
        $region86: #{transformer_forward.1} parent=11 // pred_check_branch
          %858 = sbr.rel (%p856) target = $region88
        $region87: #{transformer_forward.1} parent=11 // pred_region
          _
        $region88: #{transformer_forward.1} parent=11 // pred_fallthru
          _
        // Predicated region
        $region89: #{transformer_forward.1} parent=11 // pred_check
          %p859 = pneg %p509
        $region90: #{transformer_forward.1} parent=11 // pred_check_branch
          %861 = sbr.rel (%p859) target = $region92
        $region91: #{transformer_forward.1} parent=11 // pred_region
          _
        $region92: #{transformer_forward.1} parent=11 // pred_fallthru
          _
        // Predicated region
        $region93: #{transformer_forward.1} parent=11 // pred_check
          %p862 = pneg %p530
        $region94: #{transformer_forward.1} parent=11 // pred_check_branch
          %864 = sbr.rel (%p862) target = $region96
        $region95: #{transformer_forward.1} parent=11 // pred_region
          %866 = vsyncadd [#allocation19], 0
          %s867 = sshll.u32 %s45, 4
          %s868 = int_to_ptr.hbm [resolvable:$true] %s867
          %s869 = sshll.u32 [#allocation20], 4
          %s870 = int_to_ptr.vmem [resolvable:$true] %s869
          %875 = dma.hbm_to_vmem [thread:$0]  %s868, 4096, %s870, [#allocation19], 256, 256, 16
        $region96: #{transformer_forward.1} parent=11 // pred_fallthru
          _
        // Predicated region
        $region97: #{transformer_forward.1} parent=11 // pred_check
          %p876 = pneg %p551
        $region98: #{transformer_forward.1} parent=11 // pred_check_branch
          %878 = sbr.rel (%p876) target = $region100
        $region99: #{transformer_forward.1} parent=11 // pred_region
          _
        $region100: #{transformer_forward.1} parent=11 // pred_fallthru
          _
        // Predicated region
        $region101: #{transformer_forward.1} parent=11 // pred_check
          %p879 = pneg %p572
        $region102: #{transformer_forward.1} parent=11 // pred_check_branch
          %881 = sbr.rel (%p879) target = $region104
        $region103: #{transformer_forward.1} parent=11 // pred_region
          %883 = vsyncadd [#allocation22], 0
          %s884 = sshll.u32 %s49, 4
          %s885 = int_to_ptr.hbm [resolvable:$true] %s884
          %s886 = sshll.u32 [#allocation21], 4
          %s887 = int_to_ptr.vmem [resolvable:$true] %s886
          %892 = dma.hbm_to_vmem [thread:$0]  %s885, 4096, %s887, [#allocation22], 128, 128, 8
        $region104: #{transformer_forward.1} parent=11 // pred_fallthru
          _
        // Predicated region
        $region105: #{transformer_forward.1} parent=11 // pred_check
          %p893 = pneg %p593
        $region106: #{transformer_forward.1} parent=11 // pred_check_branch
          %895 = sbr.rel (%p893) target = $region108
        $region107: #{transformer_forward.1} parent=11 // pred_region
          _
        $region108: #{transformer_forward.1} parent=11 // pred_fallthru
          _
        // Predicated region
        $region109: #{transformer_forward.1} parent=11 // pred_check
          %p896 = pneg %p614
        $region110: #{transformer_forward.1} parent=11 // pred_check_branch
          %898 = sbr.rel (%p896) target = $region112
        $region111: #{transformer_forward.1} parent=11 // pred_region
          _
        $region112: #{transformer_forward.1} parent=11 // pred_fallthru
          _
        // Predicated region
        $region113: #{transformer_forward.1} parent=11 // pred_check
          %p899 = pneg %p635
        $region114: #{transformer_forward.1} parent=11 // pred_check_branch
          %901 = sbr.rel (%p899) target = $region116
        $region115: #{transformer_forward.1} parent=11 // pred_region
          _
        $region116: #{transformer_forward.1} parent=11 // pred_fallthru
          _
        // Predicated region
        $region117: #{transformer_forward.1} parent=11 // pred_check
          %p902 = pneg %p656
        $region118: #{transformer_forward.1} parent=11 // pred_check_branch
          %904 = sbr.rel (%p902) target = $region120
        $region119: #{transformer_forward.1} parent=11 // pred_region
          _
        $region120: #{transformer_forward.1} parent=11 // pred_fallthru
          _
        // Predicated region
        $region121: #{transformer_forward.1} parent=11 // pred_check
          %p905 = pneg %p677
        $region122: #{transformer_forward.1} parent=11 // pred_check_branch
          %907 = sbr.rel (%p905) target = $region124
        $region123: #{transformer_forward.1} parent=11 // pred_region
          _
        $region124: #{transformer_forward.1} parent=11 // pred_fallthru
          _
      $region12: #{transformer_forward.1} parent=5 // pred_fallthru
        _
      %p908 = scmp.lt.s32.totalorder %s89, 2
      // Predicated region
      $region125: #{transformer_forward.1} parent=5 // pred_check
        %p909 = pneg %p908
      $region126: #{transformer_forward.1} parent=5 // pred_check_branch
        %911 = sbr.rel (%p909) target = $region128
      $region127: #{transformer_forward.1} parent=5 // pred_region
        _
      $region128: #{transformer_forward.1} parent=5 // pred_fallthru
        _
      %p912 = scmp.le.s32.totalorder 1, %s89
      %p913 = scmp.lt.s32.totalorder %s89, 3
      %p914 = pnand %p912, %p913
      %p915 = pneg %p914
      // Predicated region
      $region129: #{transformer_forward.1} parent=5 // pred_check
        _
      $region130: #{transformer_forward.1} parent=5 // pred_check_branch
        %917 = sbr.rel (%p914) target = $region132
      $region131: #{transformer_forward.1} parent=5 // pred_region
        %s918 = ssub.s32 %s89, 1
        // Predicated region
        $region133: #{transformer_forward.1} parent=131 // pred_check
          %p919 = pneg %p110
        $region134: #{transformer_forward.1} parent=131 // pred_check_branch
          %921 = sbr.rel (%p919) target = $region136
        $region135: #{transformer_forward.1} parent=131 // pred_region
          %923 = dma.done [#allocation7], 1024
        $region136: #{transformer_forward.1} parent=131 // pred_fallthru
          _
        // Predicated region
        $region137: #{transformer_forward.1} parent=131 // pred_check
          %p924 = pneg %p152
        $region138: #{transformer_forward.1} parent=131 // pred_check_branch
          %926 = sbr.rel (%p924) target = $region140
        $region139: #{transformer_forward.1} parent=131 // pred_region
          %928 = dma.done [#allocation10], 6144
        $region140: #{transformer_forward.1} parent=131 // pred_fallthru
          _
        // Predicated region
        $region141: #{transformer_forward.1} parent=131 // pred_check
          %p929 = pneg %p215
        $region142: #{transformer_forward.1} parent=131 // pred_check_branch
          %931 = sbr.rel (%p929) target = $region144
        $region143: #{transformer_forward.1} parent=131 // pred_region
          %933 = dma.done [#allocation10], 16
        $region144: #{transformer_forward.1} parent=131 // pred_fallthru
          _
        // Predicated region
        $region145: #{transformer_forward.1} parent=131 // pred_check
          %p934 = pneg %p278
        $region146: #{transformer_forward.1} parent=131 // pred_check_branch
          %936 = sbr.rel (%p934) target = $region148
        $region147: #{transformer_forward.1} parent=131 // pred_region
          %938 = dma.done [#allocation13], 4096
        $region148: #{transformer_forward.1} parent=131 // pred_fallthru
          _
        // Predicated region
        $region149: #{transformer_forward.1} parent=131 // pred_check
          %p939 = pneg %p320
        $region150: #{transformer_forward.1} parent=131 // pred_check_branch
          %941 = sbr.rel (%p939) target = $region152
        $region151: #{transformer_forward.1} parent=131 // pred_region
          %943 = dma.done [#allocation13], 4096
        $region152: #{transformer_forward.1} parent=131 // pred_fallthru
          _
        // Predicated region
        $region153: #{transformer_forward.1} parent=131 // pred_check
          %p944 = pneg %p341
        $region154: #{transformer_forward.1} parent=131 // pred_check_branch
          %946 = sbr.rel (%p944) target = $region156
        $region155: #{transformer_forward.1} parent=131 // pred_region
          %948 = dma.done [#allocation16], 16
        $region156: #{transformer_forward.1} parent=131 // pred_fallthru
          _
        // Predicated region
        $region157: #{transformer_forward.1} parent=131 // pred_check
          %p949 = pneg %p404
        $region158: #{transformer_forward.1} parent=131 // pred_check_branch
          %951 = sbr.rel (%p949) target = $region160
        $region159: #{transformer_forward.1} parent=131 // pred_region
          %953 = dma.done [#allocation16], 6144
        $region160: #{transformer_forward.1} parent=131 // pred_fallthru
          _
        // Predicated region
        $region161: #{transformer_forward.1} parent=131 // pred_check
          %p954 = pneg %p446
        $region162: #{transformer_forward.1} parent=131 // pred_check_branch
          %956 = sbr.rel (%p954) target = $region164
        $region163: #{transformer_forward.1} parent=131 // pred_region
          %958 = dma.done [#allocation19], 2048
        $region164: #{transformer_forward.1} parent=131 // pred_fallthru
          _
        // Predicated region
        $region165: #{transformer_forward.1} parent=131 // pred_check
          %p959 = pneg %p530
        $region166: #{transformer_forward.1} parent=131 // pred_check_branch
          %961 = sbr.rel (%p959) target = $region168
        $region167: #{transformer_forward.1} parent=131 // pred_region
          %963 = dma.done [#allocation19], 4096
        $region168: #{transformer_forward.1} parent=131 // pred_fallthru
          _
        // Predicated region
        $region169: #{transformer_forward.1} parent=131 // pred_check
          %p964 = pneg %p572
        $region170: #{transformer_forward.1} parent=131 // pred_check_branch
          %966 = sbr.rel (%p964) target = $region172
        $region171: #{transformer_forward.1} parent=131 // pred_region
          %968 = dma.done [#allocation22], 4096
        $region172: #{transformer_forward.1} parent=131 // pred_fallthru
          _
        %p969 = pneg %p110
        %p970 = pneg %p107
        %p971 = pneg %p131
        %p972 = pneg %p128
        %p973 = pneg %p152
        %p974 = pneg %p149
        %p975 = pneg %p173
        %p976 = pneg %p170
        %p977 = pneg %p194
        %p978 = pneg %p191
        %p979 = pneg %p215
        %p980 = pneg %p212
        %p981 = pneg %p236
        %p982 = pneg %p233
        %p983 = pneg %p257
        %p984 = pneg %p254
        %p985 = pneg %p278
        %p986 = pneg %p275
        %p987 = pneg %p299
        %p988 = pneg %p296
        %p989 = pneg %p320
        %p990 = pneg %p317
        %p991 = pneg %p341
        %p992 = pneg %p338
        %p993 = pneg %p362
        %p994 = pneg %p359
        %p995 = pneg %p383
        %p996 = pneg %p380
        %p997 = pneg %p404
        %p998 = pneg %p401
        %p999 = pneg %p425
        %p1000 = pneg %p422
        %p1001 = pneg %p446
        %p1002 = pneg %p443
        %p1003 = pneg %p467
        %p1004 = pneg %p464
        %p1005 = pneg %p488
        %p1006 = pneg %p485
        %p1007 = pneg %p509
        %p1008 = pneg %p506
        %p1009 = pneg %p530
        %p1010 = pneg %p527
        %p1011 = pneg %p551
        %p1012 = pneg %p548
        %p1013 = pneg %p572
        %p1014 = pneg %p569
        %p1015 = pneg %p593
        %p1016 = pneg %p590
        %p1017 = pneg %p614
        %p1018 = pneg %p611
        %p1019 = pneg %p635
        %p1020 = pneg %p632
        %p1021 = pneg %p656
        %p1022 = pneg %p653
        %p1023 = pneg %p677
        %p1024 = pneg %p674
        %p1025 = pneg %p703
        %p1026 = pneg %p700
        %s1027 = sand.u32 %s690, 1
        %s1028 = scalar_lea.sflag [#allocation8], %s1027
        %s1029 = sand.u32 %s690, 1
        %s1030 = scalar_lea.vmem [#allocation23], %s1029
        %s1031 = smul.u32 %s94, 128
        %s1032 = sld [smem:[#allocation4 + %s1031]]
        %s1033 = scalar_lea.vmem [#allocation6], %s1032
        %v1034 = vld [vmem:[%s1033] sm:$0x1]
        %v1035 = vld [vmem:[%s7] sm:$0x1]
        %v1036 = vadd.f32 %v1034, %v1035
        %1037 = vst [vmem:[#allocation2] sm:$0x1] %v1036
        %s1038 = sadd.s32 %s1031, 1
        %s1039 = sld [smem:[#allocation4 + %s1038]]
        %s1040 = scalar_lea.vmem [#allocation6], %s1039
        %v1041 = vld [vmem:[%s1040] sm:$0x1]
        %v1042 = vld [vmem:[%s7 + $0x1] sm:$0x1]
        %v1043 = vadd.f32 %v1041, %v1042
        %1044 = vst [vmem:[#allocation2 + $0x1] sm:$0x1] %v1043
        %s1045 = sadd.s32 %s1031, 2
        %s1046 = sld [smem:[#allocation4 + %s1045]]
        %s1047 = scalar_lea.vmem [#allocation6], %s1046
        %v1048 = vld [vmem:[%s1047] sm:$0x1]
        %v1049 = vld [vmem:[%s7 + $0x2] sm:$0x1]
        %v1050 = vadd.f32 %v1048, %v1049
        %1051 = vst [vmem:[#allocation2 + $0x2] sm:$0x1] %v1050
        %s1052 = sadd.s32 %s1031, 3
        %s1053 = sld [smem:[#allocation4 + %s1052]]
        %s1054 = scalar_lea.vmem [#allocation6], %s1053
        %v1055 = vld [vmem:[%s1054] sm:$0x1]
        %v1056 = vld [vmem:[%s7 + $0x3] sm:$0x1]
        %v1057 = vadd.f32 %v1055, %v1056
        %1058 = vst [vmem:[#allocation2 + $0x3] sm:$0x1] %v1057
        %s1059 = sadd.s32 %s1031, 4
        %s1060 = sld [smem:[#allocation4 + %s1059]]
        %s1061 = scalar_lea.vmem [#allocation6], %s1060
        %v1062 = vld [vmem:[%s1061] sm:$0x1]
        %v1063 = vld [vmem:[%s7 + $0x4] sm:$0x1]
        %v1064 = vadd.f32 %v1062, %v1063
        %1065 = vst [vmem:[#allocation2 + $0x4] sm:$0x1] %v1064
        %s1066 = sadd.s32 %s1031, 5
        %s1067 = sld [smem:[#allocation4 + %s1066]]
        %s1068 = scalar_lea.vmem [#allocation6], %s1067
        %v1069 = vld [vmem:[%s1068] sm:$0x1]
        %v1070 = vld [vmem:[%s7 + $0x5] sm:$0x1]
        %v1071 = vadd.f32 %v1069, %v1070
        %1072 = vst [vmem:[#allocation2 + $0x5] sm:$0x1] %v1071
        %s1073 = sadd.s32 %s1031, 6
        %s1074 = sld [smem:[#allocation4 + %s1073]]
        %s1075 = scalar_lea.vmem [#allocation6], %s1074
        %v1076 = vld [vmem:[%s1075] sm:$0x1]
        %v1077 = vld [vmem:[%s7 + $0x6] sm:$0x1]
        %v1078 = vadd.f32 %v1076, %v1077
        %1079 = vst [vmem:[#allocation2 + $0x6] sm:$0x1] %v1078
        %s1080 = sadd.s32 %s1031, 7
        %s1081 = sld [smem:[#allocation4 + %s1080]]
        %s1082 = scalar_lea.vmem [#allocation6], %s1081
        %v1083 = vld [vmem:[%s1082] sm:$0x1]
        %v1084 = vld [vmem:[%s7 + $0x7] sm:$0x1]
        %v1085 = vadd.f32 %v1083, %v1084
        %1086 = vst [vmem:[#allocation2 + $0x7] sm:$0x1] %v1085
        %v1087 = vld [vmem:[#allocation2] sm:$0xff]
        %v1088 = vlaneseq
        %v1089 = vand.u32 %v1088, 127
        %s1090 = sld [smem:[#allocation5 + %s94]]
        %v1091 = vstv %s1090
        %vm1092 = vcmp.lt.s32.totalorder %v1089, %v1091
        %v1093 = vsel %vm1092, 0.0, -1e+09
        %v1094 = vld [vmem:[#allocation9] sm:$0xff]
        %v1095 = vld [vmem:[#allocation9 + $0x8] sm:$0xff]
        %v1096 = vld [vmem:[#allocation9 + $0x10] sm:$0xff]
        %v1097 = vld [vmem:[#allocation9 + $0x18] sm:$0xff]
        %v1098 = vld [vmem:[#allocation9 + $0x20] sm:$0xff]
        %v1099 = vld [vmem:[#allocation9 + $0x28] sm:$0xff]
        %v1100 = vld [vmem:[#allocation9 + $0x30] sm:$0xff]
        %v1101 = vld [vmem:[#allocation9 + $0x38] sm:$0xff]
        %v1102 = vld [vmem:[#allocation9 + $0x40] sm:$0xff]
        %v1103 = vld [vmem:[#allocation9 + $0x48] sm:$0xff]
        %v1104 = vld [vmem:[#allocation9 + $0x50] sm:$0xff]
        %v1105 = vld [vmem:[#allocation9 + $0x58] sm:$0xff]
        %v1106 = vld [vmem:[#allocation9 + $0x60] sm:$0xff]
        %v1107 = vld [vmem:[#allocation9 + $0x68] sm:$0xff]
        %v1108 = vld [vmem:[#allocation9 + $0x70] sm:$0xff]
        %v1109 = vld [vmem:[#allocation9 + $0x78] sm:$0xff]
        %v1110 = vld [vmem:[#allocation9 + $0x80] sm:$0xff]
        %v1111 = vld [vmem:[#allocation9 + $0x88] sm:$0xff]
        %v1112 = vld [vmem:[#allocation9 + $0x90] sm:$0xff]
        %v1113 = vld [vmem:[#allocation9 + $0x98] sm:$0xff]
        %v1114 = vld [vmem:[#allocation9 + $0xa0] sm:$0xff]
        %v1115 = vld [vmem:[#allocation9 + $0xa8] sm:$0xff]
        %v1116 = vld [vmem:[#allocation9 + $0xb0] sm:$0xff]
        %v1117 = vld [vmem:[#allocation9 + $0xb8] sm:$0xff]
        %v1118 = vld [vmem:[#allocation9 + $0xc0] sm:$0xff]
        %v1119 = vld [vmem:[#allocation9 + $0xc8] sm:$0xff]
        %v1120 = vld [vmem:[#allocation9 + $0xd0] sm:$0xff]
        %v1121 = vld [vmem:[#allocation9 + $0xd8] sm:$0xff]
        %v1122 = vld [vmem:[#allocation9 + $0xe0] sm:$0xff]
        %v1123 = vld [vmem:[#allocation9 + $0xe8] sm:$0xff]
        %v1124 = vld [vmem:[#allocation9 + $0xf0] sm:$0xff]
        %v1125 = vld [vmem:[#allocation9 + $0xf8] sm:$0xff]
        %v1126 = vld [vmem:[#allocation9 + $0x100] sm:$0xff]
        %v1127 = vld [vmem:[#allocation9 + $0x108] sm:$0xff]
        %v1128 = vld [vmem:[#allocation9 + $0x110] sm:$0xff]
        %v1129 = vld [vmem:[#allocation9 + $0x118] sm:$0xff]
        %v1130 = vld [vmem:[#allocation9 + $0x120] sm:$0xff]
        %v1131 = vld [vmem:[#allocation9 + $0x128] sm:$0xff]
        %v1132 = vld [vmem:[#allocation9 + $0x130] sm:$0xff]
        %v1133 = vld [vmem:[#allocation9 + $0x138] sm:$0xff]
        %v1134 = vld [vmem:[#allocation9 + $0x140] sm:$0xff]
        %v1135 = vld [vmem:[#allocation9 + $0x148] sm:$0xff]
        %v1136 = vld [vmem:[#allocation9 + $0x150] sm:$0xff]
        %v1137 = vld [vmem:[#allocation9 + $0x158] sm:$0xff]
        %v1138 = vld [vmem:[#allocation9 + $0x160] sm:$0xff]
        %v1139 = vld [vmem:[#allocation9 + $0x168] sm:$0xff]
        %v1140 = vld [vmem:[#allocation9 + $0x170] sm:$0xff]
        %v1141 = vld [vmem:[#allocation9 + $0x178] sm:$0xff]
        %v1142 = vld [vmem:[%s11] sm:$0x7]
        %v1143 = vld [vmem:[%s13] sm:$0xff]
        %v1144 = vld [vmem:[%s13 + $0x8] sm:$0xff]
        %v1145 = vld [vmem:[%s13 + $0x10] sm:$0xff]
        %v1146 = vld [vmem:[%s13 + $0x18] sm:$0xff]
        %v1147 = vld [vmem:[%s13 + $0x20] sm:$0xff]
        %v1148 = vld [vmem:[%s13 + $0x28] sm:$0xff]
        %v1149 = vld [vmem:[%s13 + $0x30] sm:$0xff]
        %v1150 = vld [vmem:[%s13 + $0x38] sm:$0xff]
        %v1151 = vld [vmem:[%s13 + $0x40] sm:$0xff]
        %v1152 = vld [vmem:[%s13 + $0x48] sm:$0xff]
        %v1153 = vld [vmem:[%s13 + $0x50] sm:$0xff]
        %v1154 = vld [vmem:[%s13 + $0x58] sm:$0xff]
        %v1155 = vld [vmem:[%s13 + $0x60] sm:$0xff]
        %v1156 = vld [vmem:[%s13 + $0x68] sm:$0xff]
        %v1157 = vld [vmem:[%s13 + $0x70] sm:$0xff]
        %v1158 = vld [vmem:[%s13 + $0x78] sm:$0xff]
        %v1159 = vld [vmem:[#allocation11] sm:$0x1]
        %v1160 = vld [vmem:[%s17] sm:$0x1]
        %v1161 = vld [vmem:[%s19] sm:$0x1]
        %v1162 = vld [vmem:[#allocation12] sm:$0xff]
        %v1163 = vld [vmem:[#allocation12 + $0x8] sm:$0xff]
        %v1164 = vld [vmem:[#allocation12 + $0x10] sm:$0xff]
        %v1165 = vld [vmem:[#allocation12 + $0x18] sm:$0xff]
        %v1166 = vld [vmem:[#allocation12 + $0x20] sm:$0xff]
        %v1167 = vld [vmem:[#allocation12 + $0x28] sm:$0xff]
        %v1168 = vld [vmem:[#allocation12 + $0x30] sm:$0xff]
        %v1169 = vld [vmem:[#allocation12 + $0x38] sm:$0xff]
        %v1170 = vld [vmem:[#allocation12 + $0x40] sm:$0xff]
        %v1171 = vld [vmem:[#allocation12 + $0x48] sm:$0xff]
        %v1172 = vld [vmem:[#allocation12 + $0x50] sm:$0xff]
        %v1173 = vld [vmem:[#allocation12 + $0x58] sm:$0xff]
        %v1174 = vld [vmem:[#allocation12 + $0x60] sm:$0xff]
        %v1175 = vld [vmem:[#allocation12 + $0x68] sm:$0xff]
        %v1176 = vld [vmem:[#allocation12 + $0x70] sm:$0xff]
        %v1177 = vld [vmem:[#allocation12 + $0x78] sm:$0xff]
        %v1178 = vld [vmem:[#allocation12 + $0x80] sm:$0xff]
        %v1179 = vld [vmem:[#allocation12 + $0x88] sm:$0xff]
        %v1180 = vld [vmem:[#allocation12 + $0x90] sm:$0xff]
        %v1181 = vld [vmem:[#allocation12 + $0x98] sm:$0xff]
        %v1182 = vld [vmem:[#allocation12 + $0xa0] sm:$0xff]
        %v1183 = vld [vmem:[#allocation12 + $0xa8] sm:$0xff]
        %v1184 = vld [vmem:[#allocation12 + $0xb0] sm:$0xff]
        %v1185 = vld [vmem:[#allocation12 + $0xb8] sm:$0xff]
        %v1186 = vld [vmem:[#allocation12 + $0xc0] sm:$0xff]
        %v1187 = vld [vmem:[#allocation12 + $0xc8] sm:$0xff]
        %v1188 = vld [vmem:[#allocation12 + $0xd0] sm:$0xff]
        %v1189 = vld [vmem:[#allocation12 + $0xd8] sm:$0xff]
        %v1190 = vld [vmem:[#allocation12 + $0xe0] sm:$0xff]
        %v1191 = vld [vmem:[#allocation12 + $0xe8] sm:$0xff]
        %v1192 = vld [vmem:[#allocation12 + $0xf0] sm:$0xff]
        %v1193 = vld [vmem:[#allocation12 + $0xf8] sm:$0xff]
        %v1194 = vld [vmem:[%s23] sm:$0x3]
        %v1195 = vld [vmem:[#allocation14] sm:$0xff]
        %v1196 = vld [vmem:[#allocation14 + $0x8] sm:$0xff]
        %v1197 = vld [vmem:[#allocation14 + $0x10] sm:$0xff]
        %v1198 = vld [vmem:[#allocation14 + $0x18] sm:$0xff]
        %v1199 = vld [vmem:[#allocation14 + $0x20] sm:$0xff]
        %v1200 = vld [vmem:[#allocation14 + $0x28] sm:$0xff]
        %v1201 = vld [vmem:[#allocation14 + $0x30] sm:$0xff]
        %v1202 = vld [vmem:[#allocation14 + $0x38] sm:$0xff]
        %v1203 = vld [vmem:[#allocation14 + $0x40] sm:$0xff]
        %v1204 = vld [vmem:[#allocation14 + $0x48] sm:$0xff]
        %v1205 = vld [vmem:[#allocation14 + $0x50] sm:$0xff]
        %v1206 = vld [vmem:[#allocation14 + $0x58] sm:$0xff]
        %v1207 = vld [vmem:[#allocation14 + $0x60] sm:$0xff]
        %v1208 = vld [vmem:[#allocation14 + $0x68] sm:$0xff]
        %v1209 = vld [vmem:[#allocation14 + $0x70] sm:$0xff]
        %v1210 = vld [vmem:[#allocation14 + $0x78] sm:$0xff]
        %v1211 = vld [vmem:[#allocation14 + $0x80] sm:$0xff]
        %v1212 = vld [vmem:[#allocation14 + $0x88] sm:$0xff]
        %v1213 = vld [vmem:[#allocation14 + $0x90] sm:$0xff]
        %v1214 = vld [vmem:[#allocation14 + $0x98] sm:$0xff]
        %v1215 = vld [vmem:[#allocation14 + $0xa0] sm:$0xff]
        %v1216 = vld [vmem:[#allocation14 + $0xa8] sm:$0xff]
        %v1217 = vld [vmem:[#allocation14 + $0xb0] sm:$0xff]
        %v1218 = vld [vmem:[#allocation14 + $0xb8] sm:$0xff]
        %v1219 = vld [vmem:[#allocation14 + $0xc0] sm:$0xff]
        %v1220 = vld [vmem:[#allocation14 + $0xc8] sm:$0xff]
        %v1221 = vld [vmem:[#allocation14 + $0xd0] sm:$0xff]
        %v1222 = vld [vmem:[#allocation14 + $0xd8] sm:$0xff]
        %v1223 = vld [vmem:[#allocation14 + $0xe0] sm:$0xff]
        %v1224 = vld [vmem:[#allocation14 + $0xe8] sm:$0xff]
        %v1225 = vld [vmem:[#allocation14 + $0xf0] sm:$0xff]
        %v1226 = vld [vmem:[#allocation14 + $0xf8] sm:$0xff]
        %v1227 = vld [vmem:[#allocation15] sm:$0x1]
        %v1228 = vld [vmem:[%s29] sm:$0x1]
        %v1229 = vld [vmem:[%s31] sm:$0x1]
        %v1231 = vperm.slane %v1142, 0
        %v1232 = vperm.slane %v1142, 1
        %v1233 = vperm.slane %v1142, 2
        %1237 = vmatpush.msra.mxu0 %v1139
        %1238 = vmatpush.msra.mxu0 %v1136
        %1239 = vmatpush.msra.mxu0 %v1133
        %1240 = vmatpush.msra.mxu0 %v1130
        %1241 = vmatpush.msra.mxu0 %v1127
        %1242 = vmatpush.msra.mxu0 %v1124
        %1243 = vmatpush.msra.mxu0 %v1121
        %1244 = vmatpush.msra.mxu0 %v1118
        %1245 = vmatpush.msra.mxu0 %v1115
        %1246 = vmatpush.msra.mxu0 %v1112
        %1247 = vmatpush.msra.mxu0 %v1109
        %1248 = vmatpush.msra.mxu0 %v1106
        %1249 = vmatpush.msra.mxu0 %v1103
        %1250 = vmatpush.msra.mxu0 %v1100
        %1251 = vmatpush.msra.mxu0 %v1097
        %1252 = vmatpush.msra.mxu0 %v1094
        %1253 = vmatmul.f32.gmra.mxu0 %v1087
        %v1254 = vpop.f32.mrf.mxu0
        %v1255 = vadd.f32 %v1231, %v1254
        %1256 = vdwg.mxu0
        %1257 = vmatpush.msra.mxu0 %v1140
        %1258 = vmatpush.msra.mxu0 %v1137
        %1259 = vmatpush.msra.mxu0 %v1134
        %1260 = vmatpush.msra.mxu0 %v1131
        %1261 = vmatpush.msra.mxu0 %v1128
        %1262 = vmatpush.msra.mxu0 %v1125
        %1263 = vmatpush.msra.mxu0 %v1122
        %1264 = vmatpush.msra.mxu0 %v1119
        %1265 = vmatpush.msra.mxu0 %v1116
        %1266 = vmatpush.msra.mxu0 %v1113
        %1267 = vmatpush.msra.mxu0 %v1110
        %1268 = vmatpush.msra.mxu0 %v1107
        %1269 = vmatpush.msra.mxu0 %v1104
        %1270 = vmatpush.msra.mxu0 %v1101
        %1271 = vmatpush.msra.mxu0 %v1098
        %1272 = vmatpush.msra.mxu0 %v1095
        %1273 = vmatmul.f32.gmra.mxu0 %v1087
        %v1274 = vpop.f32.mrf.mxu0
        %v1275 = vadd.f32 %v1232, %v1274
        %1276 = vdwg.mxu0
        %1277 = vmatpush.msra.mxu0 %v1141
        %1278 = vmatpush.msra.mxu0 %v1138
        %1279 = vmatpush.msra.mxu0 %v1135
        %1280 = vmatpush.msra.mxu0 %v1132
        %1281 = vmatpush.msra.mxu0 %v1129
        %1282 = vmatpush.msra.mxu0 %v1126
        %1283 = vmatpush.msra.mxu0 %v1123
        %1284 = vmatpush.msra.mxu0 %v1120
        %1285 = vmatpush.msra.mxu0 %v1117
        %1286 = vmatpush.msra.mxu0 %v1114
        %1287 = vmatpush.msra.mxu0 %v1111
        %1288 = vmatpush.msra.mxu0 %v1108
        %1289 = vmatpush.msra.mxu0 %v1105
        %1290 = vmatpush.msra.mxu0 %v1102
        %1291 = vmatpush.msra.mxu0 %v1099
        %1292 = vmatpush.msra.mxu0 %v1096
        %1293 = vmatmul.f32.gmra.mxu0 %v1087
        %v1294 = vpop.f32.mrf.mxu0
        %v1295 = vadd.f32 %v1233, %v1294
        %1296 = vdwg.mxu0
        %v1297 = vmul.f32 %v1255, 0.125
        %vm1298 = vcmask 523264
        %v1300 = vsel %vm1298, %v1297, 0
        %v1303 = vsel %vm1298, %v1275, 0
        %1305 = vmatpush.xpose.msra.mxu0 0.0
        %1306 = vmatpush.xpose.msra.mxu0 0.0
        %1307 = vmatpush.xpose.msra.mxu0 0.0
        %1308 = vmatpush.xpose.msra.mxu0 0.0
        %1309 = vmatpush.xpose.msra.mxu0 0.0
        %1310 = vmatpush.xpose.msra.mxu0 0.0
        %1311 = vmatpush.xpose.msra.mxu0 0.0
        %1312 = vmatpush.xpose.msra.mxu0 0.0
        %1313 = vmatpush.xpose.msra.mxu0 0.0
        %1314 = vmatpush.xpose.msra.mxu0 0.0
        %1315 = vmatpush.xpose.msra.mxu0 0.0
        %1316 = vmatpush.xpose.msra.mxu0 0.0
        %1317 = vmatpush.xpose.msra.mxu0 0.0
        %1318 = vmatpush.xpose.msra.mxu0 0.0
        %1319 = vmatpush.xpose.msra.mxu0 0.0
        %1320 = vmatpush.xpose.msra.mxu0 %v1303
        %1321 = vmatmul.f32.gmra.mxu0 %v1300
        %v1322 = vpop.f32.mrf.mxu0
        %v1323 = vadd.f32 %v1093, %v1322
        %1324 = vdwg.mxu0
        %vm1325 = vcmask 64512
        %v1326 = vsel %vm1325, %v1323, -inf
        %1327 = vmax.xlane.f32.xlu0 %v1326
        %v1328 = vpop.xlane.xlu0 %1327
        %v1329 = vsub.f32 %v1323, %v1328
        %v1330 = vmul.f32 %v1329, 1.442695
        %v1331 = vpow.pop %v1330
        %v1332 = vsel %vm1325, %v1331, 0.0
        %1333 = vadd.xlane.f32.xlu0 %v1332
        %v1334 = vpop.xlane.xlu0 %1333
        %v1335 = vrcp.pop %v1334
        %v1336 = vmul.f32 %v1334, %v1335
        %v1337 = vsub.f32 1.0, %v1336
        %v1338 = vmul.f32 %v1335, %v1337
        %v1339 = vadd.f32 %v1335, %v1338
        %vm1340 = vweird.f32 %v1334
        %vm1341 = vweird.f32 %v1335
        %vm1342 = vmor %vm1340, %vm1341
        %v1343 = vsel %vm1342, %v1335, %v1339
        %v1344 = vand.u32 2147483647, %v1334
        %vm1345 = vcmp.eq.f32.partialorder %v1344, 8.507059e+37
        %v1346 = vand.u32 %v1334, 2147483648
        %v1347 = vor.u32 1.1754944e-38, %v1346
        %v1348 = vsel %vm1345, %v1347, %v1343
        %v1349 = vmul.f32 %v1331, %v1348
        %v1351 = vsel %vm1325, %v1349, 0
        %1353 = vmatpush.msra.mxu0 0.0
        %1354 = vmatpush.msra.mxu0 0.0
        %1355 = vmatpush.msra.mxu0 0.0
        %1356 = vmatpush.msra.mxu0 0.0
        %1357 = vmatpush.msra.mxu0 0.0
        %1358 = vmatpush.msra.mxu0 0.0
        %1359 = vmatpush.msra.mxu0 0.0
        %1360 = vmatpush.msra.mxu0 0.0
        %1361 = vmatpush.msra.mxu0 0.0
        %1362 = vmatpush.msra.mxu0 0.0
        %1363 = vmatpush.msra.mxu0 0.0
        %1364 = vmatpush.msra.mxu0 0.0
        %1365 = vmatpush.msra.mxu0 0.0
        %1366 = vmatpush.msra.mxu0 0.0
        %1367 = vmatpush.msra.mxu0 0.0
        %1368 = vmatpush.msra.mxu0 %v1295
        %1369 = vmatmul.f32.gmra.mxu0 %v1351
        %v1370 = vpop.f32.mrf.mxu0
        %v1371 = vadd.f32 0.0, %v1370
        %1372 = vdwg.mxu0
        %1373 = vrot.lane.b32.xlu0 %v1297, 64
        %v1374 = vpop.permute.xlu0 %1373
        %1375 = vrot.lane.b32.xlu0 %v1275, 64
        %v1376 = vpop.permute.xlu0 %1375
        %v1377 = vsel %vm1298, %v1374, 0
        %v1379 = vsel %vm1298, %v1376, 0
        %1381 = vmatpush.xpose.msra.mxu0 0.0
        %1382 = vmatpush.xpose.msra.mxu0 0.0
        %1383 = vmatpush.xpose.msra.mxu0 0.0
        %1384 = vmatpush.xpose.msra.mxu0 0.0
        %1385 = vmatpush.xpose.msra.mxu0 0.0
        %1386 = vmatpush.xpose.msra.mxu0 0.0
        %1387 = vmatpush.xpose.msra.mxu0 0.0
        %1388 = vmatpush.xpose.msra.mxu0 0.0
        %1389 = vmatpush.xpose.msra.mxu0 0.0
        %1390 = vmatpush.xpose.msra.mxu0 0.0
        %1391 = vmatpush.xpose.msra.mxu0 0.0
        %1392 = vmatpush.xpose.msra.mxu0 0.0
        %1393 = vmatpush.xpose.msra.mxu0 0.0
        %1394 = vmatpush.xpose.msra.mxu0 0.0
        %1395 = vmatpush.xpose.msra.mxu0 0.0
        %1396 = vmatpush.xpose.msra.mxu0 %v1379
        %1397 = vmatmul.f32.gmra.mxu0 %v1377
        %v1398 = vpop.f32.mrf.mxu0
        %v1399 = vadd.f32 %v1093, %v1398
        %1400 = vdwg.mxu0
        %v1401 = vsel %vm1325, %v1399, -inf
        %1402 = vmax.xlane.f32.xlu0 %v1401
        %v1403 = vpop.xlane.xlu0 %1402
        %v1404 = vsub.f32 %v1399, %v1403
        %v1405 = vmul.f32 %v1404, 1.442695
        %v1406 = vpow.pop %v1405
        %v1407 = vsel %vm1325, %v1406, 0.0
        %1408 = vadd.xlane.f32.xlu0 %v1407
        %v1409 = vpop.xlane.xlu0 %1408
        %v1410 = vrcp.pop %v1409
        %v1411 = vmul.f32 %v1409, %v1410
        %v1412 = vsub.f32 1.0, %v1411
        %v1413 = vmul.f32 %v1410, %v1412
        %v1414 = vadd.f32 %v1410, %v1413
        %vm1415 = vweird.f32 %v1409
        %vm1416 = vweird.f32 %v1410
        %vm1417 = vmor %vm1415, %vm1416
        %v1418 = vsel %vm1417, %v1410, %v1414
        %v1419 = vand.u32 2147483647, %v1409
        %vm1420 = vcmp.eq.f32.partialorder %v1419, 8.507059e+37
        %v1421 = vand.u32 %v1409, 2147483648
        %v1422 = vor.u32 1.1754944e-38, %v1421
        %v1423 = vsel %vm1420, %v1422, %v1418
        %v1424 = vmul.f32 %v1406, %v1423
        %1426 = vrot.lane.b32.xlu0 %v1295, 64
        %v1427 = vpop.permute.xlu0 %1426
        %v1430 = vsel %vm1325, %v1424, 0
        %1432 = vmatpush.msra.mxu0 0.0
        %1433 = vmatpush.msra.mxu0 0.0
        %1434 = vmatpush.msra.mxu0 0.0
        %1435 = vmatpush.msra.mxu0 0.0
        %1436 = vmatpush.msra.mxu0 0.0
        %1437 = vmatpush.msra.mxu0 0.0
        %1438 = vmatpush.msra.mxu0 0.0
        %1439 = vmatpush.msra.mxu0 0.0
        %1440 = vmatpush.msra.mxu0 0.0
        %1441 = vmatpush.msra.mxu0 0.0
        %1442 = vmatpush.msra.mxu0 0.0
        %1443 = vmatpush.msra.mxu0 0.0
        %1444 = vmatpush.msra.mxu0 0.0
        %1445 = vmatpush.msra.mxu0 0.0
        %1446 = vmatpush.msra.mxu0 0.0
        %1447 = vmatpush.msra.mxu0 %v1427
        %1448 = vmatmul.f32.gmra.mxu0 %v1430
        %v1449 = vpop.f32.mrf.mxu0
        %v1450 = vadd.f32 0.0, %v1449
        %1451 = vdwg.mxu0
        %v1453 = vsel %vm1298, %v1450, 0
        %1455 = vmatpush.msra.mxu0 0.0
        %1456 = vmatpush.msra.mxu0 0.0
        %1457 = vmatpush.msra.mxu0 0.0
        %1458 = vmatpush.msra.mxu0 0.0
        %1459 = vmatpush.msra.mxu0 0.0
        %1460 = vmatpush.msra.mxu0 0.0
        %1461 = vmatpush.msra.mxu0 0.0
        %1462 = vmatpush.msra.mxu0 0.0
        %1463 = vmatpush.msra.mxu0 %v1158
        %1464 = vmatpush.msra.mxu0 %v1157
        %1465 = vmatpush.msra.mxu0 %v1156
        %1466 = vmatpush.msra.mxu0 %v1155
        %1467 = vmatpush.msra.mxu0 %v1154
        %1468 = vmatpush.msra.mxu0 %v1153
        %1469 = vmatpush.msra.mxu0 %v1152
        %1470 = vmatpush.msra.mxu0 %v1151
        %1471 = vmatmul.f32.gmra.mxu0 %v1453
        %v1472 = vpop.f32.mrf.mxu0
        %v1473 = vadd.f32 0.0, %v1472
        %1474 = vdwg.mxu0
        %v1476 = vsel %vm1298, %v1371, 0
        %1478 = vmatpush.msra.mxu0 0.0
        %1479 = vmatpush.msra.mxu0 0.0
        %1480 = vmatpush.msra.mxu0 0.0
        %1481 = vmatpush.msra.mxu0 0.0
        %1482 = vmatpush.msra.mxu0 0.0
        %1483 = vmatpush.msra.mxu0 0.0
        %1484 = vmatpush.msra.mxu0 0.0
        %1485 = vmatpush.msra.mxu0 0.0
        %1486 = vmatpush.msra.mxu0 %v1150
        %1487 = vmatpush.msra.mxu0 %v1149
        %1488 = vmatpush.msra.mxu0 %v1148
        %1489 = vmatpush.msra.mxu0 %v1147
        %1490 = vmatpush.msra.mxu0 %v1146
        %1491 = vmatpush.msra.mxu0 %v1145
        %1492 = vmatpush.msra.mxu0 %v1144
        %1493 = vmatpush.msra.mxu0 %v1143
        %1494 = vmatmul.f32.gmra.mxu0 %v1476
        %v1495 = vpop.f32.mrf.mxu0
        %v1496 = vadd.f32 %v1473, %v1495
        %1497 = vdwg.mxu0
        %v1499 = vperm.slane %v1159, 0
        %v1501 = vadd.f32 %v1496, %v1499
        %v1502 = vadd.f32 %v1087, %v1501
        %1503 = vadd.xlane.f32.xlu0 %v1502
        %v1504 = vpop.xlane.xlu0 %1503
        %v1505 = vrcp.pop 128.0
        %v1506 = vmul.f32 128.0, %v1505
        %v1507 = vsub.f32 1.0, %v1506
        %v1508 = vmul.f32 %v1505, %v1507
        %v1509 = vadd.f32 %v1505, %v1508
        %vm1510 = vweird.f32 %v1505
        %v1511 = vsel %vm1510, %v1505, %v1509
        %v1512 = vmul.f32 %v1504, %v1511
        %v1513 = vsub.f32 %v1502, %v1512
        %v1514 = vmul.f32 %v1513, %v1513
        %1515 = vadd.xlane.f32.xlu0 %v1514
        %v1516 = vpop.xlane.xlu0 %1515
        %v1517 = vmul.f32 %v1516, %v1511
        %v1518 = vadd.f32 %v1517, 1e-05
        %v1519 = vrsqrt.pop %v1518
        %v1520 = vmul.f32 %v1519, %v1518
        %v1521 = vmul.f32 %v1520, %v1519
        %v1522 = vmul.f32 0.5, %v1521
        %v1523 = vsub.f32 1.5, %v1522
        %v1524 = vmul.f32 %v1519, %v1523
        %vm1525 = vweird.f32 %v1518
        %vm1526 = vweird.f32 %v1519
        %vm1527 = vmor %vm1525, %vm1526
        %v1528 = vsel %vm1527, %v1519, %v1524
        %v1529 = vmul.f32 %v1513, %v1528
        %v1531 = vperm.slane %v1160, 0
        %v1533 = vmul.f32 %v1529, %v1531
        %v1535 = vperm.slane %v1161, 0
        %v1537 = vadd.f32 %v1533, %v1535
        %v1539 = vperm.slane %v1194, 0
        %v1540 = vperm.slane %v1194, 1
        %1543 = vmatpush.msra.mxu0 %v1192
        %1544 = vmatpush.msra.mxu0 %v1190
        %1545 = vmatpush.msra.mxu0 %v1188
        %1546 = vmatpush.msra.mxu0 %v1186
        %1547 = vmatpush.msra.mxu0 %v1184
        %1548 = vmatpush.msra.mxu0 %v1182
        %1549 = vmatpush.msra.mxu0 %v1180
        %1550 = vmatpush.msra.mxu0 %v1178
        %1551 = vmatpush.msra.mxu0 %v1176
        %1552 = vmatpush.msra.mxu0 %v1174
        %1553 = vmatpush.msra.mxu0 %v1172
        %1554 = vmatpush.msra.mxu0 %v1170
        %1555 = vmatpush.msra.mxu0 %v1168
        %1556 = vmatpush.msra.mxu0 %v1166
        %1557 = vmatpush.msra.mxu0 %v1164
        %1558 = vmatpush.msra.mxu0 %v1162
        %1559 = vmatmul.f32.gmra.mxu0 %v1537
        %v1560 = vpop.f32.mrf.mxu0
        %v1561 = vadd.f32 %v1539, %v1560
        %1562 = vdwg.mxu0
        %1563 = vmatpush.msra.mxu0 %v1193
        %1564 = vmatpush.msra.mxu0 %v1191
        %1565 = vmatpush.msra.mxu0 %v1189
        %1566 = vmatpush.msra.mxu0 %v1187
        %1567 = vmatpush.msra.mxu0 %v1185
        %1568 = vmatpush.msra.mxu0 %v1183
        %1569 = vmatpush.msra.mxu0 %v1181
        %1570 = vmatpush.msra.mxu0 %v1179
        %1571 = vmatpush.msra.mxu0 %v1177
        %1572 = vmatpush.msra.mxu0 %v1175
        %1573 = vmatpush.msra.mxu0 %v1173
        %1574 = vmatpush.msra.mxu0 %v1171
        %1575 = vmatpush.msra.mxu0 %v1169
        %1576 = vmatpush.msra.mxu0 %v1167
        %1577 = vmatpush.msra.mxu0 %v1165
        %1578 = vmatpush.msra.mxu0 %v1163
        %1579 = vmatmul.f32.gmra.mxu0 %v1537
        %v1580 = vpop.f32.mrf.mxu0
        %v1581 = vadd.f32 %v1540, %v1580
        %1582 = vdwg.mxu0
        %v1583 = vmax.f32 %v1561, 0.0
        %v1584 = vmax.f32 %v1581, 0.0
        %v1586 = vperm.slane %v1227, 0
        %1588 = vmatpush.msra.mxu0 %v1210
        %1589 = vmatpush.msra.mxu0 %v1209
        %1590 = vmatpush.msra.mxu0 %v1208
        %1591 = vmatpush.msra.mxu0 %v1207
        %1592 = vmatpush.msra.mxu0 %v1206
        %1593 = vmatpush.msra.mxu0 %v1205
        %1594 = vmatpush.msra.mxu0 %v1204
        %1595 = vmatpush.msra.mxu0 %v1203
        %1596 = vmatpush.msra.mxu0 %v1202
        %1597 = vmatpush.msra.mxu0 %v1201
        %1598 = vmatpush.msra.mxu0 %v1200
        %1599 = vmatpush.msra.mxu0 %v1199
        %1600 = vmatpush.msra.mxu0 %v1198
        %1601 = vmatpush.msra.mxu0 %v1197
        %1602 = vmatpush.msra.mxu0 %v1196
        %1603 = vmatpush.msra.mxu0 %v1195
        %1604 = vmatmul.f32.gmra.mxu0 %v1583
        %v1605 = vpop.f32.mrf.mxu0
        %v1606 = vadd.f32 %v1586, %v1605
        %1607 = vdwg.mxu0
        %1608 = vmatpush.msra.mxu0 %v1226
        %1609 = vmatpush.msra.mxu0 %v1225
        %1610 = vmatpush.msra.mxu0 %v1224
        %1611 = vmatpush.msra.mxu0 %v1223
        %1612 = vmatpush.msra.mxu0 %v1222
        %1613 = vmatpush.msra.mxu0 %v1221
        %1614 = vmatpush.msra.mxu0 %v1220
        %1615 = vmatpush.msra.mxu0 %v1219
        %1616 = vmatpush.msra.mxu0 %v1218
        %1617 = vmatpush.msra.mxu0 %v1217
        %1618 = vmatpush.msra.mxu0 %v1216
        %1619 = vmatpush.msra.mxu0 %v1215
        %1620 = vmatpush.msra.mxu0 %v1214
        %1621 = vmatpush.msra.mxu0 %v1213
        %1622 = vmatpush.msra.mxu0 %v1212
        %1623 = vmatpush.msra.mxu0 %v1211
        %1624 = vmatmul.f32.gmra.mxu0 %v1584
        %v1625 = vpop.f32.mrf.mxu0
        %v1626 = vadd.f32 %v1606, %v1625
        %1627 = vdwg.mxu0
        %v1628 = vadd.f32 %v1537, %v1626
        %1629 = vadd.xlane.f32.xlu0 %v1628
        %v1630 = vpop.xlane.xlu0 %1629
        %v1631 = vmul.f32 %v1630, %v1511
        %v1632 = vsub.f32 %v1628, %v1631
        %v1633 = vmul.f32 %v1632, %v1632
        %1634 = vadd.xlane.f32.xlu0 %v1633
        %v1635 = vpop.xlane.xlu0 %1634
        %v1636 = vmul.f32 %v1635, %v1511
        %v1637 = vadd.f32 %v1636, 1e-05
        %v1638 = vrsqrt.pop %v1637
        %v1639 = vmul.f32 %v1638, %v1637
        %v1640 = vmul.f32 %v1639, %v1638
        %v1641 = vmul.f32 0.5, %v1640
        %v1642 = vsub.f32 1.5, %v1641
        %v1643 = vmul.f32 %v1638, %v1642
        %vm1644 = vweird.f32 %v1637
        %vm1645 = vweird.f32 %v1638
        %vm1646 = vmor %vm1644, %vm1645
        %v1647 = vsel %vm1646, %v1638, %v1643
        %v1648 = vmul.f32 %v1632, %v1647
        %v1650 = vperm.slane %v1228, 0
        %v1652 = vmul.f32 %v1648, %v1650
        %v1654 = vperm.slane %v1229, 0
        %v1656 = vadd.f32 %v1652, %v1654
        %v1657 = vld [vmem:[#allocation17] sm:$0xff]
        %v1658 = vld [vmem:[#allocation17 + $0x8] sm:$0xff]
        %v1659 = vld [vmem:[#allocation17 + $0x10] sm:$0xff]
        %v1660 = vld [vmem:[#allocation17 + $0x18] sm:$0xff]
        %v1661 = vld [vmem:[#allocation17 + $0x20] sm:$0xff]
        %v1662 = vld [vmem:[#allocation17 + $0x28] sm:$0xff]
        %v1663 = vld [vmem:[#allocation17 + $0x30] sm:$0xff]
        %v1664 = vld [vmem:[#allocation17 + $0x38] sm:$0xff]
        %v1665 = vld [vmem:[#allocation17 + $0x40] sm:$0xff]
        %v1666 = vld [vmem:[#allocation17 + $0x48] sm:$0xff]
        %v1667 = vld [vmem:[#allocation17 + $0x50] sm:$0xff]
        %v1668 = vld [vmem:[#allocation17 + $0x58] sm:$0xff]
        %v1669 = vld [vmem:[#allocation17 + $0x60] sm:$0xff]
        %v1670 = vld [vmem:[#allocation17 + $0x68] sm:$0xff]
        %v1671 = vld [vmem:[#allocation17 + $0x70] sm:$0xff]
        %v1672 = vld [vmem:[#allocation17 + $0x78] sm:$0xff]
        %v1673 = vld [vmem:[#allocation17 + $0x80] sm:$0xff]
        %v1674 = vld [vmem:[#allocation17 + $0x88] sm:$0xff]
        %v1675 = vld [vmem:[#allocation17 + $0x90] sm:$0xff]
        %v1676 = vld [vmem:[#allocation17 + $0x98] sm:$0xff]
        %v1677 = vld [vmem:[#allocation17 + $0xa0] sm:$0xff]
        %v1678 = vld [vmem:[#allocation17 + $0xa8] sm:$0xff]
        %v1679 = vld [vmem:[#allocation17 + $0xb0] sm:$0xff]
        %v1680 = vld [vmem:[#allocation17 + $0xb8] sm:$0xff]
        %v1681 = vld [vmem:[#allocation17 + $0xc0] sm:$0xff]
        %v1682 = vld [vmem:[#allocation17 + $0xc8] sm:$0xff]
        %v1683 = vld [vmem:[#allocation17 + $0xd0] sm:$0xff]
        %v1684 = vld [vmem:[#allocation17 + $0xd8] sm:$0xff]
        %v1685 = vld [vmem:[#allocation17 + $0xe0] sm:$0xff]
        %v1686 = vld [vmem:[#allocation17 + $0xe8] sm:$0xff]
        %v1687 = vld [vmem:[#allocation17 + $0xf0] sm:$0xff]
        %v1688 = vld [vmem:[#allocation17 + $0xf8] sm:$0xff]
        %v1689 = vld [vmem:[#allocation17 + $0x100] sm:$0xff]
        %v1690 = vld [vmem:[#allocation17 + $0x108] sm:$0xff]
        %v1691 = vld [vmem:[#allocation17 + $0x110] sm:$0xff]
        %v1692 = vld [vmem:[#allocation17 + $0x118] sm:$0xff]
        %v1693 = vld [vmem:[#allocation17 + $0x120] sm:$0xff]
        %v1694 = vld [vmem:[#allocation17 + $0x128] sm:$0xff]
        %v1695 = vld [vmem:[#allocation17 + $0x130] sm:$0xff]
        %v1696 = vld [vmem:[#allocation17 + $0x138] sm:$0xff]
        %v1697 = vld [vmem:[#allocation17 + $0x140] sm:$0xff]
        %v1698 = vld [vmem:[#allocation17 + $0x148] sm:$0xff]
        %v1699 = vld [vmem:[#allocation17 + $0x150] sm:$0xff]
        %v1700 = vld [vmem:[#allocation17 + $0x158] sm:$0xff]
        %v1701 = vld [vmem:[#allocation17 + $0x160] sm:$0xff]
        %v1702 = vld [vmem:[#allocation17 + $0x168] sm:$0xff]
        %v1703 = vld [vmem:[#allocation17 + $0x170] sm:$0xff]
        %v1704 = vld [vmem:[#allocation17 + $0x178] sm:$0xff]
        %v1705 = vld [vmem:[%s35] sm:$0x7]
        %v1706 = vld [vmem:[#allocation18] sm:$0xff]
        %v1707 = vld [vmem:[#allocation18 + $0x8] sm:$0xff]
        %v1708 = vld [vmem:[#allocation18 + $0x10] sm:$0xff]
        %v1709 = vld [vmem:[#allocation18 + $0x18] sm:$0xff]
        %v1710 = vld [vmem:[#allocation18 + $0x20] sm:$0xff]
        %v1711 = vld [vmem:[#allocation18 + $0x28] sm:$0xff]
        %v1712 = vld [vmem:[#allocation18 + $0x30] sm:$0xff]
        %v1713 = vld [vmem:[#allocation18 + $0x38] sm:$0xff]
        %v1714 = vld [vmem:[#allocation18 + $0x40] sm:$0xff]
        %v1715 = vld [vmem:[#allocation18 + $0x48] sm:$0xff]
        %v1716 = vld [vmem:[#allocation18 + $0x50] sm:$0xff]
        %v1717 = vld [vmem:[#allocation18 + $0x58] sm:$0xff]
        %v1718 = vld [vmem:[#allocation18 + $0x60] sm:$0xff]
        %v1719 = vld [vmem:[#allocation18 + $0x68] sm:$0xff]
        %v1720 = vld [vmem:[#allocation18 + $0x70] sm:$0xff]
        %v1721 = vld [vmem:[#allocation18 + $0x78] sm:$0xff]
        %v1722 = vld [vmem:[%s39] sm:$0x1]
        %v1723 = vld [vmem:[%s41] sm:$0x1]
        %v1724 = vld [vmem:[%s43] sm:$0x1]
        %v1725 = vld [vmem:[#allocation20] sm:$0xff]
        %v1726 = vld [vmem:[#allocation20 + $0x8] sm:$0xff]
        %v1727 = vld [vmem:[#allocation20 + $0x10] sm:$0xff]
        %v1728 = vld [vmem:[#allocation20 + $0x18] sm:$0xff]
        %v1729 = vld [vmem:[#allocation20 + $0x20] sm:$0xff]
        %v1730 = vld [vmem:[#allocation20 + $0x28] sm:$0xff]
        %v1731 = vld [vmem:[#allocation20 + $0x30] sm:$0xff]
        %v1732 = vld [vmem:[#allocation20 + $0x38] sm:$0xff]
        %v1733 = vld [vmem:[#allocation20 + $0x40] sm:$0xff]
        %v1734 = vld [vmem:[#allocation20 + $0x48] sm:$0xff]
        %v1735 = vld [vmem:[#allocation20 + $0x50] sm:$0xff]
        %v1736 = vld [vmem:[#allocation20 + $0x58] sm:$0xff]
        %v1737 = vld [vmem:[#allocation20 + $0x60] sm:$0xff]
        %v1738 = vld [vmem:[#allocation20 + $0x68] sm:$0xff]
        %v1739 = vld [vmem:[#allocation20 + $0x70] sm:$0xff]
        %v1740 = vld [vmem:[#allocation20 + $0x78] sm:$0xff]
        %v1741 = vld [vmem:[#allocation20 + $0x80] sm:$0xff]
        %v1742 = vld [vmem:[#allocation20 + $0x88] sm:$0xff]
        %v1743 = vld [vmem:[#allocation20 + $0x90] sm:$0xff]
        %v1744 = vld [vmem:[#allocation20 + $0x98] sm:$0xff]
        %v1745 = vld [vmem:[#allocation20 + $0xa0] sm:$0xff]
        %v1746 = vld [vmem:[#allocation20 + $0xa8] sm:$0xff]
        %v1747 = vld [vmem:[#allocation20 + $0xb0] sm:$0xff]
        %v1748 = vld [vmem:[#allocation20 + $0xb8] sm:$0xff]
        %v1749 = vld [vmem:[#allocation20 + $0xc0] sm:$0xff]
        %v1750 = vld [vmem:[#allocation20 + $0xc8] sm:$0xff]
        %v1751 = vld [vmem:[#allocation20 + $0xd0] sm:$0xff]
        %v1752 = vld [vmem:[#allocation20 + $0xd8] sm:$0xff]
        %v1753 = vld [vmem:[#allocation20 + $0xe0] sm:$0xff]
        %v1754 = vld [vmem:[#allocation20 + $0xe8] sm:$0xff]
        %v1755 = vld [vmem:[#allocation20 + $0xf0] sm:$0xff]
        %v1756 = vld [vmem:[#allocation20 + $0xf8] sm:$0xff]
        %v1757 = vld [vmem:[%s47] sm:$0x3]
        %v1758 = vld [vmem:[#allocation21] sm:$0xff]
        %v1759 = vld [vmem:[#allocation21 + $0x8] sm:$0xff]
        %v1760 = vld [vmem:[#allocation21 + $0x10] sm:$0xff]
        %v1761 = vld [vmem:[#allocation21 + $0x18] sm:$0xff]
        %v1762 = vld [vmem:[#allocation21 + $0x20] sm:$0xff]
        %v1763 = vld [vmem:[#allocation21 + $0x28] sm:$0xff]
        %v1764 = vld [vmem:[#allocation21 + $0x30] sm:$0xff]
        %v1765 = vld [vmem:[#allocation21 + $0x38] sm:$0xff]
        %v1766 = vld [vmem:[#allocation21 + $0x40] sm:$0xff]
        %v1767 = vld [vmem:[#allocation21 + $0x48] sm:$0xff]
        %v1768 = vld [vmem:[#allocation21 + $0x50] sm:$0xff]
        %v1769 = vld [vmem:[#allocation21 + $0x58] sm:$0xff]
        %v1770 = vld [vmem:[#allocation21 + $0x60] sm:$0xff]
        %v1771 = vld [vmem:[#allocation21 + $0x68] sm:$0xff]
        %v1772 = vld [vmem:[#allocation21 + $0x70] sm:$0xff]
        %v1773 = vld [vmem:[#allocation21 + $0x78] sm:$0xff]
        %v1774 = vld [vmem:[#allocation21 + $0x80] sm:$0xff]
        %v1775 = vld [vmem:[#allocation21 + $0x88] sm:$0xff]
        %v1776 = vld [vmem:[#allocation21 + $0x90] sm:$0xff]
        %v1777 = vld [vmem:[#allocation21 + $0x98] sm:$0xff]
        %v1778 = vld [vmem:[#allocation21 + $0xa0] sm:$0xff]
        %v1779 = vld [vmem:[#allocation21 + $0xa8] sm:$0xff]
        %v1780 = vld [vmem:[#allocation21 + $0xb0] sm:$0xff]
        %v1781 = vld [vmem:[#allocation21 + $0xb8] sm:$0xff]
        %v1782 = vld [vmem:[#allocation21 + $0xc0] sm:$0xff]
        %v1783 = vld [vmem:[#allocation21 + $0xc8] sm:$0xff]
        %v1784 = vld [vmem:[#allocation21 + $0xd0] sm:$0xff]
        %v1785 = vld [vmem:[#allocation21 + $0xd8] sm:$0xff]
        %v1786 = vld [vmem:[#allocation21 + $0xe0] sm:$0xff]
        %v1787 = vld [vmem:[#allocation21 + $0xe8] sm:$0xff]
        %v1788 = vld [vmem:[#allocation21 + $0xf0] sm:$0xff]
        %v1789 = vld [vmem:[#allocation21 + $0xf8] sm:$0xff]
        %v1790 = vld [vmem:[%s51] sm:$0x1]
        %v1791 = vld [vmem:[%s53] sm:$0x1]
        %v1792 = vld [vmem:[%s55] sm:$0x1]
        %v1794 = vperm.slane %v1705, 0
        %v1795 = vperm.slane %v1705, 1
        %v1796 = vperm.slane %v1705, 2
        %1800 = vmatpush.msra.mxu0 %v1702
        %1801 = vmatpush.msra.mxu0 %v1699
        %1802 = vmatpush.msra.mxu0 %v1696
        %1803 = vmatpush.msra.mxu0 %v1693
        %1804 = vmatpush.msra.mxu0 %v1690
        %1805 = vmatpush.msra.mxu0 %v1687
        %1806 = vmatpush.msra.mxu0 %v1684
        %1807 = vmatpush.msra.mxu0 %v1681
        %1808 = vmatpush.msra.mxu0 %v1678
        %1809 = vmatpush.msra.mxu0 %v1675
        %1810 = vmatpush.msra.mxu0 %v1672
        %1811 = vmatpush.msra.mxu0 %v1669
        %1812 = vmatpush.msra.mxu0 %v1666
        %1813 = vmatpush.msra.mxu0 %v1663
        %1814 = vmatpush.msra.mxu0 %v1660
        %1815 = vmatpush.msra.mxu0 %v1657
        %1816 = vmatmul.f32.gmra.mxu0 %v1656
        %v1817 = vpop.f32.mrf.mxu0
        %v1818 = vadd.f32 %v1794, %v1817
        %1819 = vdwg.mxu0
        %1820 = vmatpush.msra.mxu0 %v1703
        %1821 = vmatpush.msra.mxu0 %v1700
        %1822 = vmatpush.msra.mxu0 %v1697
        %1823 = vmatpush.msra.mxu0 %v1694
        %1824 = vmatpush.msra.mxu0 %v1691
        %1825 = vmatpush.msra.mxu0 %v1688
        %1826 = vmatpush.msra.mxu0 %v1685
        %1827 = vmatpush.msra.mxu0 %v1682
        %1828 = vmatpush.msra.mxu0 %v1679
        %1829 = vmatpush.msra.mxu0 %v1676
        %1830 = vmatpush.msra.mxu0 %v1673
        %1831 = vmatpush.msra.mxu0 %v1670
        %1832 = vmatpush.msra.mxu0 %v1667
        %1833 = vmatpush.msra.mxu0 %v1664
        %1834 = vmatpush.msra.mxu0 %v1661
        %1835 = vmatpush.msra.mxu0 %v1658
        %1836 = vmatmul.f32.gmra.mxu0 %v1656
        %v1837 = vpop.f32.mrf.mxu0
        %v1838 = vadd.f32 %v1795, %v1837
        %1839 = vdwg.mxu0
        %1840 = vmatpush.msra.mxu0 %v1704
        %1841 = vmatpush.msra.mxu0 %v1701
        %1842 = vmatpush.msra.mxu0 %v1698
        %1843 = vmatpush.msra.mxu0 %v1695
        %1844 = vmatpush.msra.mxu0 %v1692
        %1845 = vmatpush.msra.mxu0 %v1689
        %1846 = vmatpush.msra.mxu0 %v1686
        %1847 = vmatpush.msra.mxu0 %v1683
        %1848 = vmatpush.msra.mxu0 %v1680
        %1849 = vmatpush.msra.mxu0 %v1677
        %1850 = vmatpush.msra.mxu0 %v1674
        %1851 = vmatpush.msra.mxu0 %v1671
        %1852 = vmatpush.msra.mxu0 %v1668
        %1853 = vmatpush.msra.mxu0 %v1665
        %1854 = vmatpush.msra.mxu0 %v1662
        %1855 = vmatpush.msra.mxu0 %v1659
        %1856 = vmatmul.f32.gmra.mxu0 %v1656
        %v1857 = vpop.f32.mrf.mxu0
        %v1858 = vadd.f32 %v1796, %v1857
        %1859 = vdwg.mxu0
        %v1860 = vmul.f32 %v1818, 0.125
        %v1862 = vsel %vm1298, %v1860, 0
        %v1865 = vsel %vm1298, %v1838, 0
        %1867 = vmatpush.xpose.msra.mxu0 0.0
        %1868 = vmatpush.xpose.msra.mxu0 0.0
        %1869 = vmatpush.xpose.msra.mxu0 0.0
        %1870 = vmatpush.xpose.msra.mxu0 0.0
        %1871 = vmatpush.xpose.msra.mxu0 0.0
        %1872 = vmatpush.xpose.msra.mxu0 0.0
        %1873 = vmatpush.xpose.msra.mxu0 0.0
        %1874 = vmatpush.xpose.msra.mxu0 0.0
        %1875 = vmatpush.xpose.msra.mxu0 0.0
        %1876 = vmatpush.xpose.msra.mxu0 0.0
        %1877 = vmatpush.xpose.msra.mxu0 0.0
        %1878 = vmatpush.xpose.msra.mxu0 0.0
        %1879 = vmatpush.xpose.msra.mxu0 0.0
        %1880 = vmatpush.xpose.msra.mxu0 0.0
        %1881 = vmatpush.xpose.msra.mxu0 0.0
        %1882 = vmatpush.xpose.msra.mxu0 %v1865
        %1883 = vmatmul.f32.gmra.mxu0 %v1862
        %v1884 = vpop.f32.mrf.mxu0
        %v1885 = vadd.f32 %v1093, %v1884
        %1886 = vdwg.mxu0
        %v1887 = vsel %vm1325, %v1885, -inf
        %1888 = vmax.xlane.f32.xlu0 %v1887
        %v1889 = vpop.xlane.xlu0 %1888
        %v1890 = vsub.f32 %v1885, %v1889
        %v1891 = vmul.f32 %v1890, 1.442695
        %v1892 = vpow.pop %v1891
        %v1893 = vsel %vm1325, %v1892, 0.0
        %1894 = vadd.xlane.f32.xlu0 %v1893
        %v1895 = vpop.xlane.xlu0 %1894
        %v1896 = vrcp.pop %v1895
        %v1897 = vmul.f32 %v1895, %v1896
        %v1898 = vsub.f32 1.0, %v1897
        %v1899 = vmul.f32 %v1896, %v1898
        %v1900 = vadd.f32 %v1896, %v1899
        %vm1901 = vweird.f32 %v1895
        %vm1902 = vweird.f32 %v1896
        %vm1903 = vmor %vm1901, %vm1902
        %v1904 = vsel %vm1903, %v1896, %v1900
        %v1905 = vand.u32 2147483647, %v1895
        %vm1906 = vcmp.eq.f32.partialorder %v1905, 8.507059e+37
        %v1907 = vand.u32 %v1895, 2147483648
        %v1908 = vor.u32 1.1754944e-38, %v1907
        %v1909 = vsel %vm1906, %v1908, %v1904
        %v1910 = vmul.f32 %v1892, %v1909
        %v1912 = vsel %vm1325, %v1910, 0
        %1914 = vmatpush.msra.mxu0 0.0
        %1915 = vmatpush.msra.mxu0 0.0
        %1916 = vmatpush.msra.mxu0 0.0
        %1917 = vmatpush.msra.mxu0 0.0
        %1918 = vmatpush.msra.mxu0 0.0
        %1919 = vmatpush.msra.mxu0 0.0
        %1920 = vmatpush.msra.mxu0 0.0
        %1921 = vmatpush.msra.mxu0 0.0
        %1922 = vmatpush.msra.mxu0 0.0
        %1923 = vmatpush.msra.mxu0 0.0
        %1924 = vmatpush.msra.mxu0 0.0
        %1925 = vmatpush.msra.mxu0 0.0
        %1926 = vmatpush.msra.mxu0 0.0
        %1927 = vmatpush.msra.mxu0 0.0
        %1928 = vmatpush.msra.mxu0 0.0
        %1929 = vmatpush.msra.mxu0 %v1858
        %1930 = vmatmul.f32.gmra.mxu0 %v1912
        %v1931 = vpop.f32.mrf.mxu0
        %v1932 = vadd.f32 0.0, %v1931
        %1933 = vdwg.mxu0
        %1934 = vrot.lane.b32.xlu0 %v1860, 64
        %v1935 = vpop.permute.xlu0 %1934
        %1936 = vrot.lane.b32.xlu0 %v1838, 64
        %v1937 = vpop.permute.xlu0 %1936
        %v1938 = vsel %vm1298, %v1935, 0
        %v1940 = vsel %vm1298, %v1937, 0
        %1942 = vmatpush.xpose.msra.mxu0 0.0
        %1943 = vmatpush.xpose.msra.mxu0 0.0
        %1944 = vmatpush.xpose.msra.mxu0 0.0
        %1945 = vmatpush.xpose.msra.mxu0 0.0
        %1946 = vmatpush.xpose.msra.mxu0 0.0
        %1947 = vmatpush.xpose.msra.mxu0 0.0
        %1948 = vmatpush.xpose.msra.mxu0 0.0
        %1949 = vmatpush.xpose.msra.mxu0 0.0
        %1950 = vmatpush.xpose.msra.mxu0 0.0
        %1951 = vmatpush.xpose.msra.mxu0 0.0
        %1952 = vmatpush.xpose.msra.mxu0 0.0
        %1953 = vmatpush.xpose.msra.mxu0 0.0
        %1954 = vmatpush.xpose.msra.mxu0 0.0
        %1955 = vmatpush.xpose.msra.mxu0 0.0
        %1956 = vmatpush.xpose.msra.mxu0 0.0
        %1957 = vmatpush.xpose.msra.mxu0 %v1940
        %1958 = vmatmul.f32.gmra.mxu0 %v1938
        %v1959 = vpop.f32.mrf.mxu0
        %v1960 = vadd.f32 %v1093, %v1959
        %1961 = vdwg.mxu0
        %v1962 = vsel %vm1325, %v1960, -inf
        %1963 = vmax.xlane.f32.xlu0 %v1962
        %v1964 = vpop.xlane.xlu0 %1963
        %v1965 = vsub.f32 %v1960, %v1964
        %v1966 = vmul.f32 %v1965, 1.442695
        %v1967 = vpow.pop %v1966
        %v1968 = vsel %vm1325, %v1967, 0.0
        %1969 = vadd.xlane.f32.xlu0 %v1968
        %v1970 = vpop.xlane.xlu0 %1969
        %v1971 = vrcp.pop %v1970
        %v1972 = vmul.f32 %v1970, %v1971
        %v1973 = vsub.f32 1.0, %v1972
        %v1974 = vmul.f32 %v1971, %v1973
        %v1975 = vadd.f32 %v1971, %v1974
        %vm1976 = vweird.f32 %v1970
        %vm1977 = vweird.f32 %v1971
        %vm1978 = vmor %vm1976, %vm1977
        %v1979 = vsel %vm1978, %v1971, %v1975
        %v1980 = vand.u32 2147483647, %v1970
        %vm1981 = vcmp.eq.f32.partialorder %v1980, 8.507059e+37
        %v1982 = vand.u32 %v1970, 2147483648
        %v1983 = vor.u32 1.1754944e-38, %v1982
        %v1984 = vsel %vm1981, %v1983, %v1979
        %v1985 = vmul.f32 %v1967, %v1984
        %1987 = vrot.lane.b32.xlu0 %v1858, 64
        %v1988 = vpop.permute.xlu0 %1987
        %v1991 = vsel %vm1325, %v1985, 0
        %1993 = vmatpush.msra.mxu0 0.0
        %1994 = vmatpush.msra.mxu0 0.0
        %1995 = vmatpush.msra.mxu0 0.0
        %1996 = vmatpush.msra.mxu0 0.0
        %1997 = vmatpush.msra.mxu0 0.0
        %1998 = vmatpush.msra.mxu0 0.0
        %1999 = vmatpush.msra.mxu0 0.0
        %2000 = vmatpush.msra.mxu0 0.0
        %2001 = vmatpush.msra.mxu0 0.0
        %2002 = vmatpush.msra.mxu0 0.0
        %2003 = vmatpush.msra.mxu0 0.0
        %2004 = vmatpush.msra.mxu0 0.0
        %2005 = vmatpush.msra.mxu0 0.0
        %2006 = vmatpush.msra.mxu0 0.0
        %2007 = vmatpush.msra.mxu0 0.0
        %2008 = vmatpush.msra.mxu0 %v1988
        %2009 = vmatmul.f32.gmra.mxu0 %v1991
        %v2010 = vpop.f32.mrf.mxu0
        %v2011 = vadd.f32 0.0, %v2010
        %2012 = vdwg.mxu0
        %v2014 = vsel %vm1298, %v2011, 0
        %2016 = vmatpush.msra.mxu0 0.0
        %2017 = vmatpush.msra.mxu0 0.0
        %2018 = vmatpush.msra.mxu0 0.0
        %2019 = vmatpush.msra.mxu0 0.0
        %2020 = vmatpush.msra.mxu0 0.0
        %2021 = vmatpush.msra.mxu0 0.0
        %2022 = vmatpush.msra.mxu0 0.0
        %2023 = vmatpush.msra.mxu0 0.0
        %2024 = vmatpush.msra.mxu0 %v1721
        %2025 = vmatpush.msra.mxu0 %v1720
        %2026 = vmatpush.msra.mxu0 %v1719
        %2027 = vmatpush.msra.mxu0 %v1718
        %2028 = vmatpush.msra.mxu0 %v1717
        %2029 = vmatpush.msra.mxu0 %v1716
        %2030 = vmatpush.msra.mxu0 %v1715
        %2031 = vmatpush.msra.mxu0 %v1714
        %2032 = vmatmul.f32.gmra.mxu0 %v2014
        %v2033 = vpop.f32.mrf.mxu0
        %v2034 = vadd.f32 0.0, %v2033
        %2035 = vdwg.mxu0
        %v2037 = vsel %vm1298, %v1932, 0
        %2039 = vmatpush.msra.mxu0 0.0
        %2040 = vmatpush.msra.mxu0 0.0
        %2041 = vmatpush.msra.mxu0 0.0
        %2042 = vmatpush.msra.mxu0 0.0
        %2043 = vmatpush.msra.mxu0 0.0
        %2044 = vmatpush.msra.mxu0 0.0
        %2045 = vmatpush.msra.mxu0 0.0
        %2046 = vmatpush.msra.mxu0 0.0
        %2047 = vmatpush.msra.mxu0 %v1713
        %2048 = vmatpush.msra.mxu0 %v1712
        %2049 = vmatpush.msra.mxu0 %v1711
        %2050 = vmatpush.msra.mxu0 %v1710
        %2051 = vmatpush.msra.mxu0 %v1709
        %2052 = vmatpush.msra.mxu0 %v1708
        %2053 = vmatpush.msra.mxu0 %v1707
        %2054 = vmatpush.msra.mxu0 %v1706
        %2055 = vmatmul.f32.gmra.mxu0 %v2037
        %v2056 = vpop.f32.mrf.mxu0
        %v2057 = vadd.f32 %v2034, %v2056
        %2058 = vdwg.mxu0
        %v2060 = vperm.slane %v1722, 0
        %v2062 = vadd.f32 %v2057, %v2060
        %v2063 = vadd.f32 %v1656, %v2062
        %2064 = vadd.xlane.f32.xlu0 %v2063
        %v2065 = vpop.xlane.xlu0 %2064
        %v2066 = vmul.f32 %v2065, %v1511
        %v2067 = vsub.f32 %v2063, %v2066
        %v2068 = vmul.f32 %v2067, %v2067
        %2069 = vadd.xlane.f32.xlu0 %v2068
        %v2070 = vpop.xlane.xlu0 %2069
        %v2071 = vmul.f32 %v2070, %v1511
        %v2072 = vadd.f32 %v2071, 1e-05
        %v2073 = vrsqrt.pop %v2072
        %v2074 = vmul.f32 %v2073, %v2072
        %v2075 = vmul.f32 %v2074, %v2073
        %v2076 = vmul.f32 0.5, %v2075
        %v2077 = vsub.f32 1.5, %v2076
        %v2078 = vmul.f32 %v2073, %v2077
        %vm2079 = vweird.f32 %v2072
        %vm2080 = vweird.f32 %v2073
        %vm2081 = vmor %vm2079, %vm2080
        %v2082 = vsel %vm2081, %v2073, %v2078
        %v2083 = vmul.f32 %v2067, %v2082
        %v2085 = vperm.slane %v1723, 0
        %v2087 = vmul.f32 %v2083, %v2085
        %v2089 = vperm.slane %v1724, 0
        %v2091 = vadd.f32 %v2087, %v2089
        %v2093 = vperm.slane %v1757, 0
        %v2094 = vperm.slane %v1757, 1
        %2097 = vmatpush.msra.mxu0 %v1755
        %2098 = vmatpush.msra.mxu0 %v1753
        %2099 = vmatpush.msra.mxu0 %v1751
        %2100 = vmatpush.msra.mxu0 %v1749
        %2101 = vmatpush.msra.mxu0 %v1747
        %2102 = vmatpush.msra.mxu0 %v1745
        %2103 = vmatpush.msra.mxu0 %v1743
        %2104 = vmatpush.msra.mxu0 %v1741
        %2105 = vmatpush.msra.mxu0 %v1739
        %2106 = vmatpush.msra.mxu0 %v1737
        %2107 = vmatpush.msra.mxu0 %v1735
        %2108 = vmatpush.msra.mxu0 %v1733
        %2109 = vmatpush.msra.mxu0 %v1731
        %2110 = vmatpush.msra.mxu0 %v1729
        %2111 = vmatpush.msra.mxu0 %v1727
        %2112 = vmatpush.msra.mxu0 %v1725
        %2113 = vmatmul.f32.gmra.mxu0 %v2091
        %v2114 = vpop.f32.mrf.mxu0
        %v2115 = vadd.f32 %v2093, %v2114
        %2116 = vdwg.mxu0
        %2117 = vmatpush.msra.mxu0 %v1756
        %2118 = vmatpush.msra.mxu0 %v1754
        %2119 = vmatpush.msra.mxu0 %v1752
        %2120 = vmatpush.msra.mxu0 %v1750
        %2121 = vmatpush.msra.mxu0 %v1748
        %2122 = vmatpush.msra.mxu0 %v1746
        %2123 = vmatpush.msra.mxu0 %v1744
        %2124 = vmatpush.msra.mxu0 %v1742
        %2125 = vmatpush.msra.mxu0 %v1740
        %2126 = vmatpush.msra.mxu0 %v1738
        %2127 = vmatpush.msra.mxu0 %v1736
        %2128 = vmatpush.msra.mxu0 %v1734
        %2129 = vmatpush.msra.mxu0 %v1732
        %2130 = vmatpush.msra.mxu0 %v1730
        %2131 = vmatpush.msra.mxu0 %v1728
        %2132 = vmatpush.msra.mxu0 %v1726
        %2133 = vmatmul.f32.gmra.mxu0 %v2091
        %v2134 = vpop.f32.mrf.mxu0
        %v2135 = vadd.f32 %v2094, %v2134
        %2136 = vdwg.mxu0
        %v2137 = vmax.f32 %v2115, 0.0
        %v2138 = vmax.f32 %v2135, 0.0
        %v2140 = vperm.slane %v1790, 0
        %2142 = vmatpush.msra.mxu0 %v1773
        %2143 = vmatpush.msra.mxu0 %v1772
        %2144 = vmatpush.msra.mxu0 %v1771
        %2145 = vmatpush.msra.mxu0 %v1770
        %2146 = vmatpush.msra.mxu0 %v1769
        %2147 = vmatpush.msra.mxu0 %v1768
        %2148 = vmatpush.msra.mxu0 %v1767
        %2149 = vmatpush.msra.mxu0 %v1766
        %2150 = vmatpush.msra.mxu0 %v1765
        %2151 = vmatpush.msra.mxu0 %v1764
        %2152 = vmatpush.msra.mxu0 %v1763
        %2153 = vmatpush.msra.mxu0 %v1762
        %2154 = vmatpush.msra.mxu0 %v1761
        %2155 = vmatpush.msra.mxu0 %v1760
        %2156 = vmatpush.msra.mxu0 %v1759
        %2157 = vmatpush.msra.mxu0 %v1758
        %2158 = vmatmul.f32.gmra.mxu0 %v2137
        %v2159 = vpop.f32.mrf.mxu0
        %v2160 = vadd.f32 %v2140, %v2159
        %2161 = vdwg.mxu0
        %2162 = vmatpush.msra.mxu0 %v1789
        %2163 = vmatpush.msra.mxu0 %v1788
        %2164 = vmatpush.msra.mxu0 %v1787
        %2165 = vmatpush.msra.mxu0 %v1786
        %2166 = vmatpush.msra.mxu0 %v1785
        %2167 = vmatpush.msra.mxu0 %v1784
        %2168 = vmatpush.msra.mxu0 %v1783
        %2169 = vmatpush.msra.mxu0 %v1782
        %2170 = vmatpush.msra.mxu0 %v1781
        %2171 = vmatpush.msra.mxu0 %v1780
        %2172 = vmatpush.msra.mxu0 %v1779
        %2173 = vmatpush.msra.mxu0 %v1778
        %2174 = vmatpush.msra.mxu0 %v1777
        %2175 = vmatpush.msra.mxu0 %v1776
        %2176 = vmatpush.msra.mxu0 %v1775
        %2177 = vmatpush.msra.mxu0 %v1774
        %2178 = vmatmul.f32.gmra.mxu0 %v2138
        %v2179 = vpop.f32.mrf.mxu0
        %v2180 = vadd.f32 %v2160, %v2179
        %2181 = vdwg.mxu0
        %v2182 = vadd.f32 %v2091, %v2180
        %2183 = vadd.xlane.f32.xlu0 %v2182
        %v2184 = vpop.xlane.xlu0 %2183
        %v2185 = vmul.f32 %v2184, %v1511
        %v2186 = vsub.f32 %v2182, %v2185
        %v2187 = vmul.f32 %v2186, %v2186
        %2188 = vadd.xlane.f32.xlu0 %v2187
        %v2189 = vpop.xlane.xlu0 %2188
        %v2190 = vmul.f32 %v2189, %v1511
        %v2191 = vadd.f32 %v2190, 1e-05
        %v2192 = vrsqrt.pop %v2191
        %v2193 = vmul.f32 %v2192, %v2191
        %v2194 = vmul.f32 %v2193, %v2192
        %v2195 = vmul.f32 0.5, %v2194
        %v2196 = vsub.f32 1.5, %v2195
        %v2197 = vmul.f32 %v2192, %v2196
        %vm2198 = vweird.f32 %v2191
        %vm2199 = vweird.f32 %v2192
        %vm2200 = vmor %vm2198, %vm2199
        %v2201 = vsel %vm2200, %v2192, %v2197
        %v2202 = vmul.f32 %v2186, %v2201
        %v2204 = vperm.slane %v1791, 0
        %v2206 = vmul.f32 %v2202, %v2204
        %v2208 = vperm.slane %v1792, 0
        %v2210 = vadd.f32 %v2206, %v2208
        %v2211 = vld [vmem:[%s57] sm:$0xff]
        %v2212 = vld [vmem:[%s57 + $0x8] sm:$0xff]
        %v2213 = vld [vmem:[%s57 + $0x10] sm:$0xff]
        %v2214 = vld [vmem:[%s57 + $0x18] sm:$0xff]
        %v2215 = vld [vmem:[%s57 + $0x20] sm:$0xff]
        %v2216 = vld [vmem:[%s57 + $0x28] sm:$0xff]
        %v2217 = vld [vmem:[%s57 + $0x30] sm:$0xff]
        %v2218 = vld [vmem:[%s57 + $0x38] sm:$0xff]
        %v2219 = vld [vmem:[%s57 + $0x40] sm:$0xff]
        %v2220 = vld [vmem:[%s57 + $0x48] sm:$0xff]
        %v2221 = vld [vmem:[%s57 + $0x50] sm:$0xff]
        %v2222 = vld [vmem:[%s57 + $0x58] sm:$0xff]
        %v2223 = vld [vmem:[%s57 + $0x60] sm:$0xff]
        %v2224 = vld [vmem:[%s57 + $0x68] sm:$0xff]
        %v2225 = vld [vmem:[%s57 + $0x70] sm:$0xff]
        %v2226 = vld [vmem:[%s57 + $0x78] sm:$0xff]
        %v2227 = vld [vmem:[%s59] sm:$0x1]
        %2228 = vmatpush.msra.mxu0 %v2226
        %2229 = vmatpush.msra.mxu0 %v2225
        %2230 = vmatpush.msra.mxu0 %v2224
        %2231 = vmatpush.msra.mxu0 %v2223
        %2232 = vmatpush.msra.mxu0 %v2222
        %2233 = vmatpush.msra.mxu0 %v2221
        %2234 = vmatpush.msra.mxu0 %v2220
        %2235 = vmatpush.msra.mxu0 %v2219
        %2236 = vmatpush.msra.mxu0 %v2218
        %2237 = vmatpush.msra.mxu0 %v2217
        %2238 = vmatpush.msra.mxu0 %v2216
        %2239 = vmatpush.msra.mxu0 %v2215
        %2240 = vmatpush.msra.mxu0 %v2214
        %2241 = vmatpush.msra.mxu0 %v2213
        %2242 = vmatpush.msra.mxu0 %v2212
        %2243 = vmatpush.msra.mxu0 %v2211
        %2244 = vmatmul.f32.gmra.mxu0 %v2210
        %v2245 = vpop.f32.mrf.mxu0
        %v2246 = vadd.f32 %v2227, %v2245
        %2247 = vdwg.mxu0
        %vm2248 = vcmask 24576
        %v2249 = vsel %vm2248, %v2246, -inf
        %2250 = vmax.xlane.f32.xlu0 %v2249
        %v2251 = vpop.xlane.xlu0 %2250
        %v2252 = vsub.f32 %v2246, %v2251
        %v2253 = vmul.f32 %v2252, 1.442695
        %v2254 = vpow.pop %v2253
        %v2255 = vsel %vm2248, %v2254, 0.0
        %2256 = vadd.xlane.f32.xlu0 %v2255
        %v2257 = vpop.xlane.xlu0 %2256
        %v2258 = vlog2.pop %v2257
        %v2259 = vmul.f32 %v2258, 0.6931472
        %v2260 = vadd.f32 %v2251, %v2259
        %v2261 = vsub.f32 %v2246, %v2260
        %2262 = vst.msk [vmem:[%s1030] sm:$0x1] %vm2248, %v2261
        %s2263 = sand.u32 %s690, 1
        %s2264 = scalar_lea.sflag [#allocation8], %s2263
        %s2265 = sand.u32 %s690, 1
        %s2266 = scalar_lea.vmem [#allocation23], %s2265
        // Predicated region
        $region173: #{transformer_forward.1} parent=131 // pred_check
          %p2267 = pneg %p700
        $region174: #{transformer_forward.1} parent=131 // pred_check_branch
          %2269 = sbr.rel (%p2267) target = $region176
        $region175: #{transformer_forward.1} parent=131 // pred_region
          %2271 = vsyncadd %s2264, 0
          %s2272 = scalar_lea.hbm %s61, %s94
          %s2274 = sshll.u32 %s2266, 4
          %s2275 = int_to_ptr.vmem [resolvable:$true] %s2274
          %s2276 = sshll.u32 %s2272, 4
          %s2277 = int_to_ptr.hbm [resolvable:$true] %s2276
          %2279 = dma.vmem_to_hbm [thread:$0]  %s2275, 16, %s2277, %s2264
        $region176: #{transformer_forward.1} parent=131 // pred_fallthru
          _
      $region132: #{transformer_forward.1} parent=5 // pred_fallthru
        _
      %p2280 = scmp.le.s32.totalorder 2, %s89
      // Predicated region
      $region177: #{transformer_forward.1} parent=5 // pred_check
        %p2281 = pneg %p2280
      $region178: #{transformer_forward.1} parent=5 // pred_check_branch
        %2283 = sbr.rel (%p2281) target = $region180
      $region179: #{transformer_forward.1} parent=5 // pred_region
        %s2284 = ssub.s32 %s89, 2
        // Predicated region
        $region181: #{transformer_forward.1} parent=179 // pred_check
          %p2285 = pneg %p706
        $region182: #{transformer_forward.1} parent=179 // pred_check_branch
          %2287 = sbr.rel (%p2285) target = $region184
        $region183: #{transformer_forward.1} parent=179 // pred_region
          %s2288 = sand.u32 %s691, 1
          %s2289 = scalar_lea.sflag [#allocation8], %s2288
          %s2290 = sand.u32 %s691, 1
          %s2291 = scalar_lea.vmem [#allocation23], %s2290
          %2293 = dma.done %s2289, 16
        $region184: #{transformer_forward.1} parent=179 // pred_fallthru
          _
      $region180: #{transformer_forward.1} parent=5 // pred_fallthru
        _
    $region6: #{transformer_forward.1} parent=1 // loop_footer
      %s93 = sadd.s32 1, %s89
    $region7: #{transformer_forward.1} parent=1 // loop_footer_branch
      %88 = sbr.rel target = $region3
    $region8: #{transformer_forward.1} parent=1 // loop_exit
      _
    %2294 = vsyncpa [#allocation7], 1
    %s2295 = scalar_lea.sflag [#allocation7], 1
    %2296 = vsyncpa %s2295, 1
    %2297 = vsyncpa [#allocation10], 1
    %2298 = vsyncpa [#allocation13], 1
    %2299 = vsyncpa [#allocation16], 1
    %2300 = vsyncpa [#allocation19], 1
    %2301 = vsyncpa [#allocation22], 1
    %2302 = vsyncpa [#allocation8], 1
    %s2303 = scalar_lea.sflag [#allocation8], 1
    %2304 = vsyncpa %s2303, 1

</llo_original>
